<compile_context>
chip_gen: v7x
topology: tpu7x:2x2x1
jax: 0.10.0
libtpu: 0.0.40
codegen_flags: <defaults>
</compile_context>

<pallas_src>
import jax
import jax.numpy as jnp
from jax import lax
from jax.experimental import pallas as pl
from jax.experimental.pallas import tpu as pltpu


def make_deform_conv_kernel(H, W, C_out, TQ):
    def kernel(xw_ref, pos_ref, o_ref):
        # Source row / column indices along sublanes (tap-independent; hoisted out of the
        # tap loop — JAX does not CSE broadcast/iota).
        iy = lax.broadcasted_iota(jnp.int32, (H, TQ), 0)      # (H, TQ)
        jx = lax.broadcasted_iota(jnp.int32, (W, TQ), 0)      # (W, TQ)

        acc = jnp.zeros((C_out, TQ), jnp.float32)
        for k in range(9):                                    # static 3x3 tap loop
            py = pos_ref[0, 2 * k:2 * k + 1, :]               # (1, TQ) absolute y
            px = pos_ref[0, 2 * k + 1:2 * k + 2, :]           # (1, TQ) absolute x
            py0 = jnp.floor(py)
            px0 = jnp.floor(px)
            ly = py - py0                                     # (1, TQ) in [0, 1)
            lx = px - px0
            iy0 = py0.astype(jnp.int32)                       # (1, TQ)
            ix0 = px0.astype(jnp.int32)

            # Separable bilinear selectors.  Zero padding is handled by the index compare
            # itself: an out-of-range corner matches no row/column, so it contributes 0
            # (per-axis indices cannot alias the way a flat index wraps).
            a = (jnp.where(iy == iy0, 1.0 - ly, 0.0) +
                 jnp.where(iy == iy0 + 1, ly, 0.0))                        # (H, TQ) f32
            b = (jnp.where(jx == ix0, 1.0 - lx, 0.0) +
                 jnp.where(jx == ix0 + 1, lx, 0.0)).astype(jnp.bfloat16)   # (W, TQ) bf16

            # Column gather as one MXU matmul:  (C_out*H, W) @ (W, TQ) -> (C_out*H, TQ).
            xk = xw_ref[0, k]                                 # (C_out*H, W) bf16
            t = jnp.dot(xk, b, preferred_element_type=jnp.float32)
            # Row gather: weight by a_k (broadcast over C_out) and reduce over H.
            acc = acc + jnp.sum(t.reshape(C_out, H, TQ) * a[None, :, :], axis=1)

        o_ref[0] = acc

    return kernel


def adaptive_conv_pallas(x_nchw, offset, weight):
    """x_nchw: (N, C_in, H, W); offset: (N, H*W, 18) with pairs (dy_k, dx_k) per 3x3 tap
    (k = kh*3 + kw row-major); weight: (C_out, C_in, 3, 3). Returns (N, C_out, H, W)."""
    N, C_in, H, W = x_nchw.shape
    HW = H * W
    C_out = weight.shape[0]
    assert offset.shape == (N, HW, 18)

    # Query tiling: pad HW up to a multiple of 128 so the query axis is always lane-dense
    # and pipelined; prefer a larger tile to amortize per-grid-step overhead.
    HW_pad = ((HW + 127) // 128) * 128
    TQ = 256 if HW_pad % 256 == 0 else 128
    n_qt = HW_pad // TQ

    # Absolute sampling positions per tap, computed once in the wrapper and passed
    # lane-dense as (N, 18, HW_pad).
    off = offset.astype(jnp.float32).reshape(N, HW, 9, 2)               # (..., (dy, dx))
    hh, ww = jnp.meshgrid(jnp.arange(H, dtype=jnp.float32),
                          jnp.arange(W, dtype=jnp.float32), indexing="ij")
    base_y = hh.reshape(HW)
    base_x = ww.reshape(HW)
    k_dy = (jnp.arange(9) // 3 - 1).astype(jnp.float32)                 # tap row offset
    k_dx = (jnp.arange(9) % 3 - 1).astype(jnp.float32)                  # tap col offset
    pos_y = base_y[None, :, None] + k_dy[None, None, :] + off[..., 0]   # (N, HW, 9)
    pos_x = base_x[None, :, None] + k_dx[None, None, :] + off[..., 1]
    # Anything outside [-1, H]/[-1, W] samples zero anyway; clamping keeps the in-kernel
    # float->int32 cast safely in range for arbitrarily large offsets.
    pos_y = jnp.clip(pos_y, -2.0, float(H) + 1.0)
    pos_x = jnp.clip(pos_x, -2.0, float(W) + 1.0)
    pos = jnp.stack([pos_y, pos_x], axis=-1).reshape(N, HW, 18)
    pos = jnp.transpose(pos, (0, 2, 1))                                 # (N, 18, HW)
    pos = jnp.pad(pos, ((0, 0), (0, 0), (0, HW_pad - HW)),
                  constant_values=-2.0)                                 # padded queries -> 0

    # Hoisted weight pre-projection (identical for every query tile; done once per image):
    # xw[n, k, o*H + y, x] = sum_c weight[o, c, kh, kw] * x[n, c, y, x],  k = kh*3 + kw.
    # The (9*C_out, HW) -> (9, C_out*H, W) reshape is a free row-major view in HBM.
    w_big = jnp.transpose(weight, (2, 3, 0, 1)).reshape(9 * C_out, C_in).astype(jnp.float32)
    x_flat = x_nchw.reshape(N, C_in, HW).astype(jnp.float32)
    xw = jnp.einsum("kc,nch->nkh", w_big, x_flat, precision="highest")  # (N, 9*C_out, HW)
    xw = xw.astype(jnp.bfloat16).reshape(N, 9, C_out * H, W)

    kernel = make_deform_conv_kernel(H, W, C_out, TQ)
    out = pl.pallas_call(
        kernel,
        out_shape=jax.ShapeDtypeStruct((N, C_out, HW_pad), jnp.float32),
        grid_spec=pltpu.PrefetchScalarGridSpec(
            num_scalar_prefetch=0,
            grid=(N, n_qt),
            in_specs=[
                # Full per-image xw; block index constant over q -> DMA'd once per image.
                # TODO(synk): for very large images (e.g. 64ch x 64x64 on v7x) tile the
                # source extent (the W contraction / a source-row axis) so this block
                # stays within the 64 MiB v7x VMEM.
                pl.BlockSpec((1, 9, C_out * H, W), lambda n, q: (n, 0, 0, 0)),
                pl.BlockSpec((1, 18, TQ), lambda n, q: (n, 0, q)),      # positions, tiled
            ],
            out_specs=pl.BlockSpec((1, C_out, TQ), lambda n, q: (n, 0, q)),
        ),
        compiler_params=pltpu.CompilerParams(
            dimension_semantics=("parallel", "parallel"),
            vmem_limit_bytes=32 * 1024 * 1024,
        ),
    )(xw, pos)

    out = out[:, :, :HW]
    return out.reshape(N, C_out, H, W)                                  # already NCHW


def adaptive_conv_reference(x_nchw, offset, weight):
    """Pure-JAX reference matching DeformConv (zero-padded bilinear sampling), f32."""
    N, C, H, W = x_nchw.shape
    HW = H * W
    C_out = weight.shape[0]
    off = offset.reshape(N, HW, 9, 2).astype(jnp.float32)               # (..., (dy, dx))

    hh, ww = jnp.meshgrid(jnp.arange(H, dtype=jnp.float32),
                          jnp.arange(W, dtype=jnp.float32), indexing="ij")
    base_y = hh.reshape(HW)
    base_x = ww.reshape(HW)
    ky = jnp.repeat(jnp.arange(3, dtype=jnp.float32) - 1.0, 3)          # (9,)
    kx = jnp.tile(jnp.arange(3, dtype=jnp.float32) - 1.0, 3)

    py = base_y[None, :, None] + ky[None, None, :] + off[..., 0]        # (N, HW, 9)
    px = base_x[None, :, None] + kx[None, None, :] + off[..., 1]

    def sample_one_channel(xc, pyb, pxb):
        py0 = jnp.floor(pyb)
        px0 = jnp.floor(pxb)
        ly = pyb - py0
        lx = pxb - px0

        def at(iy, ix):
            valid = (iy >= 0) & (iy <= H - 1) & (ix >= 0) & (ix <= W - 1)
            iyc = jnp.clip(iy.astype(jnp.int32), 0, H - 1)
            ixc = jnp.clip(ix.astype(jnp.int32), 0, W - 1)
            return jnp.where(valid, xc[iyc, ixc], 0.0)

        return (at(py0, px0) * (1 - ly) * (1 - lx) +
                at(py0, px0 + 1) * (1 - ly) * lx +
                at(py0 + 1, px0) * ly * (1 - lx) +
                at(py0 + 1, px0 + 1) * ly * lx)                         # (HW, 9)

    samp = jax.vmap(  # over batch
        lambda xb, pyb, pxb: jax.vmap(lambda xc: sample_one_channel(xc, pyb, pxb))(xb)
    )(x_nchw.astype(jnp.float32), py, px)                               # (N, C, HW, 9)

    wk = weight.reshape(C_out, C, 9).astype(jnp.float32)
    out = jnp.einsum("ncpk,ock->nop", samp, wk, precision="highest")    # (N, C_out, HW)
    return out.reshape(N, C_out, H, W)


if __name__ == "__main__":
    N, C_in, H, W = 2, 4, 16, 16
    C_out = 8
    HW = H * W

    key = jax.random.PRNGKey(0)
    kx_, koff, kw_ = jax.random.split(key, 3)

    x = jax.random.normal(kx_, (N, C_in, H, W), dtype=jnp.float32)
    # offset as the module receives it: (N, H*W, 18); pairs (dy_k, dx_k) per 3x3 tap.
    offset = jax.random.normal(koff, (N, HW, 18), dtype=jnp.float32) * 1.5
    # DeformConv weight (C_out, C_in, 3, 3); DeformConv has no bias.
    weight = jax.random.normal(kw_, (C_out, C_in, 3, 3), dtype=jnp.float32) * 0.1

    out = jax.block_until_ready(adaptive_conv_pallas(x, offset, weight))
    ref = jax.block_until_ready(adaptive_conv_reference(x, offset, weight))

    assert out.shape == (N, C_out, H, W), out.shape
    # bf16 MXU operands with f32 accumulation -> relax tolerance vs the f32 reference.
    max_err = float(jnp.max(jnp.abs(out - ref)))
    assert jnp.allclose(out, ref, rtol=2e-2, atol=2e-2), max_err

    print("KERNEL_OK")
</pallas_src>

<mosaic_0001>
module attributes {stable_mosaic.version = 11 : i64} {
  func.func @kernel(%arg0: i32, %arg1: i32, %arg2: memref<1x9x128x16xbf16, #tpu.memory_space<vmem>>, %arg3: memref<1x18x256xf32, #tpu.memory_space<vmem>>, %arg4: memref<1x8x256xf32, #tpu.memory_space<vmem>>) attributes {dimension_semantics = [#tpu.dimension_semantics<parallel>, #tpu.dimension_semantics<parallel>], iteration_bounds = array<i64: 2, 1>, scalar_prefetch = 0 : i64, scratch_operands = 0 : i64, tpu.core_type = #tpu.core_type<tc>, window_params = [{transform_indices = @transform_0, window_bounds = array<i64: 1, 9, 128, 16>}, {transform_indices = @transform_1, window_bounds = array<i64: 1, 18, 256>}, {transform_indices = @transform_2, window_bounds = array<i64: 1, 8, 256>}]} {
    %0 = tpu.iota {dimensions = array<i32: 0>} : vector<16x256xi32>
    %1 = tpu.iota {dimensions = array<i32: 0>} : vector<16x256xi32>
    %cst = arith.constant 0.000000e+00 : f32
    %2 = vector.broadcast %cst : f32 to vector<8x256xf32>
    %c0 = arith.constant 0 : index
    %c0_0 = arith.constant 0 : index
    %c0_1 = arith.constant 0 : index
    %3 = vector.load %arg3[%c0, %c0_0, %c0_1] : memref<1x18x256xf32, #tpu.memory_space<vmem>>, vector<1x1x256xf32>
    %4 = vector.shape_cast %3 : vector<1x1x256xf32> to vector<1x256xf32>
    %c0_2 = arith.constant 0 : index
    %c1 = arith.constant 1 : index
    %c0_3 = arith.constant 0 : index
    %5 = vector.load %arg3[%c0_2, %c1, %c0_3] : memref<1x18x256xf32, #tpu.memory_space<vmem>>, vector<1x1x256xf32>
    %6 = vector.shape_cast %5 : vector<1x1x256xf32> to vector<1x256xf32>
    %7 = math.floor %4 : vector<1x256xf32>
    %8 = math.floor %6 : vector<1x256xf32>
    %9 = arith.subf %4, %7 : vector<1x256xf32>
    %10 = arith.subf %6, %8 : vector<1x256xf32>
    %11 = arith.fptosi %7 : vector<1x256xf32> to vector<1x256xi32>
    %12 = arith.fptosi %8 : vector<1x256xf32> to vector<1x256xi32>
    %13 = vector.broadcast %11 : vector<1x256xi32> to vector<16x256xi32>
    %14 = arith.cmpi eq, %0, %13 : vector<16x256xi32>
    %cst_4 = arith.constant 1.000000e+00 : f32
    %15 = vector.broadcast %cst_4 : f32 to vector<1x256xf32>
    %16 = arith.subf %15, %9 : vector<1x256xf32>
    %cst_5 = arith.constant 0.000000e+00 : f32
    %17 = vector.shape_cast %16 : vector<1x256xf32> to vector<1x256xf32>
    %18 = vector.broadcast %17 : vector<1x256xf32> to vector<16x256xf32>
    %19 = vector.broadcast %cst_5 : f32 to vector<16x256xf32>
    %20 = arith.select %14, %18, %19 : vector<16x256xi1>, vector<16x256xf32>
    %c1_i32 = arith.constant 1 : i32
    %21 = vector.broadcast %c1_i32 : i32 to vector<1x256xi32>
    %22 = arith.addi %11, %21 : vector<1x256xi32>
    %23 = vector.broadcast %22 : vector<1x256xi32> to vector<16x256xi32>
    %24 = arith.cmpi eq, %0, %23 : vector<16x256xi32>
    %cst_6 = arith.constant 0.000000e+00 : f32
    %25 = vector.shape_cast %9 : vector<1x256xf32> to vector<1x256xf32>
    %26 = vector.broadcast %25 : vector<1x256xf32> to vector<16x256xf32>
    %27 = vector.broadcast %cst_6 : f32 to vector<16x256xf32>
    %28 = arith.select %24, %26, %27 : vector<16x256xi1>, vector<16x256xf32>
    %29 = arith.addf %20, %28 : vector<16x256xf32>
    %30 = vector.broadcast %12 : vector<1x256xi32> to vector<16x256xi32>
    %31 = arith.cmpi eq, %1, %30 : vector<16x256xi32>
    %cst_7 = arith.constant 1.000000e+00 : f32
    %32 = vector.broadcast %cst_7 : f32 to vector<1x256xf32>
    %33 = arith.subf %32, %10 : vector<1x256xf32>
    %cst_8 = arith.constant 0.000000e+00 : f32
    %34 = vector.shape_cast %33 : vector<1x256xf32> to vector<1x256xf32>
    %35 = vector.broadcast %34 : vector<1x256xf32> to vector<16x256xf32>
    %36 = vector.broadcast %cst_8 : f32 to vector<16x256xf32>
    %37 = arith.select %31, %35, %36 : vector<16x256xi1>, vector<16x256xf32>
    %c1_i32_9 = arith.constant 1 : i32
    %38 = vector.broadcast %c1_i32_9 : i32 to vector<1x256xi32>
    %39 = arith.addi %12, %38 : vector<1x256xi32>
    %40 = vector.broadcast %39 : vector<1x256xi32> to vector<16x256xi32>
    %41 = arith.cmpi eq, %1, %40 : vector<16x256xi32>
    %cst_10 = arith.constant 0.000000e+00 : f32
    %42 = vector.shape_cast %10 : vector<1x256xf32> to vector<1x256xf32>
    %43 = vector.broadcast %42 : vector<1x256xf32> to vector<16x256xf32>
    %44 = vector.broadcast %cst_10 : f32 to vector<16x256xf32>
    %45 = arith.select %41, %43, %44 : vector<16x256xi1>, vector<16x256xf32>
    %46 = arith.addf %37, %45 : vector<16x256xf32>
    %47 = arith.truncf %46 : vector<16x256xf32> to vector<16x256xbf16>
    %c0_11 = arith.constant 0 : index
    %c0_12 = arith.constant 0 : index
    %c0_13 = arith.constant 0 : index
    %c0_14 = arith.constant 0 : index
    %48 = vector.load %arg2[%c0_11, %c0_12, %c0_13, %c0_14] : memref<1x9x128x16xbf16, #tpu.memory_space<vmem>>, vector<1x1x128x16xbf16>
    %49 = vector.shape_cast %48 : vector<1x1x128x16xbf16> to vector<128x16xbf16>
    %cst_15 = arith.constant dense<0.000000e+00> : vector<128x256xf32>
    %50 = tpu.matmul %49, %47, %cst_15 {dimension_numbers = #tpu.dot_dimension_numbers<[1], [0], [0], [1], [0, 0, 1, 1], [], []>} : vector<128x16xbf16>, vector<16x256xbf16>, vector<128x256xf32> -> vector<128x256xf32>
    %51 = vector.shape_cast %50 : vector<128x256xf32> to vector<8x16x256xf32>
    %52 = vector.shape_cast %29 : vector<16x256xf32> to vector<1x16x256xf32>
    %53 = vector.broadcast %52 : vector<1x16x256xf32> to vector<8x16x256xf32>
    %54 = arith.mulf %51, %53 : vector<8x16x256xf32>
    %cst_16 = arith.constant dense<0.000000e+00> : vector<8x256xf32>
    %55 = vector.multi_reduction <add>, %54, %cst_16 [1] : vector<8x16x256xf32> to vector<8x256xf32>
    %56 = arith.addf %2, %55 : vector<8x256xf32>
    %c0_17 = arith.constant 0 : index
    %c2 = arith.constant 2 : index
    %c0_18 = arith.constant 0 : index
    %57 = vector.load %arg3[%c0_17, %c2, %c0_18] : memref<1x18x256xf32, #tpu.memory_space<vmem>>, vector<1x1x256xf32>
    %58 = vector.shape_cast %57 : vector<1x1x256xf32> to vector<1x256xf32>
    %c0_19 = arith.constant 0 : index
    %c3 = arith.constant 3 : index
    %c0_20 = arith.constant 0 : index
    %59 = vector.load %arg3[%c0_19, %c3, %c0_20] : memref<1x18x256xf32, #tpu.memory_space<vmem>>, vector<1x1x256xf32>
    %60 = vector.shape_cast %59 : vector<1x1x256xf32> to vector<1x256xf32>
    %61 = math.floor %58 : vector<1x256xf32>
    %62 = math.floor %60 : vector<1x256xf32>
    %63 = arith.subf %58, %61 : vector<1x256xf32>
    %64 = arith.subf %60, %62 : vector<1x256xf32>
    %65 = arith.fptosi %61 : vector<1x256xf32> to vector<1x256xi32>
    %66 = arith.fptosi %62 : vector<1x256xf32> to vector<1x256xi32>
    %67 = vector.broadcast %65 : vector<1x256xi32> to vector<16x256xi32>
    %68 = arith.cmpi eq, %0, %67 : vector<16x256xi32>
    %cst_21 = arith.constant 1.000000e+00 : f32
    %69 = vector.broadcast %cst_21 : f32 to vector<1x256xf32>
    %70 = arith.subf %69, %63 : vector<1x256xf32>
    %cst_22 = arith.constant 0.000000e+00 : f32
    %71 = vector.shape_cast %70 : vector<1x256xf32> to vector<1x256xf32>
    %72 = vector.broadcast %71 : vector<1x256xf32> to vector<16x256xf32>
    %73 = vector.broadcast %cst_22 : f32 to vector<16x256xf32>
    %74 = arith.select %68, %72, %73 : vector<16x256xi1>, vector<16x256xf32>
    %c1_i32_23 = arith.constant 1 : i32
    %75 = vector.broadcast %c1_i32_23 : i32 to vector<1x256xi32>
    %76 = arith.addi %65, %75 : vector<1x256xi32>
    %77 = vector.broadcast %76 : vector<1x256xi32> to vector<16x256xi32>
    %78 = arith.cmpi eq, %0, %77 : vector<16x256xi32>
    %cst_24 = arith.constant 0.000000e+00 : f32
    %79 = vector.shape_cast %63 : vector<1x256xf32> to vector<1x256xf32>
    %80 = vector.broadcast %79 : vector<1x256xf32> to vector<16x256xf32>
    %81 = vector.broadcast %cst_24 : f32 to vector<16x256xf32>
    %82 = arith.select %78, %80, %81 : vector<16x256xi1>, vector<16x256xf32>
    %83 = arith.addf %74, %82 : vector<16x256xf32>
    %84 = vector.broadcast %66 : vector<1x256xi32> to vector<16x256xi32>
    %85 = arith.cmpi eq, %1, %84 : vector<16x256xi32>
    %cst_25 = arith.constant 1.000000e+00 : f32
    %86 = vector.broadcast %cst_25 : f32 to vector<1x256xf32>
    %87 = arith.subf %86, %64 : vector<1x256xf32>
    %cst_26 = arith.constant 0.000000e+00 : f32
    %88 = vector.shape_cast %87 : vector<1x256xf32> to vector<1x256xf32>
    %89 = vector.broadcast %88 : vector<1x256xf32> to vector<16x256xf32>
    %90 = vector.broadcast %cst_26 : f32 to vector<16x256xf32>
    %91 = arith.select %85, %89, %90 : vector<16x256xi1>, vector<16x256xf32>
    %c1_i32_27 = arith.constant 1 : i32
    %92 = vector.broadcast %c1_i32_27 : i32 to vector<1x256xi32>
    %93 = arith.addi %66, %92 : vector<1x256xi32>
    %94 = vector.broadcast %93 : vector<1x256xi32> to vector<16x256xi32>
    %95 = arith.cmpi eq, %1, %94 : vector<16x256xi32>
    %cst_28 = arith.constant 0.000000e+00 : f32
    %96 = vector.shape_cast %64 : vector<1x256xf32> to vector<1x256xf32>
    %97 = vector.broadcast %96 : vector<1x256xf32> to vector<16x256xf32>
    %98 = vector.broadcast %cst_28 : f32 to vector<16x256xf32>
    %99 = arith.select %95, %97, %98 : vector<16x256xi1>, vector<16x256xf32>
    %100 = arith.addf %91, %99 : vector<16x256xf32>
    %101 = arith.truncf %100 : vector<16x256xf32> to vector<16x256xbf16>
    %c0_29 = arith.constant 0 : index
    %c1_30 = arith.constant 1 : index
    %c0_31 = arith.constant 0 : index
    %c0_32 = arith.constant 0 : index
    %102 = vector.load %arg2[%c0_29, %c1_30, %c0_31, %c0_32] : memref<1x9x128x16xbf16, #tpu.memory_space<vmem>>, vector<1x1x128x16xbf16>
    %103 = vector.shape_cast %102 : vector<1x1x128x16xbf16> to vector<128x16xbf16>
    %cst_33 = arith.constant dense<0.000000e+00> : vector<128x256xf32>
    %104 = tpu.matmul %103, %101, %cst_33 {dimension_numbers = #tpu.dot_dimension_numbers<[1], [0], [0], [1], [0, 0, 1, 1], [], []>} : vector<128x16xbf16>, vector<16x256xbf16>, vector<128x256xf32> -> vector<128x256xf32>
    %105 = vector.shape_cast %104 : vector<128x256xf32> to vector<8x16x256xf32>
    %106 = vector.shape_cast %83 : vector<16x256xf32> to vector<1x16x256xf32>
    %107 = vector.broadcast %106 : vector<1x16x256xf32> to vector<8x16x256xf32>
    %108 = arith.mulf %105, %107 : vector<8x16x256xf32>
    %cst_34 = arith.constant dense<0.000000e+00> : vector<8x256xf32>
    %109 = vector.multi_reduction <add>, %108, %cst_34 [1] : vector<8x16x256xf32> to vector<8x256xf32>
    %110 = arith.addf %56, %109 : vector<8x256xf32>
    %c0_35 = arith.constant 0 : index
    %c4 = arith.constant 4 : index
    %c0_36 = arith.constant 0 : index
    %111 = vector.load %arg3[%c0_35, %c4, %c0_36] : memref<1x18x256xf32, #tpu.memory_space<vmem>>, vector<1x1x256xf32>
    %112 = vector.shape_cast %111 : vector<1x1x256xf32> to vector<1x256xf32>
    %c0_37 = arith.constant 0 : index
    %c5 = arith.constant 5 : index
    %c0_38 = arith.constant 0 : index
    %113 = vector.load %arg3[%c0_37, %c5, %c0_38] : memref<1x18x256xf32, #tpu.memory_space<vmem>>, vector<1x1x256xf32>
    %114 = vector.shape_cast %113 : vector<1x1x256xf32> to vector<1x256xf32>
    %115 = math.floor %112 : vector<1x256xf32>
    %116 = math.floor %114 : vector<1x256xf32>
    %117 = arith.subf %112, %115 : vector<1x256xf32>
    %118 = arith.subf %114, %116 : vector<1x256xf32>
    %119 = arith.fptosi %115 : vector<1x256xf32> to vector<1x256xi32>
    %120 = arith.fptosi %116 : vector<1x256xf32> to vector<1x256xi32>
    %121 = vector.broadcast %119 : vector<1x256xi32> to vector<16x256xi32>
    %122 = arith.cmpi eq, %0, %121 : vector<16x256xi32>
    %cst_39 = arith.constant 1.000000e+00 : f32
    %123 = vector.broadcast %cst_39 : f32 to vector<1x256xf32>
    %124 = arith.subf %123, %117 : vector<1x256xf32>
    %cst_40 = arith.constant 0.000000e+00 : f32
    %125 = vector.shape_cast %124 : vector<1x256xf32> to vector<1x256xf32>
    %126 = vector.broadcast %125 : vector<1x256xf32> to vector<16x256xf32>
    %127 = vector.broadcast %cst_40 : f32 to vector<16x256xf32>
    %128 = arith.select %122, %126, %127 : vector<16x256xi1>, vector<16x256xf32>
    %c1_i32_41 = arith.constant 1 : i32
    %129 = vector.broadcast %c1_i32_41 : i32 to vector<1x256xi32>
    %130 = arith.addi %119, %129 : vector<1x256xi32>
    %131 = vector.broadcast %130 : vector<1x256xi32> to vector<16x256xi32>
    %132 = arith.cmpi eq, %0, %131 : vector<16x256xi32>
    %cst_42 = arith.constant 0.000000e+00 : f32
    %133 = vector.shape_cast %117 : vector<1x256xf32> to vector<1x256xf32>
    %134 = vector.broadcast %133 : vector<1x256xf32> to vector<16x256xf32>
    %135 = vector.broadcast %cst_42 : f32 to vector<16x256xf32>
    %136 = arith.select %132, %134, %135 : vector<16x256xi1>, vector<16x256xf32>
    %137 = arith.addf %128, %136 : vector<16x256xf32>
    %138 = vector.broadcast %120 : vector<1x256xi32> to vector<16x256xi32>
    %139 = arith.cmpi eq, %1, %138 : vector<16x256xi32>
    %cst_43 = arith.constant 1.000000e+00 : f32
    %140 = vector.broadcast %cst_43 : f32 to vector<1x256xf32>
    %141 = arith.subf %140, %118 : vector<1x256xf32>
    %cst_44 = arith.constant 0.000000e+00 : f32
    %142 = vector.shape_cast %141 : vector<1x256xf32> to vector<1x256xf32>
    %143 = vector.broadcast %142 : vector<1x256xf32> to vector<16x256xf32>
    %144 = vector.broadcast %cst_44 : f32 to vector<16x256xf32>
    %145 = arith.select %139, %143, %144 : vector<16x256xi1>, vector<16x256xf32>
    %c1_i32_45 = arith.constant 1 : i32
    %146 = vector.broadcast %c1_i32_45 : i32 to vector<1x256xi32>
    %147 = arith.addi %120, %146 : vector<1x256xi32>
    %148 = vector.broadcast %147 : vector<1x256xi32> to vector<16x256xi32>
    %149 = arith.cmpi eq, %1, %148 : vector<16x256xi32>
    %cst_46 = arith.constant 0.000000e+00 : f32
    %150 = vector.shape_cast %118 : vector<1x256xf32> to vector<1x256xf32>
    %151 = vector.broadcast %150 : vector<1x256xf32> to vector<16x256xf32>
    %152 = vector.broadcast %cst_46 : f32 to vector<16x256xf32>
    %153 = arith.select %149, %151, %152 : vector<16x256xi1>, vector<16x256xf32>
    %154 = arith.addf %145, %153 : vector<16x256xf32>
    %155 = arith.truncf %154 : vector<16x256xf32> to vector<16x256xbf16>
    %c0_47 = arith.constant 0 : index
    %c2_48 = arith.constant 2 : index
    %c0_49 = arith.constant 0 : index
    %c0_50 = arith.constant 0 : index
    %156 = vector.load %arg2[%c0_47, %c2_48, %c0_49, %c0_50] : memref<1x9x128x16xbf16, #tpu.memory_space<vmem>>, vector<1x1x128x16xbf16>
    %157 = vector.shape_cast %156 : vector<1x1x128x16xbf16> to vector<128x16xbf16>
    %cst_51 = arith.constant dense<0.000000e+00> : vector<128x256xf32>
    %158 = tpu.matmul %157, %155, %cst_51 {dimension_numbers = #tpu.dot_dimension_numbers<[1], [0], [0], [1], [0, 0, 1, 1], [], []>} : vector<128x16xbf16>, vector<16x256xbf16>, vector<128x256xf32> -> vector<128x256xf32>
    %159 = vector.shape_cast %158 : vector<128x256xf32> to vector<8x16x256xf32>
    %160 = vector.shape_cast %137 : vector<16x256xf32> to vector<1x16x256xf32>
    %161 = vector.broadcast %160 : vector<1x16x256xf32> to vector<8x16x256xf32>
    %162 = arith.mulf %159, %161 : vector<8x16x256xf32>
    %cst_52 = arith.constant dense<0.000000e+00> : vector<8x256xf32>
    %163 = vector.multi_reduction <add>, %162, %cst_52 [1] : vector<8x16x256xf32> to vector<8x256xf32>
    %164 = arith.addf %110, %163 : vector<8x256xf32>
    %c0_53 = arith.constant 0 : index
    %c6 = arith.constant 6 : index
    %c0_54 = arith.constant 0 : index
    %165 = vector.load %arg3[%c0_53, %c6, %c0_54] : memref<1x18x256xf32, #tpu.memory_space<vmem>>, vector<1x1x256xf32>
    %166 = vector.shape_cast %165 : vector<1x1x256xf32> to vector<1x256xf32>
    %c0_55 = arith.constant 0 : index
    %c7 = arith.constant 7 : index
    %c0_56 = arith.constant 0 : index
    %167 = vector.load %arg3[%c0_55, %c7, %c0_56] : memref<1x18x256xf32, #tpu.memory_space<vmem>>, vector<1x1x256xf32>
    %168 = vector.shape_cast %167 : vector<1x1x256xf32> to vector<1x256xf32>
    %169 = math.floor %166 : vector<1x256xf32>
    %170 = math.floor %168 : vector<1x256xf32>
    %171 = arith.subf %166, %169 : vector<1x256xf32>
    %172 = arith.subf %168, %170 : vector<1x256xf32>
    %173 = arith.fptosi %169 : vector<1x256xf32> to vector<1x256xi32>
    %174 = arith.fptosi %170 : vector<1x256xf32> to vector<1x256xi32>
    %175 = vector.broadcast %173 : vector<1x256xi32> to vector<16x256xi32>
    %176 = arith.cmpi eq, %0, %175 : vector<16x256xi32>
    %cst_57 = arith.constant 1.000000e+00 : f32
    %177 = vector.broadcast %cst_57 : f32 to vector<1x256xf32>
    %178 = arith.subf %177, %171 : vector<1x256xf32>
    %cst_58 = arith.constant 0.000000e+00 : f32
    %179 = vector.shape_cast %178 : vector<1x256xf32> to vector<1x256xf32>
    %180 = vector.broadcast %179 : vector<1x256xf32> to vector<16x256xf32>
    %181 = vector.broadcast %cst_58 : f32 to vector<16x256xf32>
    %182 = arith.select %176, %180, %181 : vector<16x256xi1>, vector<16x256xf32>
    %c1_i32_59 = arith.constant 1 : i32
    %183 = vector.broadcast %c1_i32_59 : i32 to vector<1x256xi32>
    %184 = arith.addi %173, %183 : vector<1x256xi32>
    %185 = vector.broadcast %184 : vector<1x256xi32> to vector<16x256xi32>
    %186 = arith.cmpi eq, %0, %185 : vector<16x256xi32>
    %cst_60 = arith.constant 0.000000e+00 : f32
    %187 = vector.shape_cast %171 : vector<1x256xf32> to vector<1x256xf32>
    %188 = vector.broadcast %187 : vector<1x256xf32> to vector<16x256xf32>
    %189 = vector.broadcast %cst_60 : f32 to vector<16x256xf32>
    %190 = arith.select %186, %188, %189 : vector<16x256xi1>, vector<16x256xf32>
    %191 = arith.addf %182, %190 : vector<16x256xf32>
    %192 = vector.broadcast %174 : vector<1x256xi32> to vector<16x256xi32>
    %193 = arith.cmpi eq, %1, %192 : vector<16x256xi32>
    %cst_61 = arith.constant 1.000000e+00 : f32
    %194 = vector.broadcast %cst_61 : f32 to vector<1x256xf32>
    %195 = arith.subf %194, %172 : vector<1x256xf32>
    %cst_62 = arith.constant 0.000000e+00 : f32
    %196 = vector.shape_cast %195 : vector<1x256xf32> to vector<1x256xf32>
    %197 = vector.broadcast %196 : vector<1x256xf32> to vector<16x256xf32>
    %198 = vector.broadcast %cst_62 : f32 to vector<16x256xf32>
    %199 = arith.select %193, %197, %198 : vector<16x256xi1>, vector<16x256xf32>
    %c1_i32_63 = arith.constant 1 : i32
    %200 = vector.broadcast %c1_i32_63 : i32 to vector<1x256xi32>
    %201 = arith.addi %174, %200 : vector<1x256xi32>
    %202 = vector.broadcast %201 : vector<1x256xi32> to vector<16x256xi32>
    %203 = arith.cmpi eq, %1, %202 : vector<16x256xi32>
    %cst_64 = arith.constant 0.000000e+00 : f32
    %204 = vector.shape_cast %172 : vector<1x256xf32> to vector<1x256xf32>
    %205 = vector.broadcast %204 : vector<1x256xf32> to vector<16x256xf32>
    %206 = vector.broadcast %cst_64 : f32 to vector<16x256xf32>
    %207 = arith.select %203, %205, %206 : vector<16x256xi1>, vector<16x256xf32>
    %208 = arith.addf %199, %207 : vector<16x256xf32>
    %209 = arith.truncf %208 : vector<16x256xf32> to vector<16x256xbf16>
    %c0_65 = arith.constant 0 : index
    %c3_66 = arith.constant 3 : index
    %c0_67 = arith.constant 0 : index
    %c0_68 = arith.constant 0 : index
    %210 = vector.load %arg2[%c0_65, %c3_66, %c0_67, %c0_68] : memref<1x9x128x16xbf16, #tpu.memory_space<vmem>>, vector<1x1x128x16xbf16>
    %211 = vector.shape_cast %210 : vector<1x1x128x16xbf16> to vector<128x16xbf16>
    %cst_69 = arith.constant dense<0.000000e+00> : vector<128x256xf32>
    %212 = tpu.matmul %211, %209, %cst_69 {dimension_numbers = #tpu.dot_dimension_numbers<[1], [0], [0], [1], [0, 0, 1, 1], [], []>} : vector<128x16xbf16>, vector<16x256xbf16>, vector<128x256xf32> -> vector<128x256xf32>
    %213 = vector.shape_cast %212 : vector<128x256xf32> to vector<8x16x256xf32>
    %214 = vector.shape_cast %191 : vector<16x256xf32> to vector<1x16x256xf32>
    %215 = vector.broadcast %214 : vector<1x16x256xf32> to vector<8x16x256xf32>
    %216 = arith.mulf %213, %215 : vector<8x16x256xf32>
    %cst_70 = arith.constant dense<0.000000e+00> : vector<8x256xf32>
    %217 = vector.multi_reduction <add>, %216, %cst_70 [1] : vector<8x16x256xf32> to vector<8x256xf32>
    %218 = arith.addf %164, %217 : vector<8x256xf32>
    %c0_71 = arith.constant 0 : index
    %c8 = arith.constant 8 : index
    %c0_72 = arith.constant 0 : index
    %219 = vector.load %arg3[%c0_71, %c8, %c0_72] : memref<1x18x256xf32, #tpu.memory_space<vmem>>, vector<1x1x256xf32>
    %220 = vector.shape_cast %219 : vector<1x1x256xf32> to vector<1x256xf32>
    %c0_73 = arith.constant 0 : index
    %c9 = arith.constant 9 : index
    %c0_74 = arith.constant 0 : index
    %221 = vector.load %arg3[%c0_73, %c9, %c0_74] : memref<1x18x256xf32, #tpu.memory_space<vmem>>, vector<1x1x256xf32>
    %222 = vector.shape_cast %221 : vector<1x1x256xf32> to vector<1x256xf32>
    %223 = math.floor %220 : vector<1x256xf32>
    %224 = math.floor %222 : vector<1x256xf32>
    %225 = arith.subf %220, %223 : vector<1x256xf32>
    %226 = arith.subf %222, %224 : vector<1x256xf32>
    %227 = arith.fptosi %223 : vector<1x256xf32> to vector<1x256xi32>
    %228 = arith.fptosi %224 : vector<1x256xf32> to vector<1x256xi32>
    %229 = vector.broadcast %227 : vector<1x256xi32> to vector<16x256xi32>
    %230 = arith.cmpi eq, %0, %229 : vector<16x256xi32>
    %cst_75 = arith.constant 1.000000e+00 : f32
    %231 = vector.broadcast %cst_75 : f32 to vector<1x256xf32>
    %232 = arith.subf %231, %225 : vector<1x256xf32>
    %cst_76 = arith.constant 0.000000e+00 : f32
    %233 = vector.shape_cast %232 : vector<1x256xf32> to vector<1x256xf32>
    %234 = vector.broadcast %233 : vector<1x256xf32> to vector<16x256xf32>
    %235 = vector.broadcast %cst_76 : f32 to vector<16x256xf32>
    %236 = arith.select %230, %234, %235 : vector<16x256xi1>, vector<16x256xf32>
    %c1_i32_77 = arith.constant 1 : i32
    %237 = vector.broadcast %c1_i32_77 : i32 to vector<1x256xi32>
    %238 = arith.addi %227, %237 : vector<1x256xi32>
    %239 = vector.broadcast %238 : vector<1x256xi32> to vector<16x256xi32>
    %240 = arith.cmpi eq, %0, %239 : vector<16x256xi32>
    %cst_78 = arith.constant 0.000000e+00 : f32
    %241 = vector.shape_cast %225 : vector<1x256xf32> to vector<1x256xf32>
    %242 = vector.broadcast %241 : vector<1x256xf32> to vector<16x256xf32>
    %243 = vector.broadcast %cst_78 : f32 to vector<16x256xf32>
    %244 = arith.select %240, %242, %243 : vector<16x256xi1>, vector<16x256xf32>
    %245 = arith.addf %236, %244 : vector<16x256xf32>
    %246 = vector.broadcast %228 : vector<1x256xi32> to vector<16x256xi32>
    %247 = arith.cmpi eq, %1, %246 : vector<16x256xi32>
    %cst_79 = arith.constant 1.000000e+00 : f32
    %248 = vector.broadcast %cst_79 : f32 to vector<1x256xf32>
    %249 = arith.subf %248, %226 : vector<1x256xf32>
    %cst_80 = arith.constant 0.000000e+00 : f32
    %250 = vector.shape_cast %249 : vector<1x256xf32> to vector<1x256xf32>
    %251 = vector.broadcast %250 : vector<1x256xf32> to vector<16x256xf32>
    %252 = vector.broadcast %cst_80 : f32 to vector<16x256xf32>
    %253 = arith.select %247, %251, %252 : vector<16x256xi1>, vector<16x256xf32>
    %c1_i32_81 = arith.constant 1 : i32
    %254 = vector.broadcast %c1_i32_81 : i32 to vector<1x256xi32>
    %255 = arith.addi %228, %254 : vector<1x256xi32>
    %256 = vector.broadcast %255 : vector<1x256xi32> to vector<16x256xi32>
    %257 = arith.cmpi eq, %1, %256 : vector<16x256xi32>
    %cst_82 = arith.constant 0.000000e+00 : f32
    %258 = vector.shape_cast %226 : vector<1x256xf32> to vector<1x256xf32>
    %259 = vector.broadcast %258 : vector<1x256xf32> to vector<16x256xf32>
    %260 = vector.broadcast %cst_82 : f32 to vector<16x256xf32>
    %261 = arith.select %257, %259, %260 : vector<16x256xi1>, vector<16x256xf32>
    %262 = arith.addf %253, %261 : vector<16x256xf32>
    %263 = arith.truncf %262 : vector<16x256xf32> to vector<16x256xbf16>
    %c0_83 = arith.constant 0 : index
    %c4_84 = arith.constant 4 : index
    %c0_85 = arith.constant 0 : index
    %c0_86 = arith.constant 0 : index
    %264 = vector.load %arg2[%c0_83, %c4_84, %c0_85, %c0_86] : memref<1x9x128x16xbf16, #tpu.memory_space<vmem>>, vector<1x1x128x16xbf16>
    %265 = vector.shape_cast %264 : vector<1x1x128x16xbf16> to vector<128x16xbf16>
    %cst_87 = arith.constant dense<0.000000e+00> : vector<128x256xf32>
    %266 = tpu.matmul %265, %263, %cst_87 {dimension_numbers = #tpu.dot_dimension_numbers<[1], [0], [0], [1], [0, 0, 1, 1], [], []>} : vector<128x16xbf16>, vector<16x256xbf16>, vector<128x256xf32> -> vector<128x256xf32>
    %267 = vector.shape_cast %266 : vector<128x256xf32> to vector<8x16x256xf32>
    %268 = vector.shape_cast %245 : vector<16x256xf32> to vector<1x16x256xf32>
    %269 = vector.broadcast %268 : vector<1x16x256xf32> to vector<8x16x256xf32>
    %270 = arith.mulf %267, %269 : vector<8x16x256xf32>
    %cst_88 = arith.constant dense<0.000000e+00> : vector<8x256xf32>
    %271 = vector.multi_reduction <add>, %270, %cst_88 [1] : vector<8x16x256xf32> to vector<8x256xf32>
    %272 = arith.addf %218, %271 : vector<8x256xf32>
    %c0_89 = arith.constant 0 : index
    %c10 = arith.constant 10 : index
    %c0_90 = arith.constant 0 : index
    %273 = vector.load %arg3[%c0_89, %c10, %c0_90] : memref<1x18x256xf32, #tpu.memory_space<vmem>>, vector<1x1x256xf32>
    %274 = vector.shape_cast %273 : vector<1x1x256xf32> to vector<1x256xf32>
    %c0_91 = arith.constant 0 : index
    %c11 = arith.constant 11 : index
    %c0_92 = arith.constant 0 : index
    %275 = vector.load %arg3[%c0_91, %c11, %c0_92] : memref<1x18x256xf32, #tpu.memory_space<vmem>>, vector<1x1x256xf32>
    %276 = vector.shape_cast %275 : vector<1x1x256xf32> to vector<1x256xf32>
    %277 = math.floor %274 : vector<1x256xf32>
    %278 = math.floor %276 : vector<1x256xf32>
    %279 = arith.subf %274, %277 : vector<1x256xf32>
    %280 = arith.subf %276, %278 : vector<1x256xf32>
    %281 = arith.fptosi %277 : vector<1x256xf32> to vector<1x256xi32>
    %282 = arith.fptosi %278 : vector<1x256xf32> to vector<1x256xi32>
    %283 = vector.broadcast %281 : vector<1x256xi32> to vector<16x256xi32>
    %284 = arith.cmpi eq, %0, %283 : vector<16x256xi32>
    %cst_93 = arith.constant 1.000000e+00 : f32
    %285 = vector.broadcast %cst_93 : f32 to vector<1x256xf32>
    %286 = arith.subf %285, %279 : vector<1x256xf32>
    %cst_94 = arith.constant 0.000000e+00 : f32
    %287 = vector.shape_cast %286 : vector<1x256xf32> to vector<1x256xf32>
    %288 = vector.broadcast %287 : vector<1x256xf32> to vector<16x256xf32>
    %289 = vector.broadcast %cst_94 : f32 to vector<16x256xf32>
    %290 = arith.select %284, %288, %289 : vector<16x256xi1>, vector<16x256xf32>
    %c1_i32_95 = arith.constant 1 : i32
    %291 = vector.broadcast %c1_i32_95 : i32 to vector<1x256xi32>
    %292 = arith.addi %281, %291 : vector<1x256xi32>
    %293 = vector.broadcast %292 : vector<1x256xi32> to vector<16x256xi32>
    %294 = arith.cmpi eq, %0, %293 : vector<16x256xi32>
    %cst_96 = arith.constant 0.000000e+00 : f32
    %295 = vector.shape_cast %279 : vector<1x256xf32> to vector<1x256xf32>
    %296 = vector.broadcast %295 : vector<1x256xf32> to vector<16x256xf32>
    %297 = vector.broadcast %cst_96 : f32 to vector<16x256xf32>
    %298 = arith.select %294, %296, %297 : vector<16x256xi1>, vector<16x256xf32>
    %299 = arith.addf %290, %298 : vector<16x256xf32>
    %300 = vector.broadcast %282 : vector<1x256xi32> to vector<16x256xi32>
    %301 = arith.cmpi eq, %1, %300 : vector<16x256xi32>
    %cst_97 = arith.constant 1.000000e+00 : f32
    %302 = vector.broadcast %cst_97 : f32 to vector<1x256xf32>
    %303 = arith.subf %302, %280 : vector<1x256xf32>
    %cst_98 = arith.constant 0.000000e+00 : f32
    %304 = vector.shape_cast %303 : vector<1x256xf32> to vector<1x256xf32>
    %305 = vector.broadcast %304 : vector<1x256xf32> to vector<16x256xf32>
    %306 = vector.broadcast %cst_98 : f32 to vector<16x256xf32>
    %307 = arith.select %301, %305, %306 : vector<16x256xi1>, vector<16x256xf32>
    %c1_i32_99 = arith.constant 1 : i32
    %308 = vector.broadcast %c1_i32_99 : i32 to vector<1x256xi32>
    %309 = arith.addi %282, %308 : vector<1x256xi32>
    %310 = vector.broadcast %309 : vector<1x256xi32> to vector<16x256xi32>
    %311 = arith.cmpi eq, %1, %310 : vector<16x256xi32>
    %cst_100 = arith.constant 0.000000e+00 : f32
    %312 = vector.shape_cast %280 : vector<1x256xf32> to vector<1x256xf32>
    %313 = vector.broadcast %312 : vector<1x256xf32> to vector<16x256xf32>
    %314 = vector.broadcast %cst_100 : f32 to vector<16x256xf32>
    %315 = arith.select %311, %313, %314 : vector<16x256xi1>, vector<16x256xf32>
    %316 = arith.addf %307, %315 : vector<16x256xf32>
    %317 = arith.truncf %316 : vector<16x256xf32> to vector<16x256xbf16>
    %c0_101 = arith.constant 0 : index
    %c5_102 = arith.constant 5 : index
    %c0_103 = arith.constant 0 : index
    %c0_104 = arith.constant 0 : index
    %318 = vector.load %arg2[%c0_101, %c5_102, %c0_103, %c0_104] : memref<1x9x128x16xbf16, #tpu.memory_space<vmem>>, vector<1x1x128x16xbf16>
    %319 = vector.shape_cast %318 : vector<1x1x128x16xbf16> to vector<128x16xbf16>
    %cst_105 = arith.constant dense<0.000000e+00> : vector<128x256xf32>
    %320 = tpu.matmul %319, %317, %cst_105 {dimension_numbers = #tpu.dot_dimension_numbers<[1], [0], [0], [1], [0, 0, 1, 1], [], []>} : vector<128x16xbf16>, vector<16x256xbf16>, vector<128x256xf32> -> vector<128x256xf32>
    %321 = vector.shape_cast %320 : vector<128x256xf32> to vector<8x16x256xf32>
    %322 = vector.shape_cast %299 : vector<16x256xf32> to vector<1x16x256xf32>
    %323 = vector.broadcast %322 : vector<1x16x256xf32> to vector<8x16x256xf32>
    %324 = arith.mulf %321, %323 : vector<8x16x256xf32>
    %cst_106 = arith.constant dense<0.000000e+00> : vector<8x256xf32>
    %325 = vector.multi_reduction <add>, %324, %cst_106 [1] : vector<8x16x256xf32> to vector<8x256xf32>
    %326 = arith.addf %272, %325 : vector<8x256xf32>
    %c0_107 = arith.constant 0 : index
    %c12 = arith.constant 12 : index
    %c0_108 = arith.constant 0 : index
    %327 = vector.load %arg3[%c0_107, %c12, %c0_108] : memref<1x18x256xf32, #tpu.memory_space<vmem>>, vector<1x1x256xf32>
    %328 = vector.shape_cast %327 : vector<1x1x256xf32> to vector<1x256xf32>
    %c0_109 = arith.constant 0 : index
    %c13 = arith.constant 13 : index
    %c0_110 = arith.constant 0 : index
    %329 = vector.load %arg3[%c0_109, %c13, %c0_110] : memref<1x18x256xf32, #tpu.memory_space<vmem>>, vector<1x1x256xf32>
    %330 = vector.shape_cast %329 : vector<1x1x256xf32> to vector<1x256xf32>
    %331 = math.floor %328 : vector<1x256xf32>
    %332 = math.floor %330 : vector<1x256xf32>
    %333 = arith.subf %328, %331 : vector<1x256xf32>
    %334 = arith.subf %330, %332 : vector<1x256xf32>
    %335 = arith.fptosi %331 : vector<1x256xf32> to vector<1x256xi32>
    %336 = arith.fptosi %332 : vector<1x256xf32> to vector<1x256xi32>
    %337 = vector.broadcast %335 : vector<1x256xi32> to vector<16x256xi32>
    %338 = arith.cmpi eq, %0, %337 : vector<16x256xi32>
    %cst_111 = arith.constant 1.000000e+00 : f32
    %339 = vector.broadcast %cst_111 : f32 to vector<1x256xf32>
    %340 = arith.subf %339, %333 : vector<1x256xf32>
    %cst_112 = arith.constant 0.000000e+00 : f32
    %341 = vector.shape_cast %340 : vector<1x256xf32> to vector<1x256xf32>
    %342 = vector.broadcast %341 : vector<1x256xf32> to vector<16x256xf32>
    %343 = vector.broadcast %cst_112 : f32 to vector<16x256xf32>
    %344 = arith.select %338, %342, %343 : vector<16x256xi1>, vector<16x256xf32>
    %c1_i32_113 = arith.constant 1 : i32
    %345 = vector.broadcast %c1_i32_113 : i32 to vector<1x256xi32>
    %346 = arith.addi %335, %345 : vector<1x256xi32>
    %347 = vector.broadcast %346 : vector<1x256xi32> to vector<16x256xi32>
    %348 = arith.cmpi eq, %0, %347 : vector<16x256xi32>
    %cst_114 = arith.constant 0.000000e+00 : f32
    %349 = vector.shape_cast %333 : vector<1x256xf32> to vector<1x256xf32>
    %350 = vector.broadcast %349 : vector<1x256xf32> to vector<16x256xf32>
    %351 = vector.broadcast %cst_114 : f32 to vector<16x256xf32>
    %352 = arith.select %348, %350, %351 : vector<16x256xi1>, vector<16x256xf32>
    %353 = arith.addf %344, %352 : vector<16x256xf32>
    %354 = vector.broadcast %336 : vector<1x256xi32> to vector<16x256xi32>
    %355 = arith.cmpi eq, %1, %354 : vector<16x256xi32>
    %cst_115 = arith.constant 1.000000e+00 : f32
    %356 = vector.broadcast %cst_115 : f32 to vector<1x256xf32>
    %357 = arith.subf %356, %334 : vector<1x256xf32>
    %cst_116 = arith.constant 0.000000e+00 : f32
    %358 = vector.shape_cast %357 : vector<1x256xf32> to vector<1x256xf32>
    %359 = vector.broadcast %358 : vector<1x256xf32> to vector<16x256xf32>
    %360 = vector.broadcast %cst_116 : f32 to vector<16x256xf32>
    %361 = arith.select %355, %359, %360 : vector<16x256xi1>, vector<16x256xf32>
    %c1_i32_117 = arith.constant 1 : i32
    %362 = vector.broadcast %c1_i32_117 : i32 to vector<1x256xi32>
    %363 = arith.addi %336, %362 : vector<1x256xi32>
    %364 = vector.broadcast %363 : vector<1x256xi32> to vector<16x256xi32>
    %365 = arith.cmpi eq, %1, %364 : vector<16x256xi32>
    %cst_118 = arith.constant 0.000000e+00 : f32
    %366 = vector.shape_cast %334 : vector<1x256xf32> to vector<1x256xf32>
    %367 = vector.broadcast %366 : vector<1x256xf32> to vector<16x256xf32>
    %368 = vector.broadcast %cst_118 : f32 to vector<16x256xf32>
    %369 = arith.select %365, %367, %368 : vector<16x256xi1>, vector<16x256xf32>
    %370 = arith.addf %361, %369 : vector<16x256xf32>
    %371 = arith.truncf %370 : vector<16x256xf32> to vector<16x256xbf16>
    %c0_119 = arith.constant 0 : index
    %c6_120 = arith.constant 6 : index
    %c0_121 = arith.constant 0 : index
    %c0_122 = arith.constant 0 : index
    %372 = vector.load %arg2[%c0_119, %c6_120, %c0_121, %c0_122] : memref<1x9x128x16xbf16, #tpu.memory_space<vmem>>, vector<1x1x128x16xbf16>
    %373 = vector.shape_cast %372 : vector<1x1x128x16xbf16> to vector<128x16xbf16>
    %cst_123 = arith.constant dense<0.000000e+00> : vector<128x256xf32>
    %374 = tpu.matmul %373, %371, %cst_123 {dimension_numbers = #tpu.dot_dimension_numbers<[1], [0], [0], [1], [0, 0, 1, 1], [], []>} : vector<128x16xbf16>, vector<16x256xbf16>, vector<128x256xf32> -> vector<128x256xf32>
    %375 = vector.shape_cast %374 : vector<128x256xf32> to vector<8x16x256xf32>
    %376 = vector.shape_cast %353 : vector<16x256xf32> to vector<1x16x256xf32>
    %377 = vector.broadcast %376 : vector<1x16x256xf32> to vector<8x16x256xf32>
    %378 = arith.mulf %375, %377 : vector<8x16x256xf32>
    %cst_124 = arith.constant dense<0.000000e+00> : vector<8x256xf32>
    %379 = vector.multi_reduction <add>, %378, %cst_124 [1] : vector<8x16x256xf32> to vector<8x256xf32>
    %380 = arith.addf %326, %379 : vector<8x256xf32>
    %c0_125 = arith.constant 0 : index
    %c14 = arith.constant 14 : index
    %c0_126 = arith.constant 0 : index
    %381 = vector.load %arg3[%c0_125, %c14, %c0_126] : memref<1x18x256xf32, #tpu.memory_space<vmem>>, vector<1x1x256xf32>
    %382 = vector.shape_cast %381 : vector<1x1x256xf32> to vector<1x256xf32>
    %c0_127 = arith.constant 0 : index
    %c15 = arith.constant 15 : index
    %c0_128 = arith.constant 0 : index
    %383 = vector.load %arg3[%c0_127, %c15, %c0_128] : memref<1x18x256xf32, #tpu.memory_space<vmem>>, vector<1x1x256xf32>
    %384 = vector.shape_cast %383 : vector<1x1x256xf32> to vector<1x256xf32>
    %385 = math.floor %382 : vector<1x256xf32>
    %386 = math.floor %384 : vector<1x256xf32>
    %387 = arith.subf %382, %385 : vector<1x256xf32>
    %388 = arith.subf %384, %386 : vector<1x256xf32>
    %389 = arith.fptosi %385 : vector<1x256xf32> to vector<1x256xi32>
    %390 = arith.fptosi %386 : vector<1x256xf32> to vector<1x256xi32>
    %391 = vector.broadcast %389 : vector<1x256xi32> to vector<16x256xi32>
    %392 = arith.cmpi eq, %0, %391 : vector<16x256xi32>
    %cst_129 = arith.constant 1.000000e+00 : f32
    %393 = vector.broadcast %cst_129 : f32 to vector<1x256xf32>
    %394 = arith.subf %393, %387 : vector<1x256xf32>
    %cst_130 = arith.constant 0.000000e+00 : f32
    %395 = vector.shape_cast %394 : vector<1x256xf32> to vector<1x256xf32>
    %396 = vector.broadcast %395 : vector<1x256xf32> to vector<16x256xf32>
    %397 = vector.broadcast %cst_130 : f32 to vector<16x256xf32>
    %398 = arith.select %392, %396, %397 : vector<16x256xi1>, vector<16x256xf32>
    %c1_i32_131 = arith.constant 1 : i32
    %399 = vector.broadcast %c1_i32_131 : i32 to vector<1x256xi32>
    %400 = arith.addi %389, %399 : vector<1x256xi32>
    %401 = vector.broadcast %400 : vector<1x256xi32> to vector<16x256xi32>
    %402 = arith.cmpi eq, %0, %401 : vector<16x256xi32>
    %cst_132 = arith.constant 0.000000e+00 : f32
    %403 = vector.shape_cast %387 : vector<1x256xf32> to vector<1x256xf32>
    %404 = vector.broadcast %403 : vector<1x256xf32> to vector<16x256xf32>
    %405 = vector.broadcast %cst_132 : f32 to vector<16x256xf32>
    %406 = arith.select %402, %404, %405 : vector<16x256xi1>, vector<16x256xf32>
    %407 = arith.addf %398, %406 : vector<16x256xf32>
    %408 = vector.broadcast %390 : vector<1x256xi32> to vector<16x256xi32>
    %409 = arith.cmpi eq, %1, %408 : vector<16x256xi32>
    %cst_133 = arith.constant 1.000000e+00 : f32
    %410 = vector.broadcast %cst_133 : f32 to vector<1x256xf32>
    %411 = arith.subf %410, %388 : vector<1x256xf32>
    %cst_134 = arith.constant 0.000000e+00 : f32
    %412 = vector.shape_cast %411 : vector<1x256xf32> to vector<1x256xf32>
    %413 = vector.broadcast %412 : vector<1x256xf32> to vector<16x256xf32>
    %414 = vector.broadcast %cst_134 : f32 to vector<16x256xf32>
    %415 = arith.select %409, %413, %414 : vector<16x256xi1>, vector<16x256xf32>
    %c1_i32_135 = arith.constant 1 : i32
    %416 = vector.broadcast %c1_i32_135 : i32 to vector<1x256xi32>
    %417 = arith.addi %390, %416 : vector<1x256xi32>
    %418 = vector.broadcast %417 : vector<1x256xi32> to vector<16x256xi32>
    %419 = arith.cmpi eq, %1, %418 : vector<16x256xi32>
    %cst_136 = arith.constant 0.000000e+00 : f32
    %420 = vector.shape_cast %388 : vector<1x256xf32> to vector<1x256xf32>
    %421 = vector.broadcast %420 : vector<1x256xf32> to vector<16x256xf32>
    %422 = vector.broadcast %cst_136 : f32 to vector<16x256xf32>
    %423 = arith.select %419, %421, %422 : vector<16x256xi1>, vector<16x256xf32>
    %424 = arith.addf %415, %423 : vector<16x256xf32>
    %425 = arith.truncf %424 : vector<16x256xf32> to vector<16x256xbf16>
    %c0_137 = arith.constant 0 : index
    %c7_138 = arith.constant 7 : index
    %c0_139 = arith.constant 0 : index
    %c0_140 = arith.constant 0 : index
    %426 = vector.load %arg2[%c0_137, %c7_138, %c0_139, %c0_140] : memref<1x9x128x16xbf16, #tpu.memory_space<vmem>>, vector<1x1x128x16xbf16>
    %427 = vector.shape_cast %426 : vector<1x1x128x16xbf16> to vector<128x16xbf16>
    %cst_141 = arith.constant dense<0.000000e+00> : vector<128x256xf32>
    %428 = tpu.matmul %427, %425, %cst_141 {dimension_numbers = #tpu.dot_dimension_numbers<[1], [0], [0], [1], [0, 0, 1, 1], [], []>} : vector<128x16xbf16>, vector<16x256xbf16>, vector<128x256xf32> -> vector<128x256xf32>
    %429 = vector.shape_cast %428 : vector<128x256xf32> to vector<8x16x256xf32>
    %430 = vector.shape_cast %407 : vector<16x256xf32> to vector<1x16x256xf32>
    %431 = vector.broadcast %430 : vector<1x16x256xf32> to vector<8x16x256xf32>
    %432 = arith.mulf %429, %431 : vector<8x16x256xf32>
    %cst_142 = arith.constant dense<0.000000e+00> : vector<8x256xf32>
    %433 = vector.multi_reduction <add>, %432, %cst_142 [1] : vector<8x16x256xf32> to vector<8x256xf32>
    %434 = arith.addf %380, %433 : vector<8x256xf32>
    %c0_143 = arith.constant 0 : index
    %c16 = arith.constant 16 : index
    %c0_144 = arith.constant 0 : index
    %435 = vector.load %arg3[%c0_143, %c16, %c0_144] : memref<1x18x256xf32, #tpu.memory_space<vmem>>, vector<1x1x256xf32>
    %436 = vector.shape_cast %435 : vector<1x1x256xf32> to vector<1x256xf32>
    %c0_145 = arith.constant 0 : index
    %c17 = arith.constant 17 : index
    %c0_146 = arith.constant 0 : index
    %437 = vector.load %arg3[%c0_145, %c17, %c0_146] : memref<1x18x256xf32, #tpu.memory_space<vmem>>, vector<1x1x256xf32>
    %438 = vector.shape_cast %437 : vector<1x1x256xf32> to vector<1x256xf32>
    %439 = math.floor %436 : vector<1x256xf32>
    %440 = math.floor %438 : vector<1x256xf32>
    %441 = arith.subf %436, %439 : vector<1x256xf32>
    %442 = arith.subf %438, %440 : vector<1x256xf32>
    %443 = arith.fptosi %439 : vector<1x256xf32> to vector<1x256xi32>
    %444 = arith.fptosi %440 : vector<1x256xf32> to vector<1x256xi32>
    %445 = vector.broadcast %443 : vector<1x256xi32> to vector<16x256xi32>
    %446 = arith.cmpi eq, %0, %445 : vector<16x256xi32>
    %cst_147 = arith.constant 1.000000e+00 : f32
    %447 = vector.broadcast %cst_147 : f32 to vector<1x256xf32>
    %448 = arith.subf %447, %441 : vector<1x256xf32>
    %cst_148 = arith.constant 0.000000e+00 : f32
    %449 = vector.shape_cast %448 : vector<1x256xf32> to vector<1x256xf32>
    %450 = vector.broadcast %449 : vector<1x256xf32> to vector<16x256xf32>
    %451 = vector.broadcast %cst_148 : f32 to vector<16x256xf32>
    %452 = arith.select %446, %450, %451 : vector<16x256xi1>, vector<16x256xf32>
    %c1_i32_149 = arith.constant 1 : i32
    %453 = vector.broadcast %c1_i32_149 : i32 to vector<1x256xi32>
    %454 = arith.addi %443, %453 : vector<1x256xi32>
    %455 = vector.broadcast %454 : vector<1x256xi32> to vector<16x256xi32>
    %456 = arith.cmpi eq, %0, %455 : vector<16x256xi32>
    %cst_150 = arith.constant 0.000000e+00 : f32
    %457 = vector.shape_cast %441 : vector<1x256xf32> to vector<1x256xf32>
    %458 = vector.broadcast %457 : vector<1x256xf32> to vector<16x256xf32>
    %459 = vector.broadcast %cst_150 : f32 to vector<16x256xf32>
    %460 = arith.select %456, %458, %459 : vector<16x256xi1>, vector<16x256xf32>
    %461 = arith.addf %452, %460 : vector<16x256xf32>
    %462 = vector.broadcast %444 : vector<1x256xi32> to vector<16x256xi32>
    %463 = arith.cmpi eq, %1, %462 : vector<16x256xi32>
    %cst_151 = arith.constant 1.000000e+00 : f32
    %464 = vector.broadcast %cst_151 : f32 to vector<1x256xf32>
    %465 = arith.subf %464, %442 : vector<1x256xf32>
    %cst_152 = arith.constant 0.000000e+00 : f32
    %466 = vector.shape_cast %465 : vector<1x256xf32> to vector<1x256xf32>
    %467 = vector.broadcast %466 : vector<1x256xf32> to vector<16x256xf32>
    %468 = vector.broadcast %cst_152 : f32 to vector<16x256xf32>
    %469 = arith.select %463, %467, %468 : vector<16x256xi1>, vector<16x256xf32>
    %c1_i32_153 = arith.constant 1 : i32
    %470 = vector.broadcast %c1_i32_153 : i32 to vector<1x256xi32>
    %471 = arith.addi %444, %470 : vector<1x256xi32>
    %472 = vector.broadcast %471 : vector<1x256xi32> to vector<16x256xi32>
    %473 = arith.cmpi eq, %1, %472 : vector<16x256xi32>
    %cst_154 = arith.constant 0.000000e+00 : f32
    %474 = vector.shape_cast %442 : vector<1x256xf32> to vector<1x256xf32>
    %475 = vector.broadcast %474 : vector<1x256xf32> to vector<16x256xf32>
    %476 = vector.broadcast %cst_154 : f32 to vector<16x256xf32>
    %477 = arith.select %473, %475, %476 : vector<16x256xi1>, vector<16x256xf32>
    %478 = arith.addf %469, %477 : vector<16x256xf32>
    %479 = arith.truncf %478 : vector<16x256xf32> to vector<16x256xbf16>
    %c0_155 = arith.constant 0 : index
    %c8_156 = arith.constant 8 : index
    %c0_157 = arith.constant 0 : index
    %c0_158 = arith.constant 0 : index
    %480 = vector.load %arg2[%c0_155, %c8_156, %c0_157, %c0_158] : memref<1x9x128x16xbf16, #tpu.memory_space<vmem>>, vector<1x1x128x16xbf16>
    %481 = vector.shape_cast %480 : vector<1x1x128x16xbf16> to vector<128x16xbf16>
    %cst_159 = arith.constant dense<0.000000e+00> : vector<128x256xf32>
    %482 = tpu.matmul %481, %479, %cst_159 {dimension_numbers = #tpu.dot_dimension_numbers<[1], [0], [0], [1], [0, 0, 1, 1], [], []>} : vector<128x16xbf16>, vector<16x256xbf16>, vector<128x256xf32> -> vector<128x256xf32>
    %483 = vector.shape_cast %482 : vector<128x256xf32> to vector<8x16x256xf32>
    %484 = vector.shape_cast %461 : vector<16x256xf32> to vector<1x16x256xf32>
    %485 = vector.broadcast %484 : vector<1x16x256xf32> to vector<8x16x256xf32>
    %486 = arith.mulf %483, %485 : vector<8x16x256xf32>
    %cst_160 = arith.constant dense<0.000000e+00> : vector<8x256xf32>
    %487 = vector.multi_reduction <add>, %486, %cst_160 [1] : vector<8x16x256xf32> to vector<8x256xf32>
    %488 = arith.addf %434, %487 : vector<8x256xf32>
    %c0_161 = arith.constant 0 : index
    %c0_162 = arith.constant 0 : index
    %c0_163 = arith.constant 0 : index
    %489 = vector.load %arg4[%c0_161, %c0_162, %c0_163] : memref<1x8x256xf32, #tpu.memory_space<vmem>>, vector<1x8x256xf32>
    %490 = vector.shape_cast %489 : vector<1x8x256xf32> to vector<8x256xf32>
    %491 = vector.shape_cast %488 : vector<8x256xf32> to vector<1x8x256xf32>
    tpu.vector_store %arg4[%c0_161, %c0_162, %c0_163], %491 {strides = array<i32>} : memref<1x8x256xf32, #tpu.memory_space<vmem>>, vector<1x8x256xf32>,
    return
  }
  func.func @transform_0(%arg0: i32, %arg1: i32) -> (i32, i32, i32, i32) {
    %c0_i32 = arith.constant 0 : i32
    %c0_i32_0 = arith.constant 0 : i32
    %c0_i32_1 = arith.constant 0 : i32
    %c0_i32_2 = arith.constant 0 : i32
    return %arg0, %c0_i32, %c0_i32_0, %c0_i32_1 : i32, i32, i32, i32
  }
  func.func @transform_1(%arg0: i32, %arg1: i32) -> (i32, i32, i32) {
    %c0_i32 = arith.constant 0 : i32
    %c0_i32_0 = arith.constant 0 : i32
    return %arg0, %c0_i32, %arg1 : i32, i32, i32
  }
  func.func @transform_2(%arg0: i32, %arg1: i32) -> (i32, i32, i32) {
    %c0_i32 = arith.constant 0 : i32
    %c0_i32_0 = arith.constant 0 : i32
    return %arg0, %c0_i32, %arg1 : i32, i32, i32
  }
}

</mosaic_0001>

<llo_original>
// kernel: tpu_custom_call.1
$region0: #{tpu_custom_call.1}
  #allocation0 [shape = 'u32[]', space=smem, size = 0x4, offset = 0x4, fixed_abs, tag = 'smem constant byte address 0x4 - core index']
  #allocation1 [shape = 'u32[144,128]{1,0:T(1,128)}', space=vmem, size = 0x12000, scoped, tag = 'internal scratch']
  %s0 = inlined_call_operand.vmem [shape: bf16[2,9,128,16], index: 0, kind: input, shape index: {}]
  %s1 = inlined_call_operand.vmem [shape: f32[2,18,256], index: 1, kind: input, shape index: {}]
  %s2 = inlined_call_operand.hbm [shape: f32[2,8,256], index: 2, kind: output, shape index: {}]
  %s3 = sld [smem:[#allocation0]]
  $region41: #{tpu_custom_call.1} parent=0
    _
  %s5 = ssub.s32 1, %s3
  %s6 = scalar_select 0, %s5, %s3
  $region1: #{tpu_custom_call.1} parent=0
    #allocation2 [shape = 'u8[16384]{0}', space=vmem, size = 0x4000, scoped, tag = 'output window, operand 0']
    #allocation3 [shape = 's32[2]{0}', space=sflag, size = 0x8, scoped, tag = 'scoped memory for tpu_custom_call.1']
    %7 = vsyncpa [#allocation3], 0
    %s8 = scalar_lea.sflag [#allocation3], 1
    %9 = vsyncpa %s8, 0
    loop: start=0, step=1, limit=4
    $region2: #{tpu_custom_call.1} parent=1 // loop_pre_header
      _
    $region3: #{tpu_custom_call.1} parent=1 // loop_header
      %s11 = sphi 0, %s15
      %p12 = scmp.ge.s32.totalorder %s11, 4
      %s18 = sphi 0, %s30
      %s19 = sphi 0, %s26
      %s20 = sphi 0, %s18
      %s21 = sphi 0, %s19
      %s22 = sphi 0, %s20
      %s23 = sphi 0, %s21
      %s33 = sphi 0, %s35
      %s36 = sphi 0, %s33
      %s37 = sphi 0, %s36
      %s53 = sphi 0, %s37
      %s61 = sphi 0, %s63
      %s64 = sphi 0, %s61
      %s65 = sphi 0, %s64
      %s81 = sphi 0, %s65
      %s89 = sphi 0, %s91
      %s92 = sphi 0, %s89
      %s93 = sphi 0, %s92
      %s109 = sphi 0, %s93
    $region4: #{tpu_custom_call.1} parent=1 // loop_header_branch
      %14 = sbr.rel (%p12) target = $region8
    $region5: #{tpu_custom_call.1} parent=1 // loop_body
      %s16 = ssub.s32 %s11, 1
      %s17 = ssub.s32 %s11, 2
      %s24 = sadd.s32 1, %s19
      %p25 = scmp.ge.s32.totalorder %s24, 1
      %s26 = scalar_select %p25, 0, %s24
      %s27 = sadd.s32 1, %s18
      %s28 = scalar_select %p25, %s27, %s18
      %p29 = scmp.ge.s32.totalorder %s28, 2
      %s30 = scalar_select %p29, 0, %s28
      %s31 = ssub.s32 %s18, %s30
      %p32 = scmp.eq.s32.totalorder %s31, 0
      %s34 = sadd.s32 %s33, 1
      %s35 = scalar_select %p32, %s33, %s34
      %p38 = pneg %p32
      %p39 = scmp.eq.s32.totalorder %s11, 1
      %p40 = por %p38, %p39
      %p41 = scmp.ne.s32.totalorder %s33, %s36
      %p42 = scmp.eq.s32.totalorder %s11, 0
      %p43 = por %p41, %p42
      %p44 = scmp.ne.s32.totalorder %s33, %s36
      %p45 = scmp.eq.s32.totalorder %s16, 1
      %p46 = por %p44, %p45
      %p47 = scmp.ne.s32.totalorder %s36, %s37
      %p48 = scmp.eq.s32.totalorder %s16, 0
      %p49 = por %p47, %p48
      %p50 = scmp.ne.s32.totalorder %s36, %s37
      %p51 = scmp.eq.s32.totalorder %s17, 1
      %p52 = por %p50, %p51
      %p54 = scmp.ne.s32.totalorder %s37, %s53
      %p55 = scmp.eq.s32.totalorder %s17, 0
      %p56 = por %p54, %p55
      %s57 = ssub.s32 %s18, %s30
      %s58 = ssub.s32 %s19, %s26
      %s59 = sor.u32 %s57, %s58
      %p60 = scmp.eq.s32.totalorder %s59, 0
      %s62 = sadd.s32 %s61, 1
      %s63 = scalar_select %p60, %s61, %s62
      %p66 = pneg %p60
      %p67 = scmp.eq.s32.totalorder %s11, 1
      %p68 = por %p66, %p67
      %p69 = scmp.ne.s32.totalorder %s61, %s64
      %p70 = scmp.eq.s32.totalorder %s11, 0
      %p71 = por %p69, %p70
      %p72 = scmp.ne.s32.totalorder %s61, %s64
      %p73 = scmp.eq.s32.totalorder %s16, 1
      %p74 = por %p72, %p73
      %p75 = scmp.ne.s32.totalorder %s64, %s65
      %p76 = scmp.eq.s32.totalorder %s16, 0
      %p77 = por %p75, %p76
      %p78 = scmp.ne.s32.totalorder %s64, %s65
      %p79 = scmp.eq.s32.totalorder %s17, 1
      %p80 = por %p78, %p79
      %p82 = scmp.ne.s32.totalorder %s65, %s81
      %p83 = scmp.eq.s32.totalorder %s17, 0
      %p84 = por %p82, %p83
      %s85 = ssub.s32 %s18, %s30
      %s86 = ssub.s32 %s19, %s26
      %s87 = sor.u32 %s85, %s86
      %p88 = scmp.eq.s32.totalorder %s87, 0
      %s90 = sadd.s32 %s89, 1
      %s91 = scalar_select %p88, %s89, %s90
      %p94 = pneg %p88
      %p95 = scmp.eq.s32.totalorder %s11, 1
      %p96 = por %p94, %p95
      %p97 = scmp.ne.s32.totalorder %s89, %s92
      %p98 = scmp.eq.s32.totalorder %s11, 0
      %p99 = por %p97, %p98
      %p100 = scmp.ne.s32.totalorder %s89, %s92
      %p101 = scmp.eq.s32.totalorder %s16, 1
      %p102 = por %p100, %p101
      %p103 = scmp.ne.s32.totalorder %s92, %s93
      %p104 = scmp.eq.s32.totalorder %s16, 0
      %p105 = por %p103, %p104
      %p106 = scmp.ne.s32.totalorder %s92, %s93
      %p107 = scmp.eq.s32.totalorder %s17, 1
      %p108 = por %p106, %p107
      %p110 = scmp.ne.s32.totalorder %s93, %s109
      %p111 = scmp.eq.s32.totalorder %s17, 0
      %p112 = por %p110, %p111
      %p113 = scmp.le.s32.totalorder 1, %s11
      %p114 = scmp.lt.s32.totalorder %s11, 3
      %p115 = pnand %p113, %p114
      %p116 = pneg %p115
      // Predicated region
      $region9: #{tpu_custom_call.1} parent=5 // pred_check
        _
      $region10: #{tpu_custom_call.1} parent=5 // pred_check_branch
        %118 = sbr.rel (%p115) target = $region12
      $region11: #{tpu_custom_call.1} parent=5 // pred_region
        %s119 = ssub.s32 %s11, 1
      $region12: #{tpu_custom_call.1} parent=5 // pred_fallthru
        _
      %p120 = scmp.lt.s32.totalorder %s11, 2
      // Predicated region
      $region13: #{tpu_custom_call.1} parent=5 // pred_check
        %p121 = pneg %p120
      $region14: #{tpu_custom_call.1} parent=5 // pred_check_branch
        %123 = sbr.rel (%p121) target = $region16
      $region15: #{tpu_custom_call.1} parent=5 // pred_region
        // Predicated region
        $region17: #{tpu_custom_call.1} parent=15 // pred_check
          %p124 = pneg %p43
        $region18: #{tpu_custom_call.1} parent=15 // pred_check_branch
          %126 = sbr.rel (%p124) target = $region20
        $region19: #{tpu_custom_call.1} parent=15 // pred_region
          %p127 = scmp.lt.s32.totalorder %s18, 1
          %s128 = scalar_select %p127, %s18, 1
          %s129 = smul.addr %s128, 144
          %s130 = smul.addr %s129, 4
          %s131 = scalar_lea.vmem %s0, %s130
        $region20: #{tpu_custom_call.1} parent=15 // pred_fallthru
          _
        // Predicated region
        $region21: #{tpu_custom_call.1} parent=15 // pred_check
          %p132 = pneg %p71
        $region22: #{tpu_custom_call.1} parent=15 // pred_check_branch
          %134 = sbr.rel (%p132) target = $region24
        $region23: #{tpu_custom_call.1} parent=15 // pred_region
          %s135 = smul.u32 2, %s19
          %p136 = scmp.lt.s32.totalorder %s18, 1
          %s137 = scalar_select %p136, %s18, 1
          %p138 = scmp.lt.s32.totalorder %s135, 1
          %s139 = scalar_select %p138, %s135, 1
          %s140 = smul.addr %s137, 6
          %s141 = sadd.s32 %s139, %s140
          %s142 = smul.addr %s141, 8
          %s143 = scalar_lea.vmem %s1, %s142
          %s144 = smul.u32 2, %s19
        $region24: #{tpu_custom_call.1} parent=15 // pred_fallthru
          _
      $region16: #{tpu_custom_call.1} parent=5 // pred_fallthru
        _
      %p145 = scmp.le.s32.totalorder 1, %s11
      %p146 = scmp.lt.s32.totalorder %s11, 3
      %p147 = pnand %p145, %p146
      %p148 = pneg %p147
      // Predicated region
      $region25: #{tpu_custom_call.1} parent=5 // pred_check
        _
      $region26: #{tpu_custom_call.1} parent=5 // pred_check_branch
        %150 = sbr.rel (%p147) target = $region28
      $region27: #{tpu_custom_call.1} parent=5 // pred_region
        %s151 = ssub.s32 %s11, 1
        %p152 = scmp.lt.s32.totalorder %s20, 1
        %s153 = scalar_select %p152, %s20, 1
        %s154 = smul.addr %s153, 144
        %s155 = smul.addr %s154, 4
        %s156 = scalar_lea.vmem %s0, %s155
        %p157 = pneg %p49
        %p158 = pneg %p46
        %s159 = smul.u32 2, %s21
        %p160 = scmp.lt.s32.totalorder %s20, 1
        %s161 = scalar_select %p160, %s20, 1
        %p162 = scmp.lt.s32.totalorder %s159, 1
        %s163 = scalar_select %p162, %s159, 1
        %s164 = smul.addr %s161, 6
        %s165 = sadd.s32 %s163, %s164
        %s166 = smul.addr %s165, 8
        %s167 = scalar_lea.vmem %s1, %s166
        %p168 = pneg %p77
        %p169 = pneg %p74
        %p170 = pneg %p105
        %p171 = pneg %p102
        %s172 = sand.u32 %s92, 1
        %s173 = scalar_lea.sflag [#allocation3], %s172
        %s174 = sand.u32 %s92, 1
        %s175 = smul.addr %s174, 16
        %s176 = scalar_lea.vmem [#allocation2], %s175
        %p177 = scmp.lt.s32.totalorder %s20, 1
        %s178 = scalar_select %p177, %s20, 1
        %s179 = smul.addr %s178, 144
        %s180 = smul.addr %s179, 4
        %s181 = scalar_lea.vmem %s0, %s180
        %s182 = smul.u32 2, %s21
        %p183 = scmp.lt.s32.totalorder %s20, 1
        %s184 = scalar_select %p183, %s20, 1
        %p185 = scmp.lt.s32.totalorder %s182, 1
        %s186 = scalar_select %p185, %s182, 1
        %s187 = smul.addr %s184, 6
        %s188 = sadd.s32 %s186, %s187
        %s189 = smul.addr %s188, 8
        %s190 = scalar_lea.vmem %s1, %s189
        %s191 = smul.u32 2, %s21
        %s192 = smul.u32 2, %s21
        %v194 = vlaneseq
        %v195 = vshrl.u32 %v194, 7
        %v196 = vadd.s32 %v195, 8
        %v197 = vld [vmem:[%s190] ss:$8 sm:$0x3]
        %s198 = scalar_lea.vmem %s190, 1
        %v199 = vld [vmem:[%s198] ss:$8 sm:$0x3]
        %v200 = vfloor.f32 %v197
        %v201 = vfloor.f32 %v199
        %v202 = vsub.f32 %v197, %v200
        %v203 = vsub.f32 %v199, %v201
        %v204 = vcvt.f32.s32.to.zero.pseudo %v200
        %v205 = vcvt.f32.s32.to.zero.pseudo %v201
        %v206 = vlaneseq
        %v207 = vshrl.u32 %v206, 7
        %v208 = vsub.s32 0, %v207
        %v209 = vrot.slane %v204, %v208
        %v210 = vlaneseq
        %v211 = vshrl.u32 %v210, 7
        %v212 = vsub.s32 1, %v211
        %v213 = vrot.slane %v204, %v212
        %vm214 = vcmp.eq.s32.totalorder %v195, %v209
        %vm215 = vcmp.eq.s32.totalorder %v195, %v213
        %vm216 = vcmp.eq.s32.totalorder %v196, %v209
        %vm217 = vcmp.eq.s32.totalorder %v196, %v213
        %v218 = vsub.f32 1.0, %v202
        %v220 = vlaneseq
        %v221 = vshrl.u32 %v220, 7
        %v222 = vsub.s32 0, %v221
        %v223 = vrot.slane %v218, %v222
        %v224 = vlaneseq
        %v225 = vshrl.u32 %v224, 7
        %v226 = vsub.s32 1, %v225
        %v227 = vrot.slane %v218, %v226
        %v230 = vsel %vm214, %v223, 0.0
        %v231 = vsel %vm215, %v227, 0.0
        %v232 = vsel %vm216, %v223, 0.0
        %v233 = vsel %vm217, %v227, 0.0
        %v234 = vadd.s32 %v204, 1
        %v235 = vlaneseq
        %v236 = vshrl.u32 %v235, 7
        %v237 = vsub.s32 0, %v236
        %v238 = vrot.slane %v234, %v237
        %v239 = vlaneseq
        %v240 = vshrl.u32 %v239, 7
        %v241 = vsub.s32 1, %v240
        %v242 = vrot.slane %v234, %v241
        %vm243 = vcmp.eq.s32.totalorder %v195, %v238
        %vm244 = vcmp.eq.s32.totalorder %v195, %v242
        %vm245 = vcmp.eq.s32.totalorder %v196, %v238
        %vm246 = vcmp.eq.s32.totalorder %v196, %v242
        %v248 = vlaneseq
        %v249 = vshrl.u32 %v248, 7
        %v250 = vsub.s32 0, %v249
        %v251 = vrot.slane %v202, %v250
        %v252 = vlaneseq
        %v253 = vshrl.u32 %v252, 7
        %v254 = vsub.s32 1, %v253
        %v255 = vrot.slane %v202, %v254
        %v258 = vsel %vm243, %v251, 0.0
        %v259 = vsel %vm244, %v255, 0.0
        %v260 = vsel %vm245, %v251, 0.0
        %v261 = vsel %vm246, %v255, 0.0
        %v262 = vadd.f32 %v230, %v258
        %v263 = vadd.f32 %v231, %v259
        %v264 = vadd.f32 %v232, %v260
        %v265 = vadd.f32 %v233, %v261
        %v266 = vlaneseq
        %v267 = vshrl.u32 %v266, 7
        %v268 = vsub.s32 0, %v267
        %v269 = vrot.slane %v205, %v268
        %v270 = vlaneseq
        %v271 = vshrl.u32 %v270, 7
        %v272 = vsub.s32 1, %v271
        %v273 = vrot.slane %v205, %v272
        %vm274 = vcmp.eq.s32.totalorder %v195, %v269
        %vm275 = vcmp.eq.s32.totalorder %v195, %v273
        %vm276 = vcmp.eq.s32.totalorder %v196, %v269
        %vm277 = vcmp.eq.s32.totalorder %v196, %v273
        %v278 = vsub.f32 1.0, %v203
        %v280 = vlaneseq
        %v281 = vshrl.u32 %v280, 7
        %v282 = vsub.s32 0, %v281
        %v283 = vrot.slane %v278, %v282
        %v284 = vlaneseq
        %v285 = vshrl.u32 %v284, 7
        %v286 = vsub.s32 1, %v285
        %v287 = vrot.slane %v278, %v286
        %v290 = vsel %vm274, %v283, 0.0
        %v291 = vsel %vm275, %v287, 0.0
        %v292 = vsel %vm276, %v283, 0.0
        %v293 = vsel %vm277, %v287, 0.0
        %v294 = vadd.s32 %v205, 1
        %v295 = vlaneseq
        %v296 = vshrl.u32 %v295, 7
        %v297 = vsub.s32 0, %v296
        %v298 = vrot.slane %v294, %v297
        %v299 = vlaneseq
        %v300 = vshrl.u32 %v299, 7
        %v301 = vsub.s32 1, %v300
        %v302 = vrot.slane %v294, %v301
        %vm303 = vcmp.eq.s32.totalorder %v195, %v298
        %vm304 = vcmp.eq.s32.totalorder %v195, %v302
        %vm305 = vcmp.eq.s32.totalorder %v196, %v298
        %vm306 = vcmp.eq.s32.totalorder %v196, %v302
        %v308 = vlaneseq
        %v309 = vshrl.u32 %v308, 7
        %v310 = vsub.s32 0, %v309
        %v311 = vrot.slane %v203, %v310
        %v312 = vlaneseq
        %v313 = vshrl.u32 %v312, 7
        %v314 = vsub.s32 1, %v313
        %v315 = vrot.slane %v203, %v314
        %v318 = vsel %vm303, %v311, 0.0
        %v319 = vsel %vm304, %v315, 0.0
        %v320 = vsel %vm305, %v311, 0.0
        %v321 = vsel %vm306, %v315, 0.0
        %v322 = vadd.f32 %v290, %v318
        %v323 = vadd.f32 %v291, %v319
        %v324 = vadd.f32 %v292, %v320
        %v325 = vadd.f32 %v293, %v321
        %v326 = vpack.c.bf16 %v324, %v322
        %v327 = vpack.c.bf16 %v325, %v323
        %v328 = vld [vmem:[%s181] sm:$0xf]
        %v329 = vld [vmem:[%s181 + $0x4] sm:$0xf]
        %v330 = vld [vmem:[%s181 + $0x8] sm:$0xf]
        %v331 = vld [vmem:[%s181 + $0xc] sm:$0xf]
        %v332 = vld [vmem:[%s181 + $0x10] sm:$0xf]
        %v333 = vld [vmem:[%s181 + $0x14] sm:$0xf]
        %v334 = vld [vmem:[%s181 + $0x18] sm:$0xf]
        %v335 = vld [vmem:[%s181 + $0x1c] sm:$0xf]
        %v336 = vld [vmem:[%s181 + $0x20] sm:$0xf]
        %v337 = vld [vmem:[%s181 + $0x24] sm:$0xf]
        %v338 = vld [vmem:[%s181 + $0x28] sm:$0xf]
        %v339 = vld [vmem:[%s181 + $0x2c] sm:$0xf]
        %v340 = vld [vmem:[%s181 + $0x30] sm:$0xf]
        %v341 = vld [vmem:[%s181 + $0x34] sm:$0xf]
        %v342 = vld [vmem:[%s181 + $0x38] sm:$0xf]
        %v343 = vld [vmem:[%s181 + $0x3c] sm:$0xf]
        %v360 = vunpack.c.l.b16 %v328
        %v361 = vunpack.c.l.b16 %v329
        %v362 = vunpack.c.l.b16 %v330
        %v363 = vunpack.c.l.b16 %v331
        %v364 = vunpack.c.l.b16 %v332
        %v365 = vunpack.c.l.b16 %v333
        %v366 = vunpack.c.l.b16 %v334
        %v367 = vunpack.c.l.b16 %v335
        %v368 = vunpack.c.l.b16 %v336
        %v369 = vunpack.c.l.b16 %v337
        %v370 = vunpack.c.l.b16 %v338
        %v371 = vunpack.c.l.b16 %v339
        %v372 = vunpack.c.l.b16 %v340
        %v373 = vunpack.c.l.b16 %v341
        %v374 = vunpack.c.l.b16 %v342
        %v375 = vunpack.c.l.b16 %v343
        %v376 = vpack.c.b16 %v361, %v360
        %v377 = vpack.c.b16 %v363, %v362
        %v378 = vpack.c.b16 %v365, %v364
        %v379 = vpack.c.b16 %v367, %v366
        %v380 = vpack.c.b16 %v369, %v368
        %v381 = vpack.c.b16 %v371, %v370
        %v382 = vpack.c.b16 %v373, %v372
        %v383 = vpack.c.b16 %v375, %v374
        %vm384 = vcmask 130048
        %v386 = vsel %vm384, %v376, 0
        %v389 = vsel %vm384, %v377, 0
        %v392 = vsel %vm384, %v378, 0
        %v395 = vsel %vm384, %v379, 0
        %v398 = vsel %vm384, %v380, 0
        %v401 = vsel %vm384, %v381, 0
        %v404 = vsel %vm384, %v382, 0
        %v407 = vsel %vm384, %v383, 0
        %409 = vmatprep.subr.bf16.mxu0 %v327
        %410 = vmatpush1.bf16.msra.mxu0 %v326
        %411 = vmatprep.subr.bf16.mxu0 0
        %412 = vmatpush1.bf16.msra.mxu0 0
        %413 = vmatprep.subr.bf16.mxu0 0
        %414 = vmatpush1.bf16.msra.mxu0 0
        %415 = vmatprep.subr.bf16.mxu0 0
        %416 = vmatpush1.bf16.msra.mxu0 0
        %417 = vmatprep.subr.bf16.mxu0 0
        %418 = vmatpush1.bf16.msra.mxu0 0
        %419 = vmatprep.subr.bf16.mxu0 0
        %420 = vmatpush1.bf16.msra.mxu0 0
        %421 = vmatprep.subr.bf16.mxu0 0
        %422 = vmatpush1.bf16.msra.mxu0 0
        %423 = vmatprep.subr.bf16.mxu0 0
        %424 = vmatpush1.bf16.msra.mxu0 0
        %425 = vmatprep.subr.bf16.mxu0 0
        %426 = vmatpush1.bf16.msra.mxu0 0
        %427 = vmatprep.subr.bf16.mxu0 0
        %428 = vmatpush1.bf16.msra.mxu0 0
        %429 = vmatprep.subr.bf16.mxu0 0
        %430 = vmatpush1.bf16.msra.mxu0 0
        %431 = vmatprep.subr.bf16.mxu0 0
        %432 = vmatpush1.bf16.msra.mxu0 0
        %433 = vmatprep.subr.bf16.mxu0 0
        %434 = vmatpush1.bf16.msra.mxu0 0
        %435 = vmatprep.subr.bf16.mxu0 0
        %436 = vmatpush1.bf16.msra.mxu0 0
        %437 = vmatprep.subr.bf16.mxu0 0
        %438 = vmatpush1.bf16.msra.mxu0 0
        %439 = vmatprep.subr.bf16.mxu0 0
        %440 = vmatpush1.bf16.msra.mxu0 0
        %441 = vmatprep.mubr.bf16.mxu0 0
        %442 = vmatmul.mubr.bf16.gmra.mrb[0].mxu0 %v386
        %v443 = vpop.f32.mrb[0].mxu0
        %v444 = vadd.f32 0.0, %v443
        %v445 = vpop.f32.mrb[0].mxu0
        %v446 = vadd.f32 0.0, %v445
        %v447 = vpop.f32.mrb[0].mxu0
        %v448 = vadd.f32 0.0, %v447
        %v449 = vpop.f32.mrb[0].mxu0
        %v450 = vadd.f32 0.0, %v449
        %451 = vmatprep.mubr.bf16.mxu0 0
        %452 = vmatmul.mubr.bf16.gmra.mrb[0].mxu0 %v389
        %v453 = vpop.f32.mrb[0].mxu0
        %v454 = vadd.f32 0.0, %v453
        %v455 = vpop.f32.mrb[0].mxu0
        %v456 = vadd.f32 0.0, %v455
        %v457 = vpop.f32.mrb[0].mxu0
        %v458 = vadd.f32 0.0, %v457
        %v459 = vpop.f32.mrb[0].mxu0
        %v460 = vadd.f32 0.0, %v459
        %461 = vmatprep.mubr.bf16.mxu0 0
        %462 = vmatmul.mubr.bf16.gmra.mrb[0].mxu0 %v392
        %v463 = vpop.f32.mrb[0].mxu0
        %v464 = vadd.f32 0.0, %v463
        %v465 = vpop.f32.mrb[0].mxu0
        %v466 = vadd.f32 0.0, %v465
        %v467 = vpop.f32.mrb[0].mxu0
        %v468 = vadd.f32 0.0, %v467
        %v469 = vpop.f32.mrb[0].mxu0
        %v470 = vadd.f32 0.0, %v469
        %471 = vmatprep.mubr.bf16.mxu0 0
        %472 = vmatmul.mubr.bf16.gmra.mrb[0].mxu0 %v395
        %v473 = vpop.f32.mrb[0].mxu0
        %v474 = vadd.f32 0.0, %v473
        %v475 = vpop.f32.mrb[0].mxu0
        %v476 = vadd.f32 0.0, %v475
        %v477 = vpop.f32.mrb[0].mxu0
        %v478 = vadd.f32 0.0, %v477
        %v479 = vpop.f32.mrb[0].mxu0
        %v480 = vadd.f32 0.0, %v479
        %481 = vmatprep.mubr.bf16.mxu0 0
        %482 = vmatmul.mubr.bf16.gmra.mrb[0].mxu0 %v398
        %v483 = vpop.f32.mrb[0].mxu0
        %v484 = vadd.f32 0.0, %v483
        %v485 = vpop.f32.mrb[0].mxu0
        %v486 = vadd.f32 0.0, %v485
        %v487 = vpop.f32.mrb[0].mxu0
        %v488 = vadd.f32 0.0, %v487
        %v489 = vpop.f32.mrb[0].mxu0
        %v490 = vadd.f32 0.0, %v489
        %491 = vmatprep.mubr.bf16.mxu0 0
        %492 = vmatmul.mubr.bf16.gmra.mrb[0].mxu0 %v401
        %v493 = vpop.f32.mrb[0].mxu0
        %v494 = vadd.f32 0.0, %v493
        %v495 = vpop.f32.mrb[0].mxu0
        %v496 = vadd.f32 0.0, %v495
        %v497 = vpop.f32.mrb[0].mxu0
        %v498 = vadd.f32 0.0, %v497
        %v499 = vpop.f32.mrb[0].mxu0
        %v500 = vadd.f32 0.0, %v499
        %501 = vmatprep.mubr.bf16.mxu0 0
        %502 = vmatmul.mubr.bf16.gmra.mrb[0].mxu0 %v404
        %v503 = vpop.f32.mrb[0].mxu0
        %v504 = vadd.f32 0.0, %v503
        %v505 = vpop.f32.mrb[0].mxu0
        %v506 = vadd.f32 0.0, %v505
        %v507 = vpop.f32.mrb[0].mxu0
        %v508 = vadd.f32 0.0, %v507
        %v509 = vpop.f32.mrb[0].mxu0
        %v510 = vadd.f32 0.0, %v509
        %511 = vmatprep.mubr.bf16.mxu0 0
        %512 = vmatmul.mubr.bf16.gmra.mrb[0].mxu0 %v407
        %v513 = vpop.f32.mrb[0].mxu0
        %v514 = vadd.f32 0.0, %v513
        %v515 = vpop.f32.mrb[0].mxu0
        %v516 = vadd.f32 0.0, %v515
        %v517 = vpop.f32.mrb[0].mxu0
        %v518 = vadd.f32 0.0, %v517
        %v519 = vpop.f32.mrb[0].mxu0
        %v520 = vadd.f32 0.0, %v519
        %521 = vdwg.mxu0
        %v522 = vmul.f32 %v444, %v262
        %v523 = vmul.f32 %v446, %v263
        %v524 = vmul.f32 %v448, %v264
        %v525 = vmul.f32 %v450, %v265
        %v526 = vmul.f32 %v454, %v262
        %v527 = vmul.f32 %v456, %v263
        %v528 = vmul.f32 %v458, %v264
        %v529 = vmul.f32 %v460, %v265
        %v530 = vmul.f32 %v464, %v262
        %v531 = vmul.f32 %v466, %v263
        %v532 = vmul.f32 %v468, %v264
        %v533 = vmul.f32 %v470, %v265
        %v534 = vmul.f32 %v474, %v262
        %v535 = vmul.f32 %v476, %v263
        %v536 = vmul.f32 %v478, %v264
        %v537 = vmul.f32 %v480, %v265
        %v538 = vmul.f32 %v484, %v262
        %v539 = vmul.f32 %v486, %v263
        %v540 = vmul.f32 %v488, %v264
        %v541 = vmul.f32 %v490, %v265
        %v542 = vmul.f32 %v494, %v262
        %v543 = vmul.f32 %v496, %v263
        %v544 = vmul.f32 %v498, %v264
        %v545 = vmul.f32 %v500, %v265
        %v546 = vmul.f32 %v504, %v262
        %v547 = vmul.f32 %v506, %v263
        %v548 = vmul.f32 %v508, %v264
        %v549 = vmul.f32 %v510, %v265
        %v550 = vmul.f32 %v514, %v262
        %v551 = vmul.f32 %v516, %v263
        %v552 = vmul.f32 %v518, %v264
        %v553 = vmul.f32 %v520, %v265
        %v554 = vadd.f32 %v522, %v524
        %v555 = vrot.slane %v554, 4
        %v556 = vadd.f32 %v554, %v555
        %v557 = vrot.slane %v556, 2
        %v558 = vadd.f32 %v556, %v557
        %v559 = vrot.slane %v558, 1
        %v560 = vadd.f32 %v558, %v559
        %v561 = vadd.f32 %v523, %v525
        %v562 = vrot.slane %v561, 4
        %v563 = vadd.f32 %v561, %v562
        %v564 = vrot.slane %v563, 2
        %v565 = vadd.f32 %v563, %v564
        %v566 = vrot.slane %v565, 1
        %v567 = vadd.f32 %v565, %v566
        %v568 = vadd.f32 %v526, %v528
        %v569 = vrot.slane %v568, 4
        %v570 = vadd.f32 %v568, %v569
        %v571 = vrot.slane %v570, 2
        %v572 = vadd.f32 %v570, %v571
        %v573 = vrot.slane %v572, 1
        %v574 = vadd.f32 %v572, %v573
        %v575 = vadd.f32 %v527, %v529
        %v576 = vrot.slane %v575, 4
        %v577 = vadd.f32 %v575, %v576
        %v578 = vrot.slane %v577, 2
        %v579 = vadd.f32 %v577, %v578
        %v580 = vrot.slane %v579, 1
        %v581 = vadd.f32 %v579, %v580
        %v582 = vadd.f32 %v530, %v532
        %v583 = vrot.slane %v582, 4
        %v584 = vadd.f32 %v582, %v583
        %v585 = vrot.slane %v584, 2
        %v586 = vadd.f32 %v584, %v585
        %v587 = vrot.slane %v586, 1
        %v588 = vadd.f32 %v586, %v587
        %v589 = vadd.f32 %v531, %v533
        %v590 = vrot.slane %v589, 4
        %v591 = vadd.f32 %v589, %v590
        %v592 = vrot.slane %v591, 2
        %v593 = vadd.f32 %v591, %v592
        %v594 = vrot.slane %v593, 1
        %v595 = vadd.f32 %v593, %v594
        %v596 = vadd.f32 %v534, %v536
        %v597 = vrot.slane %v596, 4
        %v598 = vadd.f32 %v596, %v597
        %v599 = vrot.slane %v598, 2
        %v600 = vadd.f32 %v598, %v599
        %v601 = vrot.slane %v600, 1
        %v602 = vadd.f32 %v600, %v601
        %v603 = vadd.f32 %v535, %v537
        %v604 = vrot.slane %v603, 4
        %v605 = vadd.f32 %v603, %v604
        %v606 = vrot.slane %v605, 2
        %v607 = vadd.f32 %v605, %v606
        %v608 = vrot.slane %v607, 1
        %v609 = vadd.f32 %v607, %v608
        %v610 = vadd.f32 %v538, %v540
        %v611 = vrot.slane %v610, 4
        %v612 = vadd.f32 %v610, %v611
        %v613 = vrot.slane %v612, 2
        %v614 = vadd.f32 %v612, %v613
        %v615 = vrot.slane %v614, 1
        %v616 = vadd.f32 %v614, %v615
        %v617 = vadd.f32 %v539, %v541
        %v618 = vrot.slane %v617, 4
        %v619 = vadd.f32 %v617, %v618
        %v620 = vrot.slane %v619, 2
        %v621 = vadd.f32 %v619, %v620
        %v622 = vrot.slane %v621, 1
        %v623 = vadd.f32 %v621, %v622
        %v624 = vadd.f32 %v542, %v544
        %v625 = vrot.slane %v624, 4
        %v626 = vadd.f32 %v624, %v625
        %v627 = vrot.slane %v626, 2
        %v628 = vadd.f32 %v626, %v627
        %v629 = vrot.slane %v628, 1
        %v630 = vadd.f32 %v628, %v629
        %v631 = vadd.f32 %v543, %v545
        %v632 = vrot.slane %v631, 4
        %v633 = vadd.f32 %v631, %v632
        %v634 = vrot.slane %v633, 2
        %v635 = vadd.f32 %v633, %v634
        %v636 = vrot.slane %v635, 1
        %v637 = vadd.f32 %v635, %v636
        %v638 = vadd.f32 %v546, %v548
        %v639 = vrot.slane %v638, 4
        %v640 = vadd.f32 %v638, %v639
        %v641 = vrot.slane %v640, 2
        %v642 = vadd.f32 %v640, %v641
        %v643 = vrot.slane %v642, 1
        %v644 = vadd.f32 %v642, %v643
        %v645 = vadd.f32 %v547, %v549
        %v646 = vrot.slane %v645, 4
        %v647 = vadd.f32 %v645, %v646
        %v648 = vrot.slane %v647, 2
        %v649 = vadd.f32 %v647, %v648
        %v650 = vrot.slane %v649, 1
        %v651 = vadd.f32 %v649, %v650
        %v652 = vadd.f32 %v550, %v552
        %v653 = vrot.slane %v652, 4
        %v654 = vadd.f32 %v652, %v653
        %v655 = vrot.slane %v654, 2
        %v656 = vadd.f32 %v654, %v655
        %v657 = vrot.slane %v656, 1
        %v658 = vadd.f32 %v656, %v657
        %v659 = vadd.f32 %v551, %v553
        %v660 = vrot.slane %v659, 4
        %v661 = vadd.f32 %v659, %v660
        %v662 = vrot.slane %v661, 2
        %v663 = vadd.f32 %v661, %v662
        %v664 = vrot.slane %v663, 1
        %v665 = vadd.f32 %v663, %v664
        %v666 = vadd.f32 %v560, 0.0
        %v667 = vadd.f32 %v567, 0.0
        %v668 = vadd.f32 %v574, 0.0
        %v669 = vadd.f32 %v581, 0.0
        %v670 = vadd.f32 %v588, 0.0
        %v671 = vadd.f32 %v595, 0.0
        %v672 = vadd.f32 %v602, 0.0
        %v673 = vadd.f32 %v609, 0.0
        %v674 = vadd.f32 %v616, 0.0
        %v675 = vadd.f32 %v623, 0.0
        %v676 = vadd.f32 %v630, 0.0
        %v677 = vadd.f32 %v637, 0.0
        %v678 = vadd.f32 %v644, 0.0
        %v679 = vadd.f32 %v651, 0.0
        %v680 = vadd.f32 %v658, 0.0
        %v681 = vadd.f32 %v665, 0.0
        %s682 = scalar_lea.vmem %s190, 2
        %v683 = vld [vmem:[%s682] ss:$8 sm:$0x3]
        %s684 = scalar_lea.vmem %s190, 3
        %v685 = vld [vmem:[%s684] ss:$8 sm:$0x3]
        %v686 = vfloor.f32 %v683
        %v687 = vfloor.f32 %v685
        %v688 = vsub.f32 %v683, %v686
        %v689 = vsub.f32 %v685, %v687
        %v690 = vcvt.f32.s32.to.zero.pseudo %v686
        %v691 = vcvt.f32.s32.to.zero.pseudo %v687
        %v692 = vlaneseq
        %v693 = vshrl.u32 %v692, 7
        %v694 = vsub.s32 0, %v693
        %v695 = vrot.slane %v690, %v694
        %v696 = vlaneseq
        %v697 = vshrl.u32 %v696, 7
        %v698 = vsub.s32 1, %v697
        %v699 = vrot.slane %v690, %v698
        %vm700 = vcmp.eq.s32.totalorder %v195, %v695
        %vm701 = vcmp.eq.s32.totalorder %v195, %v699
        %vm702 = vcmp.eq.s32.totalorder %v196, %v695
        %vm703 = vcmp.eq.s32.totalorder %v196, %v699
        %v704 = vsub.f32 1.0, %v688
        %v706 = vlaneseq
        %v707 = vshrl.u32 %v706, 7
        %v708 = vsub.s32 0, %v707
        %v709 = vrot.slane %v704, %v708
        %v710 = vlaneseq
        %v711 = vshrl.u32 %v710, 7
        %v712 = vsub.s32 1, %v711
        %v713 = vrot.slane %v704, %v712
        %v716 = vsel %vm700, %v709, 0.0
        %v717 = vsel %vm701, %v713, 0.0
        %v718 = vsel %vm702, %v709, 0.0
        %v719 = vsel %vm703, %v713, 0.0
        %v720 = vadd.s32 %v690, 1
        %v721 = vlaneseq
        %v722 = vshrl.u32 %v721, 7
        %v723 = vsub.s32 0, %v722
        %v724 = vrot.slane %v720, %v723
        %v725 = vlaneseq
        %v726 = vshrl.u32 %v725, 7
        %v727 = vsub.s32 1, %v726
        %v728 = vrot.slane %v720, %v727
        %vm729 = vcmp.eq.s32.totalorder %v195, %v724
        %vm730 = vcmp.eq.s32.totalorder %v195, %v728
        %vm731 = vcmp.eq.s32.totalorder %v196, %v724
        %vm732 = vcmp.eq.s32.totalorder %v196, %v728
        %v734 = vlaneseq
        %v735 = vshrl.u32 %v734, 7
        %v736 = vsub.s32 0, %v735
        %v737 = vrot.slane %v688, %v736
        %v738 = vlaneseq
        %v739 = vshrl.u32 %v738, 7
        %v740 = vsub.s32 1, %v739
        %v741 = vrot.slane %v688, %v740
        %v744 = vsel %vm729, %v737, 0.0
        %v745 = vsel %vm730, %v741, 0.0
        %v746 = vsel %vm731, %v737, 0.0
        %v747 = vsel %vm732, %v741, 0.0
        %v748 = vadd.f32 %v716, %v744
        %v749 = vadd.f32 %v717, %v745
        %v750 = vadd.f32 %v718, %v746
        %v751 = vadd.f32 %v719, %v747
        %v752 = vlaneseq
        %v753 = vshrl.u32 %v752, 7
        %v754 = vsub.s32 0, %v753
        %v755 = vrot.slane %v691, %v754
        %v756 = vlaneseq
        %v757 = vshrl.u32 %v756, 7
        %v758 = vsub.s32 1, %v757
        %v759 = vrot.slane %v691, %v758
        %vm760 = vcmp.eq.s32.totalorder %v195, %v755
        %vm761 = vcmp.eq.s32.totalorder %v195, %v759
        %vm762 = vcmp.eq.s32.totalorder %v196, %v755
        %vm763 = vcmp.eq.s32.totalorder %v196, %v759
        %v764 = vsub.f32 1.0, %v689
        %v766 = vlaneseq
        %v767 = vshrl.u32 %v766, 7
        %v768 = vsub.s32 0, %v767
        %v769 = vrot.slane %v764, %v768
        %v770 = vlaneseq
        %v771 = vshrl.u32 %v770, 7
        %v772 = vsub.s32 1, %v771
        %v773 = vrot.slane %v764, %v772
        %v776 = vsel %vm760, %v769, 0.0
        %v777 = vsel %vm761, %v773, 0.0
        %v778 = vsel %vm762, %v769, 0.0
        %v779 = vsel %vm763, %v773, 0.0
        %v780 = vadd.s32 %v691, 1
        %v781 = vlaneseq
        %v782 = vshrl.u32 %v781, 7
        %v783 = vsub.s32 0, %v782
        %v784 = vrot.slane %v780, %v783
        %v785 = vlaneseq
        %v786 = vshrl.u32 %v785, 7
        %v787 = vsub.s32 1, %v786
        %v788 = vrot.slane %v780, %v787
        %vm789 = vcmp.eq.s32.totalorder %v195, %v784
        %vm790 = vcmp.eq.s32.totalorder %v195, %v788
        %vm791 = vcmp.eq.s32.totalorder %v196, %v784
        %vm792 = vcmp.eq.s32.totalorder %v196, %v788
        %v794 = vlaneseq
        %v795 = vshrl.u32 %v794, 7
        %v796 = vsub.s32 0, %v795
        %v797 = vrot.slane %v689, %v796
        %v798 = vlaneseq
        %v799 = vshrl.u32 %v798, 7
        %v800 = vsub.s32 1, %v799
        %v801 = vrot.slane %v689, %v800
        %v804 = vsel %vm789, %v797, 0.0
        %v805 = vsel %vm790, %v801, 0.0
        %v806 = vsel %vm791, %v797, 0.0
        %v807 = vsel %vm792, %v801, 0.0
        %v808 = vadd.f32 %v776, %v804
        %v809 = vadd.f32 %v777, %v805
        %v810 = vadd.f32 %v778, %v806
        %v811 = vadd.f32 %v779, %v807
        %v812 = vpack.c.bf16 %v810, %v808
        %v813 = vpack.c.bf16 %v811, %v809
        %s814 = scalar_lea.vmem %s181, 64
        %v815 = vld [vmem:[%s814] sm:$0xf]
        %v816 = vld [vmem:[%s814 + $0x4] sm:$0xf]
        %v817 = vld [vmem:[%s814 + $0x8] sm:$0xf]
        %v818 = vld [vmem:[%s814 + $0xc] sm:$0xf]
        %v819 = vld [vmem:[%s814 + $0x10] sm:$0xf]
        %v820 = vld [vmem:[%s814 + $0x14] sm:$0xf]
        %v821 = vld [vmem:[%s814 + $0x18] sm:$0xf]
        %v822 = vld [vmem:[%s814 + $0x1c] sm:$0xf]
        %v823 = vld [vmem:[%s814 + $0x20] sm:$0xf]
        %v824 = vld [vmem:[%s814 + $0x24] sm:$0xf]
        %v825 = vld [vmem:[%s814 + $0x28] sm:$0xf]
        %v826 = vld [vmem:[%s814 + $0x2c] sm:$0xf]
        %v827 = vld [vmem:[%s814 + $0x30] sm:$0xf]
        %v828 = vld [vmem:[%s814 + $0x34] sm:$0xf]
        %v829 = vld [vmem:[%s814 + $0x38] sm:$0xf]
        %v830 = vld [vmem:[%s814 + $0x3c] sm:$0xf]
        %v847 = vunpack.c.l.b16 %v815
        %v848 = vunpack.c.l.b16 %v816
        %v849 = vunpack.c.l.b16 %v817
        %v850 = vunpack.c.l.b16 %v818
        %v851 = vunpack.c.l.b16 %v819
        %v852 = vunpack.c.l.b16 %v820
        %v853 = vunpack.c.l.b16 %v821
        %v854 = vunpack.c.l.b16 %v822
        %v855 = vunpack.c.l.b16 %v823
        %v856 = vunpack.c.l.b16 %v824
        %v857 = vunpack.c.l.b16 %v825
        %v858 = vunpack.c.l.b16 %v826
        %v859 = vunpack.c.l.b16 %v827
        %v860 = vunpack.c.l.b16 %v828
        %v861 = vunpack.c.l.b16 %v829
        %v862 = vunpack.c.l.b16 %v830
        %v863 = vpack.c.b16 %v848, %v847
        %v864 = vpack.c.b16 %v850, %v849
        %v865 = vpack.c.b16 %v852, %v851
        %v866 = vpack.c.b16 %v854, %v853
        %v867 = vpack.c.b16 %v856, %v855
        %v868 = vpack.c.b16 %v858, %v857
        %v869 = vpack.c.b16 %v860, %v859
        %v870 = vpack.c.b16 %v862, %v861
        %v872 = vsel %vm384, %v863, 0
        %v875 = vsel %vm384, %v864, 0
        %v878 = vsel %vm384, %v865, 0
        %v881 = vsel %vm384, %v866, 0
        %v884 = vsel %vm384, %v867, 0
        %v887 = vsel %vm384, %v868, 0
        %v890 = vsel %vm384, %v869, 0
        %v893 = vsel %vm384, %v870, 0
        %895 = vmatprep.subr.bf16.mxu0 %v813
        %896 = vmatpush1.bf16.msra.mxu0 %v812
        %897 = vmatprep.subr.bf16.mxu0 0
        %898 = vmatpush1.bf16.msra.mxu0 0
        %899 = vmatprep.subr.bf16.mxu0 0
        %900 = vmatpush1.bf16.msra.mxu0 0
        %901 = vmatprep.subr.bf16.mxu0 0
        %902 = vmatpush1.bf16.msra.mxu0 0
        %903 = vmatprep.subr.bf16.mxu0 0
        %904 = vmatpush1.bf16.msra.mxu0 0
        %905 = vmatprep.subr.bf16.mxu0 0
        %906 = vmatpush1.bf16.msra.mxu0 0
        %907 = vmatprep.subr.bf16.mxu0 0
        %908 = vmatpush1.bf16.msra.mxu0 0
        %909 = vmatprep.subr.bf16.mxu0 0
        %910 = vmatpush1.bf16.msra.mxu0 0
        %911 = vmatprep.subr.bf16.mxu0 0
        %912 = vmatpush1.bf16.msra.mxu0 0
        %913 = vmatprep.subr.bf16.mxu0 0
        %914 = vmatpush1.bf16.msra.mxu0 0
        %915 = vmatprep.subr.bf16.mxu0 0
        %916 = vmatpush1.bf16.msra.mxu0 0
        %917 = vmatprep.subr.bf16.mxu0 0
        %918 = vmatpush1.bf16.msra.mxu0 0
        %919 = vmatprep.subr.bf16.mxu0 0
        %920 = vmatpush1.bf16.msra.mxu0 0
        %921 = vmatprep.subr.bf16.mxu0 0
        %922 = vmatpush1.bf16.msra.mxu0 0
        %923 = vmatprep.subr.bf16.mxu0 0
        %924 = vmatpush1.bf16.msra.mxu0 0
        %925 = vmatprep.subr.bf16.mxu0 0
        %926 = vmatpush1.bf16.msra.mxu0 0
        %927 = vmatprep.mubr.bf16.mxu0 0
        %928 = vmatmul.mubr.bf16.gmra.mrb[0].mxu0 %v872
        %v929 = vpop.f32.mrb[0].mxu0
        %v930 = vadd.f32 0.0, %v929
        %v931 = vpop.f32.mrb[0].mxu0
        %v932 = vadd.f32 0.0, %v931
        %v933 = vpop.f32.mrb[0].mxu0
        %v934 = vadd.f32 0.0, %v933
        %v935 = vpop.f32.mrb[0].mxu0
        %v936 = vadd.f32 0.0, %v935
        %937 = vmatprep.mubr.bf16.mxu0 0
        %938 = vmatmul.mubr.bf16.gmra.mrb[0].mxu0 %v875
        %v939 = vpop.f32.mrb[0].mxu0
        %v940 = vadd.f32 0.0, %v939
        %v941 = vpop.f32.mrb[0].mxu0
        %v942 = vadd.f32 0.0, %v941
        %v943 = vpop.f32.mrb[0].mxu0
        %v944 = vadd.f32 0.0, %v943
        %v945 = vpop.f32.mrb[0].mxu0
        %v946 = vadd.f32 0.0, %v945
        %947 = vmatprep.mubr.bf16.mxu0 0
        %948 = vmatmul.mubr.bf16.gmra.mrb[0].mxu0 %v878
        %v949 = vpop.f32.mrb[0].mxu0
        %v950 = vadd.f32 0.0, %v949
        %v951 = vpop.f32.mrb[0].mxu0
        %v952 = vadd.f32 0.0, %v951
        %v953 = vpop.f32.mrb[0].mxu0
        %v954 = vadd.f32 0.0, %v953
        %v955 = vpop.f32.mrb[0].mxu0
        %v956 = vadd.f32 0.0, %v955
        %957 = vmatprep.mubr.bf16.mxu0 0
        %958 = vmatmul.mubr.bf16.gmra.mrb[0].mxu0 %v881
        %v959 = vpop.f32.mrb[0].mxu0
        %v960 = vadd.f32 0.0, %v959
        %v961 = vpop.f32.mrb[0].mxu0
        %v962 = vadd.f32 0.0, %v961
        %v963 = vpop.f32.mrb[0].mxu0
        %v964 = vadd.f32 0.0, %v963
        %v965 = vpop.f32.mrb[0].mxu0
        %v966 = vadd.f32 0.0, %v965
        %967 = vmatprep.mubr.bf16.mxu0 0
        %968 = vmatmul.mubr.bf16.gmra.mrb[0].mxu0 %v884
        %v969 = vpop.f32.mrb[0].mxu0
        %v970 = vadd.f32 0.0, %v969
        %v971 = vpop.f32.mrb[0].mxu0
        %v972 = vadd.f32 0.0, %v971
        %v973 = vpop.f32.mrb[0].mxu0
        %v974 = vadd.f32 0.0, %v973
        %v975 = vpop.f32.mrb[0].mxu0
        %v976 = vadd.f32 0.0, %v975
        %977 = vmatprep.mubr.bf16.mxu0 0
        %978 = vmatmul.mubr.bf16.gmra.mrb[0].mxu0 %v887
        %v979 = vpop.f32.mrb[0].mxu0
        %v980 = vadd.f32 0.0, %v979
        %v981 = vpop.f32.mrb[0].mxu0
        %v982 = vadd.f32 0.0, %v981
        %v983 = vpop.f32.mrb[0].mxu0
        %v984 = vadd.f32 0.0, %v983
        %v985 = vpop.f32.mrb[0].mxu0
        %v986 = vadd.f32 0.0, %v985
        %987 = vmatprep.mubr.bf16.mxu0 0
        %988 = vmatmul.mubr.bf16.gmra.mrb[0].mxu0 %v890
        %v989 = vpop.f32.mrb[0].mxu0
        %v990 = vadd.f32 0.0, %v989
        %v991 = vpop.f32.mrb[0].mxu0
        %v992 = vadd.f32 0.0, %v991
        %v993 = vpop.f32.mrb[0].mxu0
        %v994 = vadd.f32 0.0, %v993
        %v995 = vpop.f32.mrb[0].mxu0
        %v996 = vadd.f32 0.0, %v995
        %997 = vmatprep.mubr.bf16.mxu0 0
        %998 = vmatmul.mubr.bf16.gmra.mrb[0].mxu0 %v893
        %v999 = vpop.f32.mrb[0].mxu0
        %v1000 = vadd.f32 0.0, %v999
        %v1001 = vpop.f32.mrb[0].mxu0
        %v1002 = vadd.f32 0.0, %v1001
        %v1003 = vpop.f32.mrb[0].mxu0
        %v1004 = vadd.f32 0.0, %v1003
        %v1005 = vpop.f32.mrb[0].mxu0
        %v1006 = vadd.f32 0.0, %v1005
        %1007 = vdwg.mxu0
        %v1008 = vmul.f32 %v930, %v748
        %v1009 = vmul.f32 %v932, %v749
        %v1010 = vmul.f32 %v934, %v750
        %v1011 = vmul.f32 %v936, %v751
        %v1012 = vmul.f32 %v940, %v748
        %v1013 = vmul.f32 %v942, %v749
        %v1014 = vmul.f32 %v944, %v750
        %v1015 = vmul.f32 %v946, %v751
        %v1016 = vmul.f32 %v950, %v748
        %v1017 = vmul.f32 %v952, %v749
        %v1018 = vmul.f32 %v954, %v750
        %v1019 = vmul.f32 %v956, %v751
        %v1020 = vmul.f32 %v960, %v748
        %v1021 = vmul.f32 %v962, %v749
        %v1022 = vmul.f32 %v964, %v750
        %v1023 = vmul.f32 %v966, %v751
        %v1024 = vmul.f32 %v970, %v748
        %v1025 = vmul.f32 %v972, %v749
        %v1026 = vmul.f32 %v974, %v750
        %v1027 = vmul.f32 %v976, %v751
        %v1028 = vmul.f32 %v980, %v748
        %v1029 = vmul.f32 %v982, %v749
        %v1030 = vmul.f32 %v984, %v750
        %v1031 = vmul.f32 %v986, %v751
        %v1032 = vmul.f32 %v990, %v748
        %v1033 = vmul.f32 %v992, %v749
        %v1034 = vmul.f32 %v994, %v750
        %v1035 = vmul.f32 %v996, %v751
        %v1036 = vmul.f32 %v1000, %v748
        %v1037 = vmul.f32 %v1002, %v749
        %v1038 = vmul.f32 %v1004, %v750
        %v1039 = vmul.f32 %v1006, %v751
        %v1040 = vadd.f32 %v1008, %v1010
        %v1041 = vrot.slane %v1040, 4
        %v1042 = vadd.f32 %v1040, %v1041
        %v1043 = vrot.slane %v1042, 2
        %v1044 = vadd.f32 %v1042, %v1043
        %v1045 = vrot.slane %v1044, 1
        %v1046 = vadd.f32 %v1044, %v1045
        %v1047 = vadd.f32 %v1009, %v1011
        %v1048 = vrot.slane %v1047, 4
        %v1049 = vadd.f32 %v1047, %v1048
        %v1050 = vrot.slane %v1049, 2
        %v1051 = vadd.f32 %v1049, %v1050
        %v1052 = vrot.slane %v1051, 1
        %v1053 = vadd.f32 %v1051, %v1052
        %v1054 = vadd.f32 %v1012, %v1014
        %v1055 = vrot.slane %v1054, 4
        %v1056 = vadd.f32 %v1054, %v1055
        %v1057 = vrot.slane %v1056, 2
        %v1058 = vadd.f32 %v1056, %v1057
        %v1059 = vrot.slane %v1058, 1
        %v1060 = vadd.f32 %v1058, %v1059
        %v1061 = vadd.f32 %v1013, %v1015
        %v1062 = vrot.slane %v1061, 4
        %v1063 = vadd.f32 %v1061, %v1062
        %v1064 = vrot.slane %v1063, 2
        %v1065 = vadd.f32 %v1063, %v1064
        %v1066 = vrot.slane %v1065, 1
        %v1067 = vadd.f32 %v1065, %v1066
        %v1068 = vadd.f32 %v1016, %v1018
        %v1069 = vrot.slane %v1068, 4
        %v1070 = vadd.f32 %v1068, %v1069
        %v1071 = vrot.slane %v1070, 2
        %v1072 = vadd.f32 %v1070, %v1071
        %v1073 = vrot.slane %v1072, 1
        %v1074 = vadd.f32 %v1072, %v1073
        %v1075 = vadd.f32 %v1017, %v1019
        %v1076 = vrot.slane %v1075, 4
        %v1077 = vadd.f32 %v1075, %v1076
        %v1078 = vrot.slane %v1077, 2
        %v1079 = vadd.f32 %v1077, %v1078
        %v1080 = vrot.slane %v1079, 1
        %v1081 = vadd.f32 %v1079, %v1080
        %v1082 = vadd.f32 %v1020, %v1022
        %v1083 = vrot.slane %v1082, 4
        %v1084 = vadd.f32 %v1082, %v1083
        %v1085 = vrot.slane %v1084, 2
        %v1086 = vadd.f32 %v1084, %v1085
        %v1087 = vrot.slane %v1086, 1
        %v1088 = vadd.f32 %v1086, %v1087
        %v1089 = vadd.f32 %v1021, %v1023
        %v1090 = vrot.slane %v1089, 4
        %v1091 = vadd.f32 %v1089, %v1090
        %v1092 = vrot.slane %v1091, 2
        %v1093 = vadd.f32 %v1091, %v1092
        %v1094 = vrot.slane %v1093, 1
        %v1095 = vadd.f32 %v1093, %v1094
        %v1096 = vadd.f32 %v1024, %v1026
        %v1097 = vrot.slane %v1096, 4
        %v1098 = vadd.f32 %v1096, %v1097
        %v1099 = vrot.slane %v1098, 2
        %v1100 = vadd.f32 %v1098, %v1099
        %v1101 = vrot.slane %v1100, 1
        %v1102 = vadd.f32 %v1100, %v1101
        %v1103 = vadd.f32 %v1025, %v1027
        %v1104 = vrot.slane %v1103, 4
        %v1105 = vadd.f32 %v1103, %v1104
        %v1106 = vrot.slane %v1105, 2
        %v1107 = vadd.f32 %v1105, %v1106
        %v1108 = vrot.slane %v1107, 1
        %v1109 = vadd.f32 %v1107, %v1108
        %v1110 = vadd.f32 %v1028, %v1030
        %v1111 = vrot.slane %v1110, 4
        %v1112 = vadd.f32 %v1110, %v1111
        %v1113 = vrot.slane %v1112, 2
        %v1114 = vadd.f32 %v1112, %v1113
        %v1115 = vrot.slane %v1114, 1
        %v1116 = vadd.f32 %v1114, %v1115
        %v1117 = vadd.f32 %v1029, %v1031
        %v1118 = vrot.slane %v1117, 4
        %v1119 = vadd.f32 %v1117, %v1118
        %v1120 = vrot.slane %v1119, 2
        %v1121 = vadd.f32 %v1119, %v1120
        %v1122 = vrot.slane %v1121, 1
        %v1123 = vadd.f32 %v1121, %v1122
        %v1124 = vadd.f32 %v1032, %v1034
        %v1125 = vrot.slane %v1124, 4
        %v1126 = vadd.f32 %v1124, %v1125
        %v1127 = vrot.slane %v1126, 2
        %v1128 = vadd.f32 %v1126, %v1127
        %v1129 = vrot.slane %v1128, 1
        %v1130 = vadd.f32 %v1128, %v1129
        %v1131 = vadd.f32 %v1033, %v1035
        %v1132 = vrot.slane %v1131, 4
        %v1133 = vadd.f32 %v1131, %v1132
        %v1134 = vrot.slane %v1133, 2
        %v1135 = vadd.f32 %v1133, %v1134
        %v1136 = vrot.slane %v1135, 1
        %v1137 = vadd.f32 %v1135, %v1136
        %v1138 = vadd.f32 %v1036, %v1038
        %v1139 = vrot.slane %v1138, 4
        %v1140 = vadd.f32 %v1138, %v1139
        %v1141 = vrot.slane %v1140, 2
        %v1142 = vadd.f32 %v1140, %v1141
        %v1143 = vrot.slane %v1142, 1
        %v1144 = vadd.f32 %v1142, %v1143
        %v1145 = vadd.f32 %v1037, %v1039
        %v1146 = vrot.slane %v1145, 4
        %v1147 = vadd.f32 %v1145, %v1146
        %v1148 = vrot.slane %v1147, 2
        %v1149 = vadd.f32 %v1147, %v1148
        %v1150 = vrot.slane %v1149, 1
        %v1151 = vadd.f32 %v1149, %v1150
        %v1152 = vadd.f32 %v666, %v1046
        %v1153 = vadd.f32 %v667, %v1053
        %v1154 = vadd.f32 %v668, %v1060
        %v1155 = vadd.f32 %v669, %v1067
        %v1156 = vadd.f32 %v670, %v1074
        %v1157 = vadd.f32 %v671, %v1081
        %v1158 = vadd.f32 %v672, %v1088
        %v1159 = vadd.f32 %v673, %v1095
        %v1160 = vadd.f32 %v674, %v1102
        %v1161 = vadd.f32 %v675, %v1109
        %v1162 = vadd.f32 %v676, %v1116
        %v1163 = vadd.f32 %v677, %v1123
        %v1164 = vadd.f32 %v678, %v1130
        %v1165 = vadd.f32 %v679, %v1137
        %v1166 = vadd.f32 %v680, %v1144
        %v1167 = vadd.f32 %v681, %v1151
        %s1168 = scalar_lea.vmem %s190, 4
        %v1169 = vld [vmem:[%s1168] ss:$8 sm:$0x3]
        %s1170 = scalar_lea.vmem %s190, 5
        %v1171 = vld [vmem:[%s1170] ss:$8 sm:$0x3]
        %v1172 = vfloor.f32 %v1169
        %v1173 = vfloor.f32 %v1171
        %v1174 = vsub.f32 %v1169, %v1172
        %v1175 = vsub.f32 %v1171, %v1173
        %v1176 = vcvt.f32.s32.to.zero.pseudo %v1172
        %v1177 = vcvt.f32.s32.to.zero.pseudo %v1173
        %v1178 = vlaneseq
        %v1179 = vshrl.u32 %v1178, 7
        %v1180 = vsub.s32 0, %v1179
        %v1181 = vrot.slane %v1176, %v1180
        %v1182 = vlaneseq
        %v1183 = vshrl.u32 %v1182, 7
        %v1184 = vsub.s32 1, %v1183
        %v1185 = vrot.slane %v1176, %v1184
        %vm1186 = vcmp.eq.s32.totalorder %v195, %v1181
        %vm1187 = vcmp.eq.s32.totalorder %v195, %v1185
        %vm1188 = vcmp.eq.s32.totalorder %v196, %v1181
        %vm1189 = vcmp.eq.s32.totalorder %v196, %v1185
        %v1190 = vsub.f32 1.0, %v1174
        %v1192 = vlaneseq
        %v1193 = vshrl.u32 %v1192, 7
        %v1194 = vsub.s32 0, %v1193
        %v1195 = vrot.slane %v1190, %v1194
        %v1196 = vlaneseq
        %v1197 = vshrl.u32 %v1196, 7
        %v1198 = vsub.s32 1, %v1197
        %v1199 = vrot.slane %v1190, %v1198
        %v1202 = vsel %vm1186, %v1195, 0.0
        %v1203 = vsel %vm1187, %v1199, 0.0
        %v1204 = vsel %vm1188, %v1195, 0.0
        %v1205 = vsel %vm1189, %v1199, 0.0
        %v1206 = vadd.s32 %v1176, 1
        %v1207 = vlaneseq
        %v1208 = vshrl.u32 %v1207, 7
        %v1209 = vsub.s32 0, %v1208
        %v1210 = vrot.slane %v1206, %v1209
        %v1211 = vlaneseq
        %v1212 = vshrl.u32 %v1211, 7
        %v1213 = vsub.s32 1, %v1212
        %v1214 = vrot.slane %v1206, %v1213
        %vm1215 = vcmp.eq.s32.totalorder %v195, %v1210
        %vm1216 = vcmp.eq.s32.totalorder %v195, %v1214
        %vm1217 = vcmp.eq.s32.totalorder %v196, %v1210
        %vm1218 = vcmp.eq.s32.totalorder %v196, %v1214
        %v1220 = vlaneseq
        %v1221 = vshrl.u32 %v1220, 7
        %v1222 = vsub.s32 0, %v1221
        %v1223 = vrot.slane %v1174, %v1222
        %v1224 = vlaneseq
        %v1225 = vshrl.u32 %v1224, 7
        %v1226 = vsub.s32 1, %v1225
        %v1227 = vrot.slane %v1174, %v1226
        %v1230 = vsel %vm1215, %v1223, 0.0
        %v1231 = vsel %vm1216, %v1227, 0.0
        %v1232 = vsel %vm1217, %v1223, 0.0
        %v1233 = vsel %vm1218, %v1227, 0.0
        %v1234 = vadd.f32 %v1202, %v1230
        %v1235 = vadd.f32 %v1203, %v1231
        %v1236 = vadd.f32 %v1204, %v1232
        %v1237 = vadd.f32 %v1205, %v1233
        %v1238 = vlaneseq
        %v1239 = vshrl.u32 %v1238, 7
        %v1240 = vsub.s32 0, %v1239
        %v1241 = vrot.slane %v1177, %v1240
        %v1242 = vlaneseq
        %v1243 = vshrl.u32 %v1242, 7
        %v1244 = vsub.s32 1, %v1243
        %v1245 = vrot.slane %v1177, %v1244
        %vm1246 = vcmp.eq.s32.totalorder %v195, %v1241
        %vm1247 = vcmp.eq.s32.totalorder %v195, %v1245
        %vm1248 = vcmp.eq.s32.totalorder %v196, %v1241
        %vm1249 = vcmp.eq.s32.totalorder %v196, %v1245
        %v1250 = vsub.f32 1.0, %v1175
        %v1252 = vlaneseq
        %v1253 = vshrl.u32 %v1252, 7
        %v1254 = vsub.s32 0, %v1253
        %v1255 = vrot.slane %v1250, %v1254
        %v1256 = vlaneseq
        %v1257 = vshrl.u32 %v1256, 7
        %v1258 = vsub.s32 1, %v1257
        %v1259 = vrot.slane %v1250, %v1258
        %v1262 = vsel %vm1246, %v1255, 0.0
        %v1263 = vsel %vm1247, %v1259, 0.0
        %v1264 = vsel %vm1248, %v1255, 0.0
        %v1265 = vsel %vm1249, %v1259, 0.0
        %v1266 = vadd.s32 %v1177, 1
        %v1267 = vlaneseq
        %v1268 = vshrl.u32 %v1267, 7
        %v1269 = vsub.s32 0, %v1268
        %v1270 = vrot.slane %v1266, %v1269
        %v1271 = vlaneseq
        %v1272 = vshrl.u32 %v1271, 7
        %v1273 = vsub.s32 1, %v1272
        %v1274 = vrot.slane %v1266, %v1273
        %vm1275 = vcmp.eq.s32.totalorder %v195, %v1270
        %vm1276 = vcmp.eq.s32.totalorder %v195, %v1274
        %vm1277 = vcmp.eq.s32.totalorder %v196, %v1270
        %vm1278 = vcmp.eq.s32.totalorder %v196, %v1274
        %v1280 = vlaneseq
        %v1281 = vshrl.u32 %v1280, 7
        %v1282 = vsub.s32 0, %v1281
        %v1283 = vrot.slane %v1175, %v1282
        %v1284 = vlaneseq
        %v1285 = vshrl.u32 %v1284, 7
        %v1286 = vsub.s32 1, %v1285
        %v1287 = vrot.slane %v1175, %v1286
        %v1290 = vsel %vm1275, %v1283, 0.0
        %v1291 = vsel %vm1276, %v1287, 0.0
        %v1292 = vsel %vm1277, %v1283, 0.0
        %v1293 = vsel %vm1278, %v1287, 0.0
        %v1294 = vadd.f32 %v1262, %v1290
        %v1295 = vadd.f32 %v1263, %v1291
        %v1296 = vadd.f32 %v1264, %v1292
        %v1297 = vadd.f32 %v1265, %v1293
        %v1298 = vpack.c.bf16 %v1296, %v1294
        %v1299 = vpack.c.bf16 %v1297, %v1295
        %s1300 = scalar_lea.vmem %s181, 128
        %v1301 = vld [vmem:[%s1300] sm:$0xf]
        %v1302 = vld [vmem:[%s1300 + $0x4] sm:$0xf]
        %v1303 = vld [vmem:[%s1300 + $0x8] sm:$0xf]
        %v1304 = vld [vmem:[%s1300 + $0xc] sm:$0xf]
        %v1305 = vld [vmem:[%s1300 + $0x10] sm:$0xf]
        %v1306 = vld [vmem:[%s1300 + $0x14] sm:$0xf]
        %v1307 = vld [vmem:[%s1300 + $0x18] sm:$0xf]
        %v1308 = vld [vmem:[%s1300 + $0x1c] sm:$0xf]
        %v1309 = vld [vmem:[%s1300 + $0x20] sm:$0xf]
        %v1310 = vld [vmem:[%s1300 + $0x24] sm:$0xf]
        %v1311 = vld [vmem:[%s1300 + $0x28] sm:$0xf]
        %v1312 = vld [vmem:[%s1300 + $0x2c] sm:$0xf]
        %v1313 = vld [vmem:[%s1300 + $0x30] sm:$0xf]
        %v1314 = vld [vmem:[%s1300 + $0x34] sm:$0xf]
        %v1315 = vld [vmem:[%s1300 + $0x38] sm:$0xf]
        %v1316 = vld [vmem:[%s1300 + $0x3c] sm:$0xf]
        %v1333 = vunpack.c.l.b16 %v1301
        %v1334 = vunpack.c.l.b16 %v1302
        %v1335 = vunpack.c.l.b16 %v1303
        %v1336 = vunpack.c.l.b16 %v1304
        %v1337 = vunpack.c.l.b16 %v1305
        %v1338 = vunpack.c.l.b16 %v1306
        %v1339 = vunpack.c.l.b16 %v1307
        %v1340 = vunpack.c.l.b16 %v1308
        %v1341 = vunpack.c.l.b16 %v1309
        %v1342 = vunpack.c.l.b16 %v1310
        %v1343 = vunpack.c.l.b16 %v1311
        %v1344 = vunpack.c.l.b16 %v1312
        %v1345 = vunpack.c.l.b16 %v1313
        %v1346 = vunpack.c.l.b16 %v1314
        %v1347 = vunpack.c.l.b16 %v1315
        %v1348 = vunpack.c.l.b16 %v1316
        %v1349 = vpack.c.b16 %v1334, %v1333
        %v1350 = vpack.c.b16 %v1336, %v1335
        %v1351 = vpack.c.b16 %v1338, %v1337
        %v1352 = vpack.c.b16 %v1340, %v1339
        %v1353 = vpack.c.b16 %v1342, %v1341
        %v1354 = vpack.c.b16 %v1344, %v1343
        %v1355 = vpack.c.b16 %v1346, %v1345
        %v1356 = vpack.c.b16 %v1348, %v1347
        %v1358 = vsel %vm384, %v1349, 0
        %v1361 = vsel %vm384, %v1350, 0
        %v1364 = vsel %vm384, %v1351, 0
        %v1367 = vsel %vm384, %v1352, 0
        %v1370 = vsel %vm384, %v1353, 0
        %v1373 = vsel %vm384, %v1354, 0
        %v1376 = vsel %vm384, %v1355, 0
        %v1379 = vsel %vm384, %v1356, 0
        %1381 = vmatprep.subr.bf16.mxu0 %v1299
        %1382 = vmatpush1.bf16.msra.mxu0 %v1298
        %1383 = vmatprep.subr.bf16.mxu0 0
        %1384 = vmatpush1.bf16.msra.mxu0 0
        %1385 = vmatprep.subr.bf16.mxu0 0
        %1386 = vmatpush1.bf16.msra.mxu0 0
        %1387 = vmatprep.subr.bf16.mxu0 0
        %1388 = vmatpush1.bf16.msra.mxu0 0
        %1389 = vmatprep.subr.bf16.mxu0 0
        %1390 = vmatpush1.bf16.msra.mxu0 0
        %1391 = vmatprep.subr.bf16.mxu0 0
        %1392 = vmatpush1.bf16.msra.mxu0 0
        %1393 = vmatprep.subr.bf16.mxu0 0
        %1394 = vmatpush1.bf16.msra.mxu0 0
        %1395 = vmatprep.subr.bf16.mxu0 0
        %1396 = vmatpush1.bf16.msra.mxu0 0
        %1397 = vmatprep.subr.bf16.mxu0 0
        %1398 = vmatpush1.bf16.msra.mxu0 0
        %1399 = vmatprep.subr.bf16.mxu0 0
        %1400 = vmatpush1.bf16.msra.mxu0 0
        %1401 = vmatprep.subr.bf16.mxu0 0
        %1402 = vmatpush1.bf16.msra.mxu0 0
        %1403 = vmatprep.subr.bf16.mxu0 0
        %1404 = vmatpush1.bf16.msra.mxu0 0
        %1405 = vmatprep.subr.bf16.mxu0 0
        %1406 = vmatpush1.bf16.msra.mxu0 0
        %1407 = vmatprep.subr.bf16.mxu0 0
        %1408 = vmatpush1.bf16.msra.mxu0 0
        %1409 = vmatprep.subr.bf16.mxu0 0
        %1410 = vmatpush1.bf16.msra.mxu0 0
        %1411 = vmatprep.subr.bf16.mxu0 0
        %1412 = vmatpush1.bf16.msra.mxu0 0
        %1413 = vmatprep.mubr.bf16.mxu0 0
        %1414 = vmatmul.mubr.bf16.gmra.mrb[0].mxu0 %v1358
        %v1415 = vpop.f32.mrb[0].mxu0
        %v1416 = vadd.f32 0.0, %v1415
        %v1417 = vpop.f32.mrb[0].mxu0
        %v1418 = vadd.f32 0.0, %v1417
        %v1419 = vpop.f32.mrb[0].mxu0
        %v1420 = vadd.f32 0.0, %v1419
        %v1421 = vpop.f32.mrb[0].mxu0
        %v1422 = vadd.f32 0.0, %v1421
        %1423 = vmatprep.mubr.bf16.mxu0 0
        %1424 = vmatmul.mubr.bf16.gmra.mrb[0].mxu0 %v1361
        %v1425 = vpop.f32.mrb[0].mxu0
        %v1426 = vadd.f32 0.0, %v1425
        %v1427 = vpop.f32.mrb[0].mxu0
        %v1428 = vadd.f32 0.0, %v1427
        %v1429 = vpop.f32.mrb[0].mxu0
        %v1430 = vadd.f32 0.0, %v1429
        %v1431 = vpop.f32.mrb[0].mxu0
        %v1432 = vadd.f32 0.0, %v1431
        %1433 = vmatprep.mubr.bf16.mxu0 0
        %1434 = vmatmul.mubr.bf16.gmra.mrb[0].mxu0 %v1364
        %v1435 = vpop.f32.mrb[0].mxu0
        %v1436 = vadd.f32 0.0, %v1435
        %v1437 = vpop.f32.mrb[0].mxu0
        %v1438 = vadd.f32 0.0, %v1437
        %v1439 = vpop.f32.mrb[0].mxu0
        %v1440 = vadd.f32 0.0, %v1439
        %v1441 = vpop.f32.mrb[0].mxu0
        %v1442 = vadd.f32 0.0, %v1441
        %1443 = vmatprep.mubr.bf16.mxu0 0
        %1444 = vmatmul.mubr.bf16.gmra.mrb[0].mxu0 %v1367
        %v1445 = vpop.f32.mrb[0].mxu0
        %v1446 = vadd.f32 0.0, %v1445
        %v1447 = vpop.f32.mrb[0].mxu0
        %v1448 = vadd.f32 0.0, %v1447
        %v1449 = vpop.f32.mrb[0].mxu0
        %v1450 = vadd.f32 0.0, %v1449
        %v1451 = vpop.f32.mrb[0].mxu0
        %v1452 = vadd.f32 0.0, %v1451
        %1453 = vmatprep.mubr.bf16.mxu0 0
        %1454 = vmatmul.mubr.bf16.gmra.mrb[0].mxu0 %v1370
        %v1455 = vpop.f32.mrb[0].mxu0
        %v1456 = vadd.f32 0.0, %v1455
        %v1457 = vpop.f32.mrb[0].mxu0
        %v1458 = vadd.f32 0.0, %v1457
        %v1459 = vpop.f32.mrb[0].mxu0
        %v1460 = vadd.f32 0.0, %v1459
        %v1461 = vpop.f32.mrb[0].mxu0
        %v1462 = vadd.f32 0.0, %v1461
        %1463 = vmatprep.mubr.bf16.mxu0 0
        %1464 = vmatmul.mubr.bf16.gmra.mrb[0].mxu0 %v1373
        %v1465 = vpop.f32.mrb[0].mxu0
        %v1466 = vadd.f32 0.0, %v1465
        %v1467 = vpop.f32.mrb[0].mxu0
        %v1468 = vadd.f32 0.0, %v1467
        %v1469 = vpop.f32.mrb[0].mxu0
        %v1470 = vadd.f32 0.0, %v1469
        %v1471 = vpop.f32.mrb[0].mxu0
        %v1472 = vadd.f32 0.0, %v1471
        %1473 = vmatprep.mubr.bf16.mxu0 0
        %1474 = vmatmul.mubr.bf16.gmra.mrb[0].mxu0 %v1376
        %v1475 = vpop.f32.mrb[0].mxu0
        %v1476 = vadd.f32 0.0, %v1475
        %v1477 = vpop.f32.mrb[0].mxu0
        %v1478 = vadd.f32 0.0, %v1477
        %v1479 = vpop.f32.mrb[0].mxu0
        %v1480 = vadd.f32 0.0, %v1479
        %v1481 = vpop.f32.mrb[0].mxu0
        %v1482 = vadd.f32 0.0, %v1481
        %1483 = vmatprep.mubr.bf16.mxu0 0
        %1484 = vmatmul.mubr.bf16.gmra.mrb[0].mxu0 %v1379
        %v1485 = vpop.f32.mrb[0].mxu0
        %v1486 = vadd.f32 0.0, %v1485
        %v1487 = vpop.f32.mrb[0].mxu0
        %v1488 = vadd.f32 0.0, %v1487
        %v1489 = vpop.f32.mrb[0].mxu0
        %v1490 = vadd.f32 0.0, %v1489
        %v1491 = vpop.f32.mrb[0].mxu0
        %v1492 = vadd.f32 0.0, %v1491
        %1493 = vdwg.mxu0
        %v1494 = vmul.f32 %v1416, %v1234
        %v1495 = vmul.f32 %v1418, %v1235
        %v1496 = vmul.f32 %v1420, %v1236
        %v1497 = vmul.f32 %v1422, %v1237
        %v1498 = vmul.f32 %v1426, %v1234
        %v1499 = vmul.f32 %v1428, %v1235
        %v1500 = vmul.f32 %v1430, %v1236
        %v1501 = vmul.f32 %v1432, %v1237
        %v1502 = vmul.f32 %v1436, %v1234
        %v1503 = vmul.f32 %v1438, %v1235
        %v1504 = vmul.f32 %v1440, %v1236
        %v1505 = vmul.f32 %v1442, %v1237
        %v1506 = vmul.f32 %v1446, %v1234
        %v1507 = vmul.f32 %v1448, %v1235
        %v1508 = vmul.f32 %v1450, %v1236
        %v1509 = vmul.f32 %v1452, %v1237
        %v1510 = vmul.f32 %v1456, %v1234
        %v1511 = vmul.f32 %v1458, %v1235
        %v1512 = vmul.f32 %v1460, %v1236
        %v1513 = vmul.f32 %v1462, %v1237
        %v1514 = vmul.f32 %v1466, %v1234
        %v1515 = vmul.f32 %v1468, %v1235
        %v1516 = vmul.f32 %v1470, %v1236
        %v1517 = vmul.f32 %v1472, %v1237
        %v1518 = vmul.f32 %v1476, %v1234
        %v1519 = vmul.f32 %v1478, %v1235
        %v1520 = vmul.f32 %v1480, %v1236
        %v1521 = vmul.f32 %v1482, %v1237
        %v1522 = vmul.f32 %v1486, %v1234
        %v1523 = vmul.f32 %v1488, %v1235
        %v1524 = vmul.f32 %v1490, %v1236
        %v1525 = vmul.f32 %v1492, %v1237
        %v1526 = vadd.f32 %v1494, %v1496
        %v1527 = vrot.slane %v1526, 4
        %v1528 = vadd.f32 %v1526, %v1527
        %v1529 = vrot.slane %v1528, 2
        %v1530 = vadd.f32 %v1528, %v1529
        %v1531 = vrot.slane %v1530, 1
        %v1532 = vadd.f32 %v1530, %v1531
        %v1533 = vadd.f32 %v1495, %v1497
        %v1534 = vrot.slane %v1533, 4
        %v1535 = vadd.f32 %v1533, %v1534
        %v1536 = vrot.slane %v1535, 2
        %v1537 = vadd.f32 %v1535, %v1536
        %v1538 = vrot.slane %v1537, 1
        %v1539 = vadd.f32 %v1537, %v1538
        %v1540 = vadd.f32 %v1498, %v1500
        %v1541 = vrot.slane %v1540, 4
        %v1542 = vadd.f32 %v1540, %v1541
        %v1543 = vrot.slane %v1542, 2
        %v1544 = vadd.f32 %v1542, %v1543
        %v1545 = vrot.slane %v1544, 1
        %v1546 = vadd.f32 %v1544, %v1545
        %v1547 = vadd.f32 %v1499, %v1501
        %v1548 = vrot.slane %v1547, 4
        %v1549 = vadd.f32 %v1547, %v1548
        %v1550 = vrot.slane %v1549, 2
        %v1551 = vadd.f32 %v1549, %v1550
        %v1552 = vrot.slane %v1551, 1
        %v1553 = vadd.f32 %v1551, %v1552
        %v1554 = vadd.f32 %v1502, %v1504
        %v1555 = vrot.slane %v1554, 4
        %v1556 = vadd.f32 %v1554, %v1555
        %v1557 = vrot.slane %v1556, 2
        %v1558 = vadd.f32 %v1556, %v1557
        %v1559 = vrot.slane %v1558, 1
        %v1560 = vadd.f32 %v1558, %v1559
        %v1561 = vadd.f32 %v1503, %v1505
        %v1562 = vrot.slane %v1561, 4
        %v1563 = vadd.f32 %v1561, %v1562
        %v1564 = vrot.slane %v1563, 2
        %v1565 = vadd.f32 %v1563, %v1564
        %v1566 = vrot.slane %v1565, 1
        %v1567 = vadd.f32 %v1565, %v1566
        %v1568 = vadd.f32 %v1506, %v1508
        %v1569 = vrot.slane %v1568, 4
        %v1570 = vadd.f32 %v1568, %v1569
        %v1571 = vrot.slane %v1570, 2
        %v1572 = vadd.f32 %v1570, %v1571
        %v1573 = vrot.slane %v1572, 1
        %v1574 = vadd.f32 %v1572, %v1573
        %v1575 = vadd.f32 %v1507, %v1509
        %v1576 = vrot.slane %v1575, 4
        %v1577 = vadd.f32 %v1575, %v1576
        %v1578 = vrot.slane %v1577, 2
        %v1579 = vadd.f32 %v1577, %v1578
        %v1580 = vrot.slane %v1579, 1
        %v1581 = vadd.f32 %v1579, %v1580
        %v1582 = vadd.f32 %v1510, %v1512
        %v1583 = vrot.slane %v1582, 4
        %v1584 = vadd.f32 %v1582, %v1583
        %v1585 = vrot.slane %v1584, 2
        %v1586 = vadd.f32 %v1584, %v1585
        %v1587 = vrot.slane %v1586, 1
        %v1588 = vadd.f32 %v1586, %v1587
        %v1589 = vadd.f32 %v1511, %v1513
        %v1590 = vrot.slane %v1589, 4
        %v1591 = vadd.f32 %v1589, %v1590
        %v1592 = vrot.slane %v1591, 2
        %v1593 = vadd.f32 %v1591, %v1592
        %v1594 = vrot.slane %v1593, 1
        %v1595 = vadd.f32 %v1593, %v1594
        %v1596 = vadd.f32 %v1514, %v1516
        %v1597 = vrot.slane %v1596, 4
        %v1598 = vadd.f32 %v1596, %v1597
        %v1599 = vrot.slane %v1598, 2
        %v1600 = vadd.f32 %v1598, %v1599
        %v1601 = vrot.slane %v1600, 1
        %v1602 = vadd.f32 %v1600, %v1601
        %v1603 = vadd.f32 %v1515, %v1517
        %v1604 = vrot.slane %v1603, 4
        %v1605 = vadd.f32 %v1603, %v1604
        %v1606 = vrot.slane %v1605, 2
        %v1607 = vadd.f32 %v1605, %v1606
        %v1608 = vrot.slane %v1607, 1
        %v1609 = vadd.f32 %v1607, %v1608
        %v1610 = vadd.f32 %v1518, %v1520
        %v1611 = vrot.slane %v1610, 4
        %v1612 = vadd.f32 %v1610, %v1611
        %v1613 = vrot.slane %v1612, 2
        %v1614 = vadd.f32 %v1612, %v1613
        %v1615 = vrot.slane %v1614, 1
        %v1616 = vadd.f32 %v1614, %v1615
        %v1617 = vadd.f32 %v1519, %v1521
        %v1618 = vrot.slane %v1617, 4
        %v1619 = vadd.f32 %v1617, %v1618
        %v1620 = vrot.slane %v1619, 2
        %v1621 = vadd.f32 %v1619, %v1620
        %v1622 = vrot.slane %v1621, 1
        %v1623 = vadd.f32 %v1621, %v1622
        %v1624 = vadd.f32 %v1522, %v1524
        %v1625 = vrot.slane %v1624, 4
        %v1626 = vadd.f32 %v1624, %v1625
        %v1627 = vrot.slane %v1626, 2
        %v1628 = vadd.f32 %v1626, %v1627
        %v1629 = vrot.slane %v1628, 1
        %v1630 = vadd.f32 %v1628, %v1629
        %v1631 = vadd.f32 %v1523, %v1525
        %v1632 = vrot.slane %v1631, 4
        %v1633 = vadd.f32 %v1631, %v1632
        %v1634 = vrot.slane %v1633, 2
        %v1635 = vadd.f32 %v1633, %v1634
        %v1636 = vrot.slane %v1635, 1
        %v1637 = vadd.f32 %v1635, %v1636
        %v1638 = vadd.f32 %v1152, %v1532
        %v1639 = vadd.f32 %v1153, %v1539
        %v1640 = vadd.f32 %v1154, %v1546
        %v1641 = vadd.f32 %v1155, %v1553
        %v1642 = vadd.f32 %v1156, %v1560
        %v1643 = vadd.f32 %v1157, %v1567
        %v1644 = vadd.f32 %v1158, %v1574
        %v1645 = vadd.f32 %v1159, %v1581
        %v1646 = vadd.f32 %v1160, %v1588
        %v1647 = vadd.f32 %v1161, %v1595
        %v1648 = vadd.f32 %v1162, %v1602
        %v1649 = vadd.f32 %v1163, %v1609
        %v1650 = vadd.f32 %v1164, %v1616
        %v1651 = vadd.f32 %v1165, %v1623
        %v1652 = vadd.f32 %v1166, %v1630
        %v1653 = vadd.f32 %v1167, %v1637
        %s1654 = scalar_lea.vmem %s190, 6
        %v1655 = vld [vmem:[%s1654] ss:$8 sm:$0x3]
        %s1656 = scalar_lea.vmem %s190, 7
        %v1657 = vld [vmem:[%s1656] ss:$8 sm:$0x3]
        %v1658 = vfloor.f32 %v1655
        %v1659 = vfloor.f32 %v1657
        %v1660 = vsub.f32 %v1655, %v1658
        %v1661 = vsub.f32 %v1657, %v1659
        %v1662 = vcvt.f32.s32.to.zero.pseudo %v1658
        %v1663 = vcvt.f32.s32.to.zero.pseudo %v1659
        %v1664 = vlaneseq
        %v1665 = vshrl.u32 %v1664, 7
        %v1666 = vsub.s32 0, %v1665
        %v1667 = vrot.slane %v1662, %v1666
        %v1668 = vlaneseq
        %v1669 = vshrl.u32 %v1668, 7
        %v1670 = vsub.s32 1, %v1669
        %v1671 = vrot.slane %v1662, %v1670
        %vm1672 = vcmp.eq.s32.totalorder %v195, %v1667
        %vm1673 = vcmp.eq.s32.totalorder %v195, %v1671
        %vm1674 = vcmp.eq.s32.totalorder %v196, %v1667
        %vm1675 = vcmp.eq.s32.totalorder %v196, %v1671
        %v1676 = vsub.f32 1.0, %v1660
        %v1678 = vlaneseq
        %v1679 = vshrl.u32 %v1678, 7
        %v1680 = vsub.s32 0, %v1679
        %v1681 = vrot.slane %v1676, %v1680
        %v1682 = vlaneseq
        %v1683 = vshrl.u32 %v1682, 7
        %v1684 = vsub.s32 1, %v1683
        %v1685 = vrot.slane %v1676, %v1684
        %v1688 = vsel %vm1672, %v1681, 0.0
        %v1689 = vsel %vm1673, %v1685, 0.0
        %v1690 = vsel %vm1674, %v1681, 0.0
        %v1691 = vsel %vm1675, %v1685, 0.0
        %v1692 = vadd.s32 %v1662, 1
        %v1693 = vlaneseq
        %v1694 = vshrl.u32 %v1693, 7
        %v1695 = vsub.s32 0, %v1694
        %v1696 = vrot.slane %v1692, %v1695
        %v1697 = vlaneseq
        %v1698 = vshrl.u32 %v1697, 7
        %v1699 = vsub.s32 1, %v1698
        %v1700 = vrot.slane %v1692, %v1699
        %vm1701 = vcmp.eq.s32.totalorder %v195, %v1696
        %vm1702 = vcmp.eq.s32.totalorder %v195, %v1700
        %vm1703 = vcmp.eq.s32.totalorder %v196, %v1696
        %vm1704 = vcmp.eq.s32.totalorder %v196, %v1700
        %v1706 = vlaneseq
        %v1707 = vshrl.u32 %v1706, 7
        %v1708 = vsub.s32 0, %v1707
        %v1709 = vrot.slane %v1660, %v1708
        %v1710 = vlaneseq
        %v1711 = vshrl.u32 %v1710, 7
        %v1712 = vsub.s32 1, %v1711
        %v1713 = vrot.slane %v1660, %v1712
        %v1716 = vsel %vm1701, %v1709, 0.0
        %v1717 = vsel %vm1702, %v1713, 0.0
        %v1718 = vsel %vm1703, %v1709, 0.0
        %v1719 = vsel %vm1704, %v1713, 0.0
        %v1720 = vadd.f32 %v1688, %v1716
        %v1721 = vadd.f32 %v1689, %v1717
        %v1722 = vadd.f32 %v1690, %v1718
        %v1723 = vadd.f32 %v1691, %v1719
        %v1724 = vlaneseq
        %v1725 = vshrl.u32 %v1724, 7
        %v1726 = vsub.s32 0, %v1725
        %v1727 = vrot.slane %v1663, %v1726
        %v1728 = vlaneseq
        %v1729 = vshrl.u32 %v1728, 7
        %v1730 = vsub.s32 1, %v1729
        %v1731 = vrot.slane %v1663, %v1730
        %vm1732 = vcmp.eq.s32.totalorder %v195, %v1727
        %vm1733 = vcmp.eq.s32.totalorder %v195, %v1731
        %vm1734 = vcmp.eq.s32.totalorder %v196, %v1727
        %vm1735 = vcmp.eq.s32.totalorder %v196, %v1731
        %v1736 = vsub.f32 1.0, %v1661
        %v1738 = vlaneseq
        %v1739 = vshrl.u32 %v1738, 7
        %v1740 = vsub.s32 0, %v1739
        %v1741 = vrot.slane %v1736, %v1740
        %v1742 = vlaneseq
        %v1743 = vshrl.u32 %v1742, 7
        %v1744 = vsub.s32 1, %v1743
        %v1745 = vrot.slane %v1736, %v1744
        %v1748 = vsel %vm1732, %v1741, 0.0
        %v1749 = vsel %vm1733, %v1745, 0.0
        %v1750 = vsel %vm1734, %v1741, 0.0
        %v1751 = vsel %vm1735, %v1745, 0.0
        %v1752 = vadd.s32 %v1663, 1
        %v1753 = vlaneseq
        %v1754 = vshrl.u32 %v1753, 7
        %v1755 = vsub.s32 0, %v1754
        %v1756 = vrot.slane %v1752, %v1755
        %v1757 = vlaneseq
        %v1758 = vshrl.u32 %v1757, 7
        %v1759 = vsub.s32 1, %v1758
        %v1760 = vrot.slane %v1752, %v1759
        %vm1761 = vcmp.eq.s32.totalorder %v195, %v1756
        %vm1762 = vcmp.eq.s32.totalorder %v195, %v1760
        %vm1763 = vcmp.eq.s32.totalorder %v196, %v1756
        %vm1764 = vcmp.eq.s32.totalorder %v196, %v1760
        %v1766 = vlaneseq
        %v1767 = vshrl.u32 %v1766, 7
        %v1768 = vsub.s32 0, %v1767
        %v1769 = vrot.slane %v1661, %v1768
        %v1770 = vlaneseq
        %v1771 = vshrl.u32 %v1770, 7
        %v1772 = vsub.s32 1, %v1771
        %v1773 = vrot.slane %v1661, %v1772
        %v1776 = vsel %vm1761, %v1769, 0.0
        %v1777 = vsel %vm1762, %v1773, 0.0
        %v1778 = vsel %vm1763, %v1769, 0.0
        %v1779 = vsel %vm1764, %v1773, 0.0
        %v1780 = vadd.f32 %v1748, %v1776
        %v1781 = vadd.f32 %v1749, %v1777
        %v1782 = vadd.f32 %v1750, %v1778
        %v1783 = vadd.f32 %v1751, %v1779
        %v1784 = vpack.c.bf16 %v1782, %v1780
        %v1785 = vpack.c.bf16 %v1783, %v1781
        %s1786 = scalar_lea.vmem %s181, 192
        %v1787 = vld [vmem:[%s1786] sm:$0xf]
        %v1788 = vld [vmem:[%s1786 + $0x4] sm:$0xf]
        %v1789 = vld [vmem:[%s1786 + $0x8] sm:$0xf]
        %v1790 = vld [vmem:[%s1786 + $0xc] sm:$0xf]
        %v1791 = vld [vmem:[%s1786 + $0x10] sm:$0xf]
        %v1792 = vld [vmem:[%s1786 + $0x14] sm:$0xf]
        %v1793 = vld [vmem:[%s1786 + $0x18] sm:$0xf]
        %v1794 = vld [vmem:[%s1786 + $0x1c] sm:$0xf]
        %v1795 = vld [vmem:[%s1786 + $0x20] sm:$0xf]
        %v1796 = vld [vmem:[%s1786 + $0x24] sm:$0xf]
        %v1797 = vld [vmem:[%s1786 + $0x28] sm:$0xf]
        %v1798 = vld [vmem:[%s1786 + $0x2c] sm:$0xf]
        %v1799 = vld [vmem:[%s1786 + $0x30] sm:$0xf]
        %v1800 = vld [vmem:[%s1786 + $0x34] sm:$0xf]
        %v1801 = vld [vmem:[%s1786 + $0x38] sm:$0xf]
        %v1802 = vld [vmem:[%s1786 + $0x3c] sm:$0xf]
        %v1819 = vunpack.c.l.b16 %v1787
        %v1820 = vunpack.c.l.b16 %v1788
        %v1821 = vunpack.c.l.b16 %v1789
        %v1822 = vunpack.c.l.b16 %v1790
        %v1823 = vunpack.c.l.b16 %v1791
        %v1824 = vunpack.c.l.b16 %v1792
        %v1825 = vunpack.c.l.b16 %v1793
        %v1826 = vunpack.c.l.b16 %v1794
        %v1827 = vunpack.c.l.b16 %v1795
        %v1828 = vunpack.c.l.b16 %v1796
        %v1829 = vunpack.c.l.b16 %v1797
        %v1830 = vunpack.c.l.b16 %v1798
        %v1831 = vunpack.c.l.b16 %v1799
        %v1832 = vunpack.c.l.b16 %v1800
        %v1833 = vunpack.c.l.b16 %v1801
        %v1834 = vunpack.c.l.b16 %v1802
        %v1835 = vpack.c.b16 %v1820, %v1819
        %v1836 = vpack.c.b16 %v1822, %v1821
        %v1837 = vpack.c.b16 %v1824, %v1823
        %v1838 = vpack.c.b16 %v1826, %v1825
        %v1839 = vpack.c.b16 %v1828, %v1827
        %v1840 = vpack.c.b16 %v1830, %v1829
        %v1841 = vpack.c.b16 %v1832, %v1831
        %v1842 = vpack.c.b16 %v1834, %v1833
        %v1844 = vsel %vm384, %v1835, 0
        %v1847 = vsel %vm384, %v1836, 0
        %v1850 = vsel %vm384, %v1837, 0
        %v1853 = vsel %vm384, %v1838, 0
        %v1856 = vsel %vm384, %v1839, 0
        %v1859 = vsel %vm384, %v1840, 0
        %v1862 = vsel %vm384, %v1841, 0
        %v1865 = vsel %vm384, %v1842, 0
        %1867 = vmatprep.subr.bf16.mxu0 %v1785
        %1868 = vmatpush1.bf16.msra.mxu0 %v1784
        %1869 = vmatprep.subr.bf16.mxu0 0
        %1870 = vmatpush1.bf16.msra.mxu0 0
        %1871 = vmatprep.subr.bf16.mxu0 0
        %1872 = vmatpush1.bf16.msra.mxu0 0
        %1873 = vmatprep.subr.bf16.mxu0 0
        %1874 = vmatpush1.bf16.msra.mxu0 0
        %1875 = vmatprep.subr.bf16.mxu0 0
        %1876 = vmatpush1.bf16.msra.mxu0 0
        %1877 = vmatprep.subr.bf16.mxu0 0
        %1878 = vmatpush1.bf16.msra.mxu0 0
        %1879 = vmatprep.subr.bf16.mxu0 0
        %1880 = vmatpush1.bf16.msra.mxu0 0
        %1881 = vmatprep.subr.bf16.mxu0 0
        %1882 = vmatpush1.bf16.msra.mxu0 0
        %1883 = vmatprep.subr.bf16.mxu0 0
        %1884 = vmatpush1.bf16.msra.mxu0 0
        %1885 = vmatprep.subr.bf16.mxu0 0
        %1886 = vmatpush1.bf16.msra.mxu0 0
        %1887 = vmatprep.subr.bf16.mxu0 0
        %1888 = vmatpush1.bf16.msra.mxu0 0
        %1889 = vmatprep.subr.bf16.mxu0 0
        %1890 = vmatpush1.bf16.msra.mxu0 0
        %1891 = vmatprep.subr.bf16.mxu0 0
        %1892 = vmatpush1.bf16.msra.mxu0 0
        %1893 = vmatprep.subr.bf16.mxu0 0
        %1894 = vmatpush1.bf16.msra.mxu0 0
        %1895 = vmatprep.subr.bf16.mxu0 0
        %1896 = vmatpush1.bf16.msra.mxu0 0
        %1897 = vmatprep.subr.bf16.mxu0 0
        %1898 = vmatpush1.bf16.msra.mxu0 0
        %1899 = vmatprep.mubr.bf16.mxu0 0
        %1900 = vmatmul.mubr.bf16.gmra.mrb[0].mxu0 %v1844
        %v1901 = vpop.f32.mrb[0].mxu0
        %v1902 = vadd.f32 0.0, %v1901
        %v1903 = vpop.f32.mrb[0].mxu0
        %v1904 = vadd.f32 0.0, %v1903
        %v1905 = vpop.f32.mrb[0].mxu0
        %v1906 = vadd.f32 0.0, %v1905
        %v1907 = vpop.f32.mrb[0].mxu0
        %v1908 = vadd.f32 0.0, %v1907
        %1909 = vmatprep.mubr.bf16.mxu0 0
        %1910 = vmatmul.mubr.bf16.gmra.mrb[0].mxu0 %v1847
        %v1911 = vpop.f32.mrb[0].mxu0
        %v1912 = vadd.f32 0.0, %v1911
        %v1913 = vpop.f32.mrb[0].mxu0
        %v1914 = vadd.f32 0.0, %v1913
        %v1915 = vpop.f32.mrb[0].mxu0
        %v1916 = vadd.f32 0.0, %v1915
        %v1917 = vpop.f32.mrb[0].mxu0
        %v1918 = vadd.f32 0.0, %v1917
        %1919 = vmatprep.mubr.bf16.mxu0 0
        %1920 = vmatmul.mubr.bf16.gmra.mrb[0].mxu0 %v1850
        %v1921 = vpop.f32.mrb[0].mxu0
        %v1922 = vadd.f32 0.0, %v1921
        %v1923 = vpop.f32.mrb[0].mxu0
        %v1924 = vadd.f32 0.0, %v1923
        %v1925 = vpop.f32.mrb[0].mxu0
        %v1926 = vadd.f32 0.0, %v1925
        %v1927 = vpop.f32.mrb[0].mxu0
        %v1928 = vadd.f32 0.0, %v1927
        %1929 = vmatprep.mubr.bf16.mxu0 0
        %1930 = vmatmul.mubr.bf16.gmra.mrb[0].mxu0 %v1853
        %v1931 = vpop.f32.mrb[0].mxu0
        %v1932 = vadd.f32 0.0, %v1931
        %v1933 = vpop.f32.mrb[0].mxu0
        %v1934 = vadd.f32 0.0, %v1933
        %v1935 = vpop.f32.mrb[0].mxu0
        %v1936 = vadd.f32 0.0, %v1935
        %v1937 = vpop.f32.mrb[0].mxu0
        %v1938 = vadd.f32 0.0, %v1937
        %1939 = vmatprep.mubr.bf16.mxu0 0
        %1940 = vmatmul.mubr.bf16.gmra.mrb[0].mxu0 %v1856
        %v1941 = vpop.f32.mrb[0].mxu0
        %v1942 = vadd.f32 0.0, %v1941
        %v1943 = vpop.f32.mrb[0].mxu0
        %v1944 = vadd.f32 0.0, %v1943
        %v1945 = vpop.f32.mrb[0].mxu0
        %v1946 = vadd.f32 0.0, %v1945
        %v1947 = vpop.f32.mrb[0].mxu0
        %v1948 = vadd.f32 0.0, %v1947
        %1949 = vmatprep.mubr.bf16.mxu0 0
        %1950 = vmatmul.mubr.bf16.gmra.mrb[0].mxu0 %v1859
        %v1951 = vpop.f32.mrb[0].mxu0
        %v1952 = vadd.f32 0.0, %v1951
        %v1953 = vpop.f32.mrb[0].mxu0
        %v1954 = vadd.f32 0.0, %v1953
        %v1955 = vpop.f32.mrb[0].mxu0
        %v1956 = vadd.f32 0.0, %v1955
        %v1957 = vpop.f32.mrb[0].mxu0
        %v1958 = vadd.f32 0.0, %v1957
        %1959 = vmatprep.mubr.bf16.mxu0 0
        %1960 = vmatmul.mubr.bf16.gmra.mrb[0].mxu0 %v1862
        %v1961 = vpop.f32.mrb[0].mxu0
        %v1962 = vadd.f32 0.0, %v1961
        %v1963 = vpop.f32.mrb[0].mxu0
        %v1964 = vadd.f32 0.0, %v1963
        %v1965 = vpop.f32.mrb[0].mxu0
        %v1966 = vadd.f32 0.0, %v1965
        %v1967 = vpop.f32.mrb[0].mxu0
        %v1968 = vadd.f32 0.0, %v1967
        %1969 = vmatprep.mubr.bf16.mxu0 0
        %1970 = vmatmul.mubr.bf16.gmra.mrb[0].mxu0 %v1865
        %v1971 = vpop.f32.mrb[0].mxu0
        %v1972 = vadd.f32 0.0, %v1971
        %v1973 = vpop.f32.mrb[0].mxu0
        %v1974 = vadd.f32 0.0, %v1973
        %v1975 = vpop.f32.mrb[0].mxu0
        %v1976 = vadd.f32 0.0, %v1975
        %v1977 = vpop.f32.mrb[0].mxu0
        %v1978 = vadd.f32 0.0, %v1977
        %1979 = vdwg.mxu0
        %v1980 = vmul.f32 %v1902, %v1720
        %v1981 = vmul.f32 %v1904, %v1721
        %v1982 = vmul.f32 %v1906, %v1722
        %v1983 = vmul.f32 %v1908, %v1723
        %v1984 = vmul.f32 %v1912, %v1720
        %v1985 = vmul.f32 %v1914, %v1721
        %v1986 = vmul.f32 %v1916, %v1722
        %v1987 = vmul.f32 %v1918, %v1723
        %v1988 = vmul.f32 %v1922, %v1720
        %v1989 = vmul.f32 %v1924, %v1721
        %v1990 = vmul.f32 %v1926, %v1722
        %v1991 = vmul.f32 %v1928, %v1723
        %v1992 = vmul.f32 %v1932, %v1720
        %v1993 = vmul.f32 %v1934, %v1721
        %v1994 = vmul.f32 %v1936, %v1722
        %v1995 = vmul.f32 %v1938, %v1723
        %v1996 = vmul.f32 %v1942, %v1720
        %v1997 = vmul.f32 %v1944, %v1721
        %v1998 = vmul.f32 %v1946, %v1722
        %v1999 = vmul.f32 %v1948, %v1723
        %v2000 = vmul.f32 %v1952, %v1720
        %v2001 = vmul.f32 %v1954, %v1721
        %v2002 = vmul.f32 %v1956, %v1722
        %v2003 = vmul.f32 %v1958, %v1723
        %v2004 = vmul.f32 %v1962, %v1720
        %v2005 = vmul.f32 %v1964, %v1721
        %v2006 = vmul.f32 %v1966, %v1722
        %v2007 = vmul.f32 %v1968, %v1723
        %v2008 = vmul.f32 %v1972, %v1720
        %v2009 = vmul.f32 %v1974, %v1721
        %v2010 = vmul.f32 %v1976, %v1722
        %v2011 = vmul.f32 %v1978, %v1723
        %v2012 = vadd.f32 %v1980, %v1982
        %v2013 = vrot.slane %v2012, 4
        %v2014 = vadd.f32 %v2012, %v2013
        %v2015 = vrot.slane %v2014, 2
        %v2016 = vadd.f32 %v2014, %v2015
        %v2017 = vrot.slane %v2016, 1
        %v2018 = vadd.f32 %v2016, %v2017
        %v2019 = vadd.f32 %v1981, %v1983
        %v2020 = vrot.slane %v2019, 4
        %v2021 = vadd.f32 %v2019, %v2020
        %v2022 = vrot.slane %v2021, 2
        %v2023 = vadd.f32 %v2021, %v2022
        %v2024 = vrot.slane %v2023, 1
        %v2025 = vadd.f32 %v2023, %v2024
        %v2026 = vadd.f32 %v1984, %v1986
        %v2027 = vrot.slane %v2026, 4
        %v2028 = vadd.f32 %v2026, %v2027
        %v2029 = vrot.slane %v2028, 2
        %v2030 = vadd.f32 %v2028, %v2029
        %v2031 = vrot.slane %v2030, 1
        %v2032 = vadd.f32 %v2030, %v2031
        %v2033 = vadd.f32 %v1985, %v1987
        %v2034 = vrot.slane %v2033, 4
        %v2035 = vadd.f32 %v2033, %v2034
        %v2036 = vrot.slane %v2035, 2
        %v2037 = vadd.f32 %v2035, %v2036
        %v2038 = vrot.slane %v2037, 1
        %v2039 = vadd.f32 %v2037, %v2038
        %v2040 = vadd.f32 %v1988, %v1990
        %v2041 = vrot.slane %v2040, 4
        %v2042 = vadd.f32 %v2040, %v2041
        %v2043 = vrot.slane %v2042, 2
        %v2044 = vadd.f32 %v2042, %v2043
        %v2045 = vrot.slane %v2044, 1
        %v2046 = vadd.f32 %v2044, %v2045
        %v2047 = vadd.f32 %v1989, %v1991
        %v2048 = vrot.slane %v2047, 4
        %v2049 = vadd.f32 %v2047, %v2048
        %v2050 = vrot.slane %v2049, 2
        %v2051 = vadd.f32 %v2049, %v2050
        %v2052 = vrot.slane %v2051, 1
        %v2053 = vadd.f32 %v2051, %v2052
        %v2054 = vadd.f32 %v1992, %v1994
        %v2055 = vrot.slane %v2054, 4
        %v2056 = vadd.f32 %v2054, %v2055
        %v2057 = vrot.slane %v2056, 2
        %v2058 = vadd.f32 %v2056, %v2057
        %v2059 = vrot.slane %v2058, 1
        %v2060 = vadd.f32 %v2058, %v2059
        %v2061 = vadd.f32 %v1993, %v1995
        %v2062 = vrot.slane %v2061, 4
        %v2063 = vadd.f32 %v2061, %v2062
        %v2064 = vrot.slane %v2063, 2
        %v2065 = vadd.f32 %v2063, %v2064
        %v2066 = vrot.slane %v2065, 1
        %v2067 = vadd.f32 %v2065, %v2066
        %v2068 = vadd.f32 %v1996, %v1998
        %v2069 = vrot.slane %v2068, 4
        %v2070 = vadd.f32 %v2068, %v2069
        %v2071 = vrot.slane %v2070, 2
        %v2072 = vadd.f32 %v2070, %v2071
        %v2073 = vrot.slane %v2072, 1
        %v2074 = vadd.f32 %v2072, %v2073
        %v2075 = vadd.f32 %v1997, %v1999
        %v2076 = vrot.slane %v2075, 4
        %v2077 = vadd.f32 %v2075, %v2076
        %v2078 = vrot.slane %v2077, 2
        %v2079 = vadd.f32 %v2077, %v2078
        %v2080 = vrot.slane %v2079, 1
        %v2081 = vadd.f32 %v2079, %v2080
        %v2082 = vadd.f32 %v2000, %v2002
        %v2083 = vrot.slane %v2082, 4
        %v2084 = vadd.f32 %v2082, %v2083
        %v2085 = vrot.slane %v2084, 2
        %v2086 = vadd.f32 %v2084, %v2085
        %v2087 = vrot.slane %v2086, 1
        %v2088 = vadd.f32 %v2086, %v2087
        %v2089 = vadd.f32 %v2001, %v2003
        %v2090 = vrot.slane %v2089, 4
        %v2091 = vadd.f32 %v2089, %v2090
        %v2092 = vrot.slane %v2091, 2
        %v2093 = vadd.f32 %v2091, %v2092
        %v2094 = vrot.slane %v2093, 1
        %v2095 = vadd.f32 %v2093, %v2094
        %v2096 = vadd.f32 %v2004, %v2006
        %v2097 = vrot.slane %v2096, 4
        %v2098 = vadd.f32 %v2096, %v2097
        %v2099 = vrot.slane %v2098, 2
        %v2100 = vadd.f32 %v2098, %v2099
        %v2101 = vrot.slane %v2100, 1
        %v2102 = vadd.f32 %v2100, %v2101
        %v2103 = vadd.f32 %v2005, %v2007
        %v2104 = vrot.slane %v2103, 4
        %v2105 = vadd.f32 %v2103, %v2104
        %v2106 = vrot.slane %v2105, 2
        %v2107 = vadd.f32 %v2105, %v2106
        %v2108 = vrot.slane %v2107, 1
        %v2109 = vadd.f32 %v2107, %v2108
        %v2110 = vadd.f32 %v2008, %v2010
        %v2111 = vrot.slane %v2110, 4
        %v2112 = vadd.f32 %v2110, %v2111
        %v2113 = vrot.slane %v2112, 2
        %v2114 = vadd.f32 %v2112, %v2113
        %v2115 = vrot.slane %v2114, 1
        %v2116 = vadd.f32 %v2114, %v2115
        %v2117 = vadd.f32 %v2009, %v2011
        %v2118 = vrot.slane %v2117, 4
        %v2119 = vadd.f32 %v2117, %v2118
        %v2120 = vrot.slane %v2119, 2
        %v2121 = vadd.f32 %v2119, %v2120
        %v2122 = vrot.slane %v2121, 1
        %v2123 = vadd.f32 %v2121, %v2122
        %v2124 = vadd.f32 %v1638, %v2018
        %v2125 = vadd.f32 %v1639, %v2025
        %v2126 = vadd.f32 %v1640, %v2032
        %v2127 = vadd.f32 %v1641, %v2039
        %v2128 = vadd.f32 %v1642, %v2046
        %v2129 = vadd.f32 %v1643, %v2053
        %v2130 = vadd.f32 %v1644, %v2060
        %v2131 = vadd.f32 %v1645, %v2067
        %v2132 = vadd.f32 %v1646, %v2074
        %v2133 = vadd.f32 %v1647, %v2081
        %v2134 = vadd.f32 %v1648, %v2088
        %v2135 = vadd.f32 %v1649, %v2095
        %v2136 = vadd.f32 %v1650, %v2102
        %v2137 = vadd.f32 %v1651, %v2109
        %v2138 = vadd.f32 %v1652, %v2116
        %v2139 = vadd.f32 %v1653, %v2123
        %s2140 = scalar_lea.vmem %s190, 16
        %v2141 = vld [vmem:[%s2140] ss:$8 sm:$0x3]
        %s2142 = scalar_lea.vmem %s190, 17
        %v2143 = vld [vmem:[%s2142] ss:$8 sm:$0x3]
        %v2144 = vfloor.f32 %v2141
        %v2145 = vfloor.f32 %v2143
        %v2146 = vsub.f32 %v2141, %v2144
        %v2147 = vsub.f32 %v2143, %v2145
        %v2148 = vcvt.f32.s32.to.zero.pseudo %v2144
        %v2149 = vcvt.f32.s32.to.zero.pseudo %v2145
        %v2150 = vlaneseq
        %v2151 = vshrl.u32 %v2150, 7
        %v2152 = vsub.s32 0, %v2151
        %v2153 = vrot.slane %v2148, %v2152
        %v2154 = vlaneseq
        %v2155 = vshrl.u32 %v2154, 7
        %v2156 = vsub.s32 1, %v2155
        %v2157 = vrot.slane %v2148, %v2156
        %vm2158 = vcmp.eq.s32.totalorder %v195, %v2153
        %vm2159 = vcmp.eq.s32.totalorder %v195, %v2157
        %vm2160 = vcmp.eq.s32.totalorder %v196, %v2153
        %vm2161 = vcmp.eq.s32.totalorder %v196, %v2157
        %v2162 = vsub.f32 1.0, %v2146
        %v2164 = vlaneseq
        %v2165 = vshrl.u32 %v2164, 7
        %v2166 = vsub.s32 0, %v2165
        %v2167 = vrot.slane %v2162, %v2166
        %v2168 = vlaneseq
        %v2169 = vshrl.u32 %v2168, 7
        %v2170 = vsub.s32 1, %v2169
        %v2171 = vrot.slane %v2162, %v2170
        %v2174 = vsel %vm2158, %v2167, 0.0
        %v2175 = vsel %vm2159, %v2171, 0.0
        %v2176 = vsel %vm2160, %v2167, 0.0
        %v2177 = vsel %vm2161, %v2171, 0.0
        %v2178 = vadd.s32 %v2148, 1
        %v2179 = vlaneseq
        %v2180 = vshrl.u32 %v2179, 7
        %v2181 = vsub.s32 0, %v2180
        %v2182 = vrot.slane %v2178, %v2181
        %v2183 = vlaneseq
        %v2184 = vshrl.u32 %v2183, 7
        %v2185 = vsub.s32 1, %v2184
        %v2186 = vrot.slane %v2178, %v2185
        %vm2187 = vcmp.eq.s32.totalorder %v195, %v2182
        %vm2188 = vcmp.eq.s32.totalorder %v195, %v2186
        %vm2189 = vcmp.eq.s32.totalorder %v196, %v2182
        %vm2190 = vcmp.eq.s32.totalorder %v196, %v2186
        %v2192 = vlaneseq
        %v2193 = vshrl.u32 %v2192, 7
        %v2194 = vsub.s32 0, %v2193
        %v2195 = vrot.slane %v2146, %v2194
        %v2196 = vlaneseq
        %v2197 = vshrl.u32 %v2196, 7
        %v2198 = vsub.s32 1, %v2197
        %v2199 = vrot.slane %v2146, %v2198
        %v2202 = vsel %vm2187, %v2195, 0.0
        %v2203 = vsel %vm2188, %v2199, 0.0
        %v2204 = vsel %vm2189, %v2195, 0.0
        %v2205 = vsel %vm2190, %v2199, 0.0
        %v2206 = vadd.f32 %v2174, %v2202
        %v2207 = vadd.f32 %v2175, %v2203
        %v2208 = vadd.f32 %v2176, %v2204
        %v2209 = vadd.f32 %v2177, %v2205
        %v2210 = vlaneseq
        %v2211 = vshrl.u32 %v2210, 7
        %v2212 = vsub.s32 0, %v2211
        %v2213 = vrot.slane %v2149, %v2212
        %v2214 = vlaneseq
        %v2215 = vshrl.u32 %v2214, 7
        %v2216 = vsub.s32 1, %v2215
        %v2217 = vrot.slane %v2149, %v2216
        %vm2218 = vcmp.eq.s32.totalorder %v195, %v2213
        %vm2219 = vcmp.eq.s32.totalorder %v195, %v2217
        %vm2220 = vcmp.eq.s32.totalorder %v196, %v2213
        %vm2221 = vcmp.eq.s32.totalorder %v196, %v2217
        %v2222 = vsub.f32 1.0, %v2147
        %v2224 = vlaneseq
        %v2225 = vshrl.u32 %v2224, 7
        %v2226 = vsub.s32 0, %v2225
        %v2227 = vrot.slane %v2222, %v2226
        %v2228 = vlaneseq
        %v2229 = vshrl.u32 %v2228, 7
        %v2230 = vsub.s32 1, %v2229
        %v2231 = vrot.slane %v2222, %v2230
        %v2234 = vsel %vm2218, %v2227, 0.0
        %v2235 = vsel %vm2219, %v2231, 0.0
        %v2236 = vsel %vm2220, %v2227, 0.0
        %v2237 = vsel %vm2221, %v2231, 0.0
        %v2238 = vadd.s32 %v2149, 1
        %v2239 = vlaneseq
        %v2240 = vshrl.u32 %v2239, 7
        %v2241 = vsub.s32 0, %v2240
        %v2242 = vrot.slane %v2238, %v2241
        %v2243 = vlaneseq
        %v2244 = vshrl.u32 %v2243, 7
        %v2245 = vsub.s32 1, %v2244
        %v2246 = vrot.slane %v2238, %v2245
        %vm2247 = vcmp.eq.s32.totalorder %v195, %v2242
        %vm2248 = vcmp.eq.s32.totalorder %v195, %v2246
        %vm2249 = vcmp.eq.s32.totalorder %v196, %v2242
        %vm2250 = vcmp.eq.s32.totalorder %v196, %v2246
        %v2252 = vlaneseq
        %v2253 = vshrl.u32 %v2252, 7
        %v2254 = vsub.s32 0, %v2253
        %v2255 = vrot.slane %v2147, %v2254
        %v2256 = vlaneseq
        %v2257 = vshrl.u32 %v2256, 7
        %v2258 = vsub.s32 1, %v2257
        %v2259 = vrot.slane %v2147, %v2258
        %v2262 = vsel %vm2247, %v2255, 0.0
        %v2263 = vsel %vm2248, %v2259, 0.0
        %v2264 = vsel %vm2249, %v2255, 0.0
        %v2265 = vsel %vm2250, %v2259, 0.0
        %v2266 = vadd.f32 %v2234, %v2262
        %v2267 = vadd.f32 %v2235, %v2263
        %v2268 = vadd.f32 %v2236, %v2264
        %v2269 = vadd.f32 %v2237, %v2265
        %v2270 = vpack.c.bf16 %v2268, %v2266
        %v2271 = vpack.c.bf16 %v2269, %v2267
        %s2272 = scalar_lea.vmem %s181, 256
        %v2273 = vld [vmem:[%s2272] sm:$0xf]
        %v2274 = vld [vmem:[%s2272 + $0x4] sm:$0xf]
        %v2275 = vld [vmem:[%s2272 + $0x8] sm:$0xf]
        %v2276 = vld [vmem:[%s2272 + $0xc] sm:$0xf]
        %v2277 = vld [vmem:[%s2272 + $0x10] sm:$0xf]
        %v2278 = vld [vmem:[%s2272 + $0x14] sm:$0xf]
        %v2279 = vld [vmem:[%s2272 + $0x18] sm:$0xf]
        %v2280 = vld [vmem:[%s2272 + $0x1c] sm:$0xf]
        %v2281 = vld [vmem:[%s2272 + $0x20] sm:$0xf]
        %v2282 = vld [vmem:[%s2272 + $0x24] sm:$0xf]
        %v2283 = vld [vmem:[%s2272 + $0x28] sm:$0xf]
        %v2284 = vld [vmem:[%s2272 + $0x2c] sm:$0xf]
        %v2285 = vld [vmem:[%s2272 + $0x30] sm:$0xf]
        %v2286 = vld [vmem:[%s2272 + $0x34] sm:$0xf]
        %v2287 = vld [vmem:[%s2272 + $0x38] sm:$0xf]
        %v2288 = vld [vmem:[%s2272 + $0x3c] sm:$0xf]
        %v2305 = vunpack.c.l.b16 %v2273
        %v2306 = vunpack.c.l.b16 %v2274
        %v2307 = vunpack.c.l.b16 %v2275
        %v2308 = vunpack.c.l.b16 %v2276
        %v2309 = vunpack.c.l.b16 %v2277
        %v2310 = vunpack.c.l.b16 %v2278
        %v2311 = vunpack.c.l.b16 %v2279
        %v2312 = vunpack.c.l.b16 %v2280
        %v2313 = vunpack.c.l.b16 %v2281
        %v2314 = vunpack.c.l.b16 %v2282
        %v2315 = vunpack.c.l.b16 %v2283
        %v2316 = vunpack.c.l.b16 %v2284
        %v2317 = vunpack.c.l.b16 %v2285
        %v2318 = vunpack.c.l.b16 %v2286
        %v2319 = vunpack.c.l.b16 %v2287
        %v2320 = vunpack.c.l.b16 %v2288
        %v2321 = vpack.c.b16 %v2306, %v2305
        %v2322 = vpack.c.b16 %v2308, %v2307
        %v2323 = vpack.c.b16 %v2310, %v2309
        %v2324 = vpack.c.b16 %v2312, %v2311
        %v2325 = vpack.c.b16 %v2314, %v2313
        %v2326 = vpack.c.b16 %v2316, %v2315
        %v2327 = vpack.c.b16 %v2318, %v2317
        %v2328 = vpack.c.b16 %v2320, %v2319
        %v2330 = vsel %vm384, %v2321, 0
        %v2333 = vsel %vm384, %v2322, 0
        %v2336 = vsel %vm384, %v2323, 0
        %v2339 = vsel %vm384, %v2324, 0
        %v2342 = vsel %vm384, %v2325, 0
        %v2345 = vsel %vm384, %v2326, 0
        %v2348 = vsel %vm384, %v2327, 0
        %v2351 = vsel %vm384, %v2328, 0
        %2353 = vmatprep.subr.bf16.mxu0 %v2271
        %2354 = vmatpush1.bf16.msra.mxu0 %v2270
        %2355 = vmatprep.subr.bf16.mxu0 0
        %2356 = vmatpush1.bf16.msra.mxu0 0
        %2357 = vmatprep.subr.bf16.mxu0 0
        %2358 = vmatpush1.bf16.msra.mxu0 0
        %2359 = vmatprep.subr.bf16.mxu0 0
        %2360 = vmatpush1.bf16.msra.mxu0 0
        %2361 = vmatprep.subr.bf16.mxu0 0
        %2362 = vmatpush1.bf16.msra.mxu0 0
        %2363 = vmatprep.subr.bf16.mxu0 0
        %2364 = vmatpush1.bf16.msra.mxu0 0
        %2365 = vmatprep.subr.bf16.mxu0 0
        %2366 = vmatpush1.bf16.msra.mxu0 0
        %2367 = vmatprep.subr.bf16.mxu0 0
        %2368 = vmatpush1.bf16.msra.mxu0 0
        %2369 = vmatprep.subr.bf16.mxu0 0
        %2370 = vmatpush1.bf16.msra.mxu0 0
        %2371 = vmatprep.subr.bf16.mxu0 0
        %2372 = vmatpush1.bf16.msra.mxu0 0
        %2373 = vmatprep.subr.bf16.mxu0 0
        %2374 = vmatpush1.bf16.msra.mxu0 0
        %2375 = vmatprep.subr.bf16.mxu0 0
        %2376 = vmatpush1.bf16.msra.mxu0 0
        %2377 = vmatprep.subr.bf16.mxu0 0
        %2378 = vmatpush1.bf16.msra.mxu0 0
        %2379 = vmatprep.subr.bf16.mxu0 0
        %2380 = vmatpush1.bf16.msra.mxu0 0
        %2381 = vmatprep.subr.bf16.mxu0 0
        %2382 = vmatpush1.bf16.msra.mxu0 0
        %2383 = vmatprep.subr.bf16.mxu0 0
        %2384 = vmatpush1.bf16.msra.mxu0 0
        %2385 = vmatprep.mubr.bf16.mxu0 0
        %2386 = vmatmul.mubr.bf16.gmra.mrb[0].mxu0 %v2330
        %v2387 = vpop.f32.mrb[0].mxu0
        %v2388 = vadd.f32 0.0, %v2387
        %v2389 = vpop.f32.mrb[0].mxu0
        %v2390 = vadd.f32 0.0, %v2389
        %v2391 = vpop.f32.mrb[0].mxu0
        %v2392 = vadd.f32 0.0, %v2391
        %v2393 = vpop.f32.mrb[0].mxu0
        %v2394 = vadd.f32 0.0, %v2393
        %2395 = vmatprep.mubr.bf16.mxu0 0
        %2396 = vmatmul.mubr.bf16.gmra.mrb[0].mxu0 %v2333
        %v2397 = vpop.f32.mrb[0].mxu0
        %v2398 = vadd.f32 0.0, %v2397
        %v2399 = vpop.f32.mrb[0].mxu0
        %v2400 = vadd.f32 0.0, %v2399
        %v2401 = vpop.f32.mrb[0].mxu0
        %v2402 = vadd.f32 0.0, %v2401
        %v2403 = vpop.f32.mrb[0].mxu0
        %v2404 = vadd.f32 0.0, %v2403
        %2405 = vmatprep.mubr.bf16.mxu0 0
        %2406 = vmatmul.mubr.bf16.gmra.mrb[0].mxu0 %v2336
        %v2407 = vpop.f32.mrb[0].mxu0
        %v2408 = vadd.f32 0.0, %v2407
        %v2409 = vpop.f32.mrb[0].mxu0
        %v2410 = vadd.f32 0.0, %v2409
        %v2411 = vpop.f32.mrb[0].mxu0
        %v2412 = vadd.f32 0.0, %v2411
        %v2413 = vpop.f32.mrb[0].mxu0
        %v2414 = vadd.f32 0.0, %v2413
        %2415 = vmatprep.mubr.bf16.mxu0 0
        %2416 = vmatmul.mubr.bf16.gmra.mrb[0].mxu0 %v2339
        %v2417 = vpop.f32.mrb[0].mxu0
        %v2418 = vadd.f32 0.0, %v2417
        %v2419 = vpop.f32.mrb[0].mxu0
        %v2420 = vadd.f32 0.0, %v2419
        %v2421 = vpop.f32.mrb[0].mxu0
        %v2422 = vadd.f32 0.0, %v2421
        %v2423 = vpop.f32.mrb[0].mxu0
        %v2424 = vadd.f32 0.0, %v2423
        %2425 = vmatprep.mubr.bf16.mxu0 0
        %2426 = vmatmul.mubr.bf16.gmra.mrb[0].mxu0 %v2342
        %v2427 = vpop.f32.mrb[0].mxu0
        %v2428 = vadd.f32 0.0, %v2427
        %v2429 = vpop.f32.mrb[0].mxu0
        %v2430 = vadd.f32 0.0, %v2429
        %v2431 = vpop.f32.mrb[0].mxu0
        %v2432 = vadd.f32 0.0, %v2431
        %v2433 = vpop.f32.mrb[0].mxu0
        %v2434 = vadd.f32 0.0, %v2433
        %2435 = vmatprep.mubr.bf16.mxu0 0
        %2436 = vmatmul.mubr.bf16.gmra.mrb[0].mxu0 %v2345
        %v2437 = vpop.f32.mrb[0].mxu0
        %v2438 = vadd.f32 0.0, %v2437
        %v2439 = vpop.f32.mrb[0].mxu0
        %v2440 = vadd.f32 0.0, %v2439
        %v2441 = vpop.f32.mrb[0].mxu0
        %v2442 = vadd.f32 0.0, %v2441
        %v2443 = vpop.f32.mrb[0].mxu0
        %v2444 = vadd.f32 0.0, %v2443
        %2445 = vmatprep.mubr.bf16.mxu0 0
        %2446 = vmatmul.mubr.bf16.gmra.mrb[0].mxu0 %v2348
        %v2447 = vpop.f32.mrb[0].mxu0
        %v2448 = vadd.f32 0.0, %v2447
        %v2449 = vpop.f32.mrb[0].mxu0
        %v2450 = vadd.f32 0.0, %v2449
        %v2451 = vpop.f32.mrb[0].mxu0
        %v2452 = vadd.f32 0.0, %v2451
        %v2453 = vpop.f32.mrb[0].mxu0
        %v2454 = vadd.f32 0.0, %v2453
        %2455 = vmatprep.mubr.bf16.mxu0 0
        %2456 = vmatmul.mubr.bf16.gmra.mrb[0].mxu0 %v2351
        %v2457 = vpop.f32.mrb[0].mxu0
        %v2458 = vadd.f32 0.0, %v2457
        %v2459 = vpop.f32.mrb[0].mxu0
        %v2460 = vadd.f32 0.0, %v2459
        %v2461 = vpop.f32.mrb[0].mxu0
        %v2462 = vadd.f32 0.0, %v2461
        %v2463 = vpop.f32.mrb[0].mxu0
        %v2464 = vadd.f32 0.0, %v2463
        %2465 = vdwg.mxu0
        %v2466 = vmul.f32 %v2388, %v2206
        %v2467 = vmul.f32 %v2390, %v2207
        %v2468 = vmul.f32 %v2392, %v2208
        %v2469 = vmul.f32 %v2394, %v2209
        %v2470 = vmul.f32 %v2398, %v2206
        %v2471 = vmul.f32 %v2400, %v2207
        %v2472 = vmul.f32 %v2402, %v2208
        %v2473 = vmul.f32 %v2404, %v2209
        %v2474 = vmul.f32 %v2408, %v2206
        %v2475 = vmul.f32 %v2410, %v2207
        %v2476 = vmul.f32 %v2412, %v2208
        %v2477 = vmul.f32 %v2414, %v2209
        %v2478 = vmul.f32 %v2418, %v2206
        %v2479 = vmul.f32 %v2420, %v2207
        %v2480 = vmul.f32 %v2422, %v2208
        %v2481 = vmul.f32 %v2424, %v2209
        %v2482 = vmul.f32 %v2428, %v2206
        %v2483 = vmul.f32 %v2430, %v2207
        %v2484 = vmul.f32 %v2432, %v2208
        %v2485 = vmul.f32 %v2434, %v2209
        %v2486 = vmul.f32 %v2438, %v2206
        %v2487 = vmul.f32 %v2440, %v2207
        %v2488 = vmul.f32 %v2442, %v2208
        %v2489 = vmul.f32 %v2444, %v2209
        %v2490 = vmul.f32 %v2448, %v2206
        %v2491 = vmul.f32 %v2450, %v2207
        %v2492 = vmul.f32 %v2452, %v2208
        %v2493 = vmul.f32 %v2454, %v2209
        %v2494 = vmul.f32 %v2458, %v2206
        %v2495 = vmul.f32 %v2460, %v2207
        %v2496 = vmul.f32 %v2462, %v2208
        %v2497 = vmul.f32 %v2464, %v2209
        %v2498 = vadd.f32 %v2466, %v2468
        %v2499 = vrot.slane %v2498, 4
        %v2500 = vadd.f32 %v2498, %v2499
        %v2501 = vrot.slane %v2500, 2
        %v2502 = vadd.f32 %v2500, %v2501
        %v2503 = vrot.slane %v2502, 1
        %v2504 = vadd.f32 %v2502, %v2503
        %v2505 = vadd.f32 %v2467, %v2469
        %v2506 = vrot.slane %v2505, 4
        %v2507 = vadd.f32 %v2505, %v2506
        %v2508 = vrot.slane %v2507, 2
        %v2509 = vadd.f32 %v2507, %v2508
        %v2510 = vrot.slane %v2509, 1
        %v2511 = vadd.f32 %v2509, %v2510
        %v2512 = vadd.f32 %v2470, %v2472
        %v2513 = vrot.slane %v2512, 4
        %v2514 = vadd.f32 %v2512, %v2513
        %v2515 = vrot.slane %v2514, 2
        %v2516 = vadd.f32 %v2514, %v2515
        %v2517 = vrot.slane %v2516, 1
        %v2518 = vadd.f32 %v2516, %v2517
        %v2519 = vadd.f32 %v2471, %v2473
        %v2520 = vrot.slane %v2519, 4
        %v2521 = vadd.f32 %v2519, %v2520
        %v2522 = vrot.slane %v2521, 2
        %v2523 = vadd.f32 %v2521, %v2522
        %v2524 = vrot.slane %v2523, 1
        %v2525 = vadd.f32 %v2523, %v2524
        %v2526 = vadd.f32 %v2474, %v2476
        %v2527 = vrot.slane %v2526, 4
        %v2528 = vadd.f32 %v2526, %v2527
        %v2529 = vrot.slane %v2528, 2
        %v2530 = vadd.f32 %v2528, %v2529
        %v2531 = vrot.slane %v2530, 1
        %v2532 = vadd.f32 %v2530, %v2531
        %v2533 = vadd.f32 %v2475, %v2477
        %v2534 = vrot.slane %v2533, 4
        %v2535 = vadd.f32 %v2533, %v2534
        %v2536 = vrot.slane %v2535, 2
        %v2537 = vadd.f32 %v2535, %v2536
        %v2538 = vrot.slane %v2537, 1
        %v2539 = vadd.f32 %v2537, %v2538
        %v2540 = vadd.f32 %v2478, %v2480
        %v2541 = vrot.slane %v2540, 4
        %v2542 = vadd.f32 %v2540, %v2541
        %v2543 = vrot.slane %v2542, 2
        %v2544 = vadd.f32 %v2542, %v2543
        %v2545 = vrot.slane %v2544, 1
        %v2546 = vadd.f32 %v2544, %v2545
        %v2547 = vadd.f32 %v2479, %v2481
        %v2548 = vrot.slane %v2547, 4
        %v2549 = vadd.f32 %v2547, %v2548
        %v2550 = vrot.slane %v2549, 2
        %v2551 = vadd.f32 %v2549, %v2550
        %v2552 = vrot.slane %v2551, 1
        %v2553 = vadd.f32 %v2551, %v2552
        %v2554 = vadd.f32 %v2482, %v2484
        %v2555 = vrot.slane %v2554, 4
        %v2556 = vadd.f32 %v2554, %v2555
        %v2557 = vrot.slane %v2556, 2
        %v2558 = vadd.f32 %v2556, %v2557
        %v2559 = vrot.slane %v2558, 1
        %v2560 = vadd.f32 %v2558, %v2559
        %v2561 = vadd.f32 %v2483, %v2485
        %v2562 = vrot.slane %v2561, 4
        %v2563 = vadd.f32 %v2561, %v2562
        %v2564 = vrot.slane %v2563, 2
        %v2565 = vadd.f32 %v2563, %v2564
        %v2566 = vrot.slane %v2565, 1
        %v2567 = vadd.f32 %v2565, %v2566
        %v2568 = vadd.f32 %v2486, %v2488
        %v2569 = vrot.slane %v2568, 4
        %v2570 = vadd.f32 %v2568, %v2569
        %v2571 = vrot.slane %v2570, 2
        %v2572 = vadd.f32 %v2570, %v2571
        %v2573 = vrot.slane %v2572, 1
        %v2574 = vadd.f32 %v2572, %v2573
        %v2575 = vadd.f32 %v2487, %v2489
        %v2576 = vrot.slane %v2575, 4
        %v2577 = vadd.f32 %v2575, %v2576
        %v2578 = vrot.slane %v2577, 2
        %v2579 = vadd.f32 %v2577, %v2578
        %v2580 = vrot.slane %v2579, 1
        %v2581 = vadd.f32 %v2579, %v2580
        %v2582 = vadd.f32 %v2490, %v2492
        %v2583 = vrot.slane %v2582, 4
        %v2584 = vadd.f32 %v2582, %v2583
        %v2585 = vrot.slane %v2584, 2
        %v2586 = vadd.f32 %v2584, %v2585
        %v2587 = vrot.slane %v2586, 1
        %v2588 = vadd.f32 %v2586, %v2587
        %v2589 = vadd.f32 %v2491, %v2493
        %v2590 = vrot.slane %v2589, 4
        %v2591 = vadd.f32 %v2589, %v2590
        %v2592 = vrot.slane %v2591, 2
        %v2593 = vadd.f32 %v2591, %v2592
        %v2594 = vrot.slane %v2593, 1
        %v2595 = vadd.f32 %v2593, %v2594
        %v2596 = vadd.f32 %v2494, %v2496
        %v2597 = vrot.slane %v2596, 4
        %v2598 = vadd.f32 %v2596, %v2597
        %v2599 = vrot.slane %v2598, 2
        %v2600 = vadd.f32 %v2598, %v2599
        %v2601 = vrot.slane %v2600, 1
        %v2602 = vadd.f32 %v2600, %v2601
        %v2603 = vadd.f32 %v2495, %v2497
        %v2604 = vrot.slane %v2603, 4
        %v2605 = vadd.f32 %v2603, %v2604
        %v2606 = vrot.slane %v2605, 2
        %v2607 = vadd.f32 %v2605, %v2606
        %v2608 = vrot.slane %v2607, 1
        %v2609 = vadd.f32 %v2607, %v2608
        %v2610 = vadd.f32 %v2124, %v2504
        %v2611 = vadd.f32 %v2125, %v2511
        %v2612 = vadd.f32 %v2126, %v2518
        %v2613 = vadd.f32 %v2127, %v2525
        %v2614 = vadd.f32 %v2128, %v2532
        %v2615 = vadd.f32 %v2129, %v2539
        %v2616 = vadd.f32 %v2130, %v2546
        %v2617 = vadd.f32 %v2131, %v2553
        %v2618 = vadd.f32 %v2132, %v2560
        %v2619 = vadd.f32 %v2133, %v2567
        %v2620 = vadd.f32 %v2134, %v2574
        %v2621 = vadd.f32 %v2135, %v2581
        %v2622 = vadd.f32 %v2136, %v2588
        %v2623 = vadd.f32 %v2137, %v2595
        %v2624 = vadd.f32 %v2138, %v2602
        %v2625 = vadd.f32 %v2139, %v2609
        %s2626 = scalar_lea.vmem %s190, 18
        %v2627 = vld [vmem:[%s2626] ss:$8 sm:$0x3]
        %s2628 = scalar_lea.vmem %s190, 19
        %v2629 = vld [vmem:[%s2628] ss:$8 sm:$0x3]
        %v2630 = vfloor.f32 %v2627
        %v2631 = vfloor.f32 %v2629
        %v2632 = vsub.f32 %v2627, %v2630
        %v2633 = vsub.f32 %v2629, %v2631
        %v2634 = vcvt.f32.s32.to.zero.pseudo %v2630
        %v2635 = vcvt.f32.s32.to.zero.pseudo %v2631
        %v2636 = vlaneseq
        %v2637 = vshrl.u32 %v2636, 7
        %v2638 = vsub.s32 0, %v2637
        %v2639 = vrot.slane %v2634, %v2638
        %v2640 = vlaneseq
        %v2641 = vshrl.u32 %v2640, 7
        %v2642 = vsub.s32 1, %v2641
        %v2643 = vrot.slane %v2634, %v2642
        %vm2644 = vcmp.eq.s32.totalorder %v195, %v2639
        %vm2645 = vcmp.eq.s32.totalorder %v195, %v2643
        %vm2646 = vcmp.eq.s32.totalorder %v196, %v2639
        %vm2647 = vcmp.eq.s32.totalorder %v196, %v2643
        %v2648 = vsub.f32 1.0, %v2632
        %v2650 = vlaneseq
        %v2651 = vshrl.u32 %v2650, 7
        %v2652 = vsub.s32 0, %v2651
        %v2653 = vrot.slane %v2648, %v2652
        %v2654 = vlaneseq
        %v2655 = vshrl.u32 %v2654, 7
        %v2656 = vsub.s32 1, %v2655
        %v2657 = vrot.slane %v2648, %v2656
        %v2660 = vsel %vm2644, %v2653, 0.0
        %v2661 = vsel %vm2645, %v2657, 0.0
        %v2662 = vsel %vm2646, %v2653, 0.0
        %v2663 = vsel %vm2647, %v2657, 0.0
        %v2664 = vadd.s32 %v2634, 1
        %v2665 = vlaneseq
        %v2666 = vshrl.u32 %v2665, 7
        %v2667 = vsub.s32 0, %v2666
        %v2668 = vrot.slane %v2664, %v2667
        %v2669 = vlaneseq
        %v2670 = vshrl.u32 %v2669, 7
        %v2671 = vsub.s32 1, %v2670
        %v2672 = vrot.slane %v2664, %v2671
        %vm2673 = vcmp.eq.s32.totalorder %v195, %v2668
        %vm2674 = vcmp.eq.s32.totalorder %v195, %v2672
        %vm2675 = vcmp.eq.s32.totalorder %v196, %v2668
        %vm2676 = vcmp.eq.s32.totalorder %v196, %v2672
        %v2678 = vlaneseq
        %v2679 = vshrl.u32 %v2678, 7
        %v2680 = vsub.s32 0, %v2679
        %v2681 = vrot.slane %v2632, %v2680
        %v2682 = vlaneseq
        %v2683 = vshrl.u32 %v2682, 7
        %v2684 = vsub.s32 1, %v2683
        %v2685 = vrot.slane %v2632, %v2684
        %v2688 = vsel %vm2673, %v2681, 0.0
        %v2689 = vsel %vm2674, %v2685, 0.0
        %v2690 = vsel %vm2675, %v2681, 0.0
        %v2691 = vsel %vm2676, %v2685, 0.0
        %v2692 = vadd.f32 %v2660, %v2688
        %v2693 = vadd.f32 %v2661, %v2689
        %v2694 = vadd.f32 %v2662, %v2690
        %v2695 = vadd.f32 %v2663, %v2691
        %v2696 = vlaneseq
        %v2697 = vshrl.u32 %v2696, 7
        %v2698 = vsub.s32 0, %v2697
        %v2699 = vrot.slane %v2635, %v2698
        %v2700 = vlaneseq
        %v2701 = vshrl.u32 %v2700, 7
        %v2702 = vsub.s32 1, %v2701
        %v2703 = vrot.slane %v2635, %v2702
        %vm2704 = vcmp.eq.s32.totalorder %v195, %v2699
        %vm2705 = vcmp.eq.s32.totalorder %v195, %v2703
        %vm2706 = vcmp.eq.s32.totalorder %v196, %v2699
        %vm2707 = vcmp.eq.s32.totalorder %v196, %v2703
        %v2708 = vsub.f32 1.0, %v2633
        %v2710 = vlaneseq
        %v2711 = vshrl.u32 %v2710, 7
        %v2712 = vsub.s32 0, %v2711
        %v2713 = vrot.slane %v2708, %v2712
        %v2714 = vlaneseq
        %v2715 = vshrl.u32 %v2714, 7
        %v2716 = vsub.s32 1, %v2715
        %v2717 = vrot.slane %v2708, %v2716
        %v2720 = vsel %vm2704, %v2713, 0.0
        %v2721 = vsel %vm2705, %v2717, 0.0
        %v2722 = vsel %vm2706, %v2713, 0.0
        %v2723 = vsel %vm2707, %v2717, 0.0
        %v2724 = vadd.s32 %v2635, 1
        %v2725 = vlaneseq
        %v2726 = vshrl.u32 %v2725, 7
        %v2727 = vsub.s32 0, %v2726
        %v2728 = vrot.slane %v2724, %v2727
        %v2729 = vlaneseq
        %v2730 = vshrl.u32 %v2729, 7
        %v2731 = vsub.s32 1, %v2730
        %v2732 = vrot.slane %v2724, %v2731
        %vm2733 = vcmp.eq.s32.totalorder %v195, %v2728
        %vm2734 = vcmp.eq.s32.totalorder %v195, %v2732
        %vm2735 = vcmp.eq.s32.totalorder %v196, %v2728
        %vm2736 = vcmp.eq.s32.totalorder %v196, %v2732
        %v2738 = vlaneseq
        %v2739 = vshrl.u32 %v2738, 7
        %v2740 = vsub.s32 0, %v2739
        %v2741 = vrot.slane %v2633, %v2740
        %v2742 = vlaneseq
        %v2743 = vshrl.u32 %v2742, 7
        %v2744 = vsub.s32 1, %v2743
        %v2745 = vrot.slane %v2633, %v2744
        %v2748 = vsel %vm2733, %v2741, 0.0
        %v2749 = vsel %vm2734, %v2745, 0.0
        %v2750 = vsel %vm2735, %v2741, 0.0
        %v2751 = vsel %vm2736, %v2745, 0.0
        %v2752 = vadd.f32 %v2720, %v2748
        %v2753 = vadd.f32 %v2721, %v2749
        %v2754 = vadd.f32 %v2722, %v2750
        %v2755 = vadd.f32 %v2723, %v2751
        %v2756 = vpack.c.bf16 %v2754, %v2752
        %v2757 = vpack.c.bf16 %v2755, %v2753
        %s2758 = scalar_lea.vmem %s181, 320
        %v2759 = vld [vmem:[%s2758] sm:$0xf]
        %v2760 = vld [vmem:[%s2758 + $0x4] sm:$0xf]
        %v2761 = vld [vmem:[%s2758 + $0x8] sm:$0xf]
        %v2762 = vld [vmem:[%s2758 + $0xc] sm:$0xf]
        %v2763 = vld [vmem:[%s2758 + $0x10] sm:$0xf]
        %v2764 = vld [vmem:[%s2758 + $0x14] sm:$0xf]
        %v2765 = vld [vmem:[%s2758 + $0x18] sm:$0xf]
        %v2766 = vld [vmem:[%s2758 + $0x1c] sm:$0xf]
        %v2767 = vld [vmem:[%s2758 + $0x20] sm:$0xf]
        %v2768 = vld [vmem:[%s2758 + $0x24] sm:$0xf]
        %v2769 = vld [vmem:[%s2758 + $0x28] sm:$0xf]
        %v2770 = vld [vmem:[%s2758 + $0x2c] sm:$0xf]
        %v2771 = vld [vmem:[%s2758 + $0x30] sm:$0xf]
        %v2772 = vld [vmem:[%s2758 + $0x34] sm:$0xf]
        %v2773 = vld [vmem:[%s2758 + $0x38] sm:$0xf]
        %v2774 = vld [vmem:[%s2758 + $0x3c] sm:$0xf]
        %v2791 = vunpack.c.l.b16 %v2759
        %v2792 = vunpack.c.l.b16 %v2760
        %v2793 = vunpack.c.l.b16 %v2761
        %v2794 = vunpack.c.l.b16 %v2762
        %v2795 = vunpack.c.l.b16 %v2763
        %v2796 = vunpack.c.l.b16 %v2764
        %v2797 = vunpack.c.l.b16 %v2765
        %v2798 = vunpack.c.l.b16 %v2766
        %v2799 = vunpack.c.l.b16 %v2767
        %v2800 = vunpack.c.l.b16 %v2768
        %v2801 = vunpack.c.l.b16 %v2769
        %v2802 = vunpack.c.l.b16 %v2770
        %v2803 = vunpack.c.l.b16 %v2771
        %v2804 = vunpack.c.l.b16 %v2772
        %v2805 = vunpack.c.l.b16 %v2773
        %v2806 = vunpack.c.l.b16 %v2774
        %v2807 = vpack.c.b16 %v2792, %v2791
        %v2808 = vpack.c.b16 %v2794, %v2793
        %v2809 = vpack.c.b16 %v2796, %v2795
        %v2810 = vpack.c.b16 %v2798, %v2797
        %v2811 = vpack.c.b16 %v2800, %v2799
        %v2812 = vpack.c.b16 %v2802, %v2801
        %v2813 = vpack.c.b16 %v2804, %v2803
        %v2814 = vpack.c.b16 %v2806, %v2805
        %v2816 = vsel %vm384, %v2807, 0
        %v2819 = vsel %vm384, %v2808, 0
        %v2822 = vsel %vm384, %v2809, 0
        %v2825 = vsel %vm384, %v2810, 0
        %v2828 = vsel %vm384, %v2811, 0
        %v2831 = vsel %vm384, %v2812, 0
        %v2834 = vsel %vm384, %v2813, 0
        %v2837 = vsel %vm384, %v2814, 0
        %2839 = vmatprep.subr.bf16.mxu0 %v2757
        %2840 = vmatpush1.bf16.msra.mxu0 %v2756
        %2841 = vmatprep.subr.bf16.mxu0 0
        %2842 = vmatpush1.bf16.msra.mxu0 0
        %2843 = vmatprep.subr.bf16.mxu0 0
        %2844 = vmatpush1.bf16.msra.mxu0 0
        %2845 = vmatprep.subr.bf16.mxu0 0
        %2846 = vmatpush1.bf16.msra.mxu0 0
        %2847 = vmatprep.subr.bf16.mxu0 0
        %2848 = vmatpush1.bf16.msra.mxu0 0
        %2849 = vmatprep.subr.bf16.mxu0 0
        %2850 = vmatpush1.bf16.msra.mxu0 0
        %2851 = vmatprep.subr.bf16.mxu0 0
        %2852 = vmatpush1.bf16.msra.mxu0 0
        %2853 = vmatprep.subr.bf16.mxu0 0
        %2854 = vmatpush1.bf16.msra.mxu0 0
        %2855 = vmatprep.subr.bf16.mxu0 0
        %2856 = vmatpush1.bf16.msra.mxu0 0
        %2857 = vmatprep.subr.bf16.mxu0 0
        %2858 = vmatpush1.bf16.msra.mxu0 0
        %2859 = vmatprep.subr.bf16.mxu0 0
        %2860 = vmatpush1.bf16.msra.mxu0 0
        %2861 = vmatprep.subr.bf16.mxu0 0
        %2862 = vmatpush1.bf16.msra.mxu0 0
        %2863 = vmatprep.subr.bf16.mxu0 0
        %2864 = vmatpush1.bf16.msra.mxu0 0
        %2865 = vmatprep.subr.bf16.mxu0 0
        %2866 = vmatpush1.bf16.msra.mxu0 0
        %2867 = vmatprep.subr.bf16.mxu0 0
        %2868 = vmatpush1.bf16.msra.mxu0 0
        %2869 = vmatprep.subr.bf16.mxu0 0
        %2870 = vmatpush1.bf16.msra.mxu0 0
        %2871 = vmatprep.mubr.bf16.mxu0 0
        %2872 = vmatmul.mubr.bf16.gmra.mrb[0].mxu0 %v2816
        %v2873 = vpop.f32.mrb[0].mxu0
        %v2874 = vadd.f32 0.0, %v2873
        %v2875 = vpop.f32.mrb[0].mxu0
        %v2876 = vadd.f32 0.0, %v2875
        %v2877 = vpop.f32.mrb[0].mxu0
        %v2878 = vadd.f32 0.0, %v2877
        %v2879 = vpop.f32.mrb[0].mxu0
        %v2880 = vadd.f32 0.0, %v2879
        %2881 = vmatprep.mubr.bf16.mxu0 0
        %2882 = vmatmul.mubr.bf16.gmra.mrb[0].mxu0 %v2819
        %v2883 = vpop.f32.mrb[0].mxu0
        %v2884 = vadd.f32 0.0, %v2883
        %v2885 = vpop.f32.mrb[0].mxu0
        %v2886 = vadd.f32 0.0, %v2885
        %v2887 = vpop.f32.mrb[0].mxu0
        %v2888 = vadd.f32 0.0, %v2887
        %v2889 = vpop.f32.mrb[0].mxu0
        %v2890 = vadd.f32 0.0, %v2889
        %2891 = vmatprep.mubr.bf16.mxu0 0
        %2892 = vmatmul.mubr.bf16.gmra.mrb[0].mxu0 %v2822
        %v2893 = vpop.f32.mrb[0].mxu0
        %v2894 = vadd.f32 0.0, %v2893
        %v2895 = vpop.f32.mrb[0].mxu0
        %v2896 = vadd.f32 0.0, %v2895
        %v2897 = vpop.f32.mrb[0].mxu0
        %v2898 = vadd.f32 0.0, %v2897
        %v2899 = vpop.f32.mrb[0].mxu0
        %v2900 = vadd.f32 0.0, %v2899
        %2901 = vmatprep.mubr.bf16.mxu0 0
        %2902 = vmatmul.mubr.bf16.gmra.mrb[0].mxu0 %v2825
        %v2903 = vpop.f32.mrb[0].mxu0
        %v2904 = vadd.f32 0.0, %v2903
        %v2905 = vpop.f32.mrb[0].mxu0
        %v2906 = vadd.f32 0.0, %v2905
        %v2907 = vpop.f32.mrb[0].mxu0
        %v2908 = vadd.f32 0.0, %v2907
        %v2909 = vpop.f32.mrb[0].mxu0
        %v2910 = vadd.f32 0.0, %v2909
        %2911 = vmatprep.mubr.bf16.mxu0 0
        %2912 = vmatmul.mubr.bf16.gmra.mrb[0].mxu0 %v2828
        %v2913 = vpop.f32.mrb[0].mxu0
        %v2914 = vadd.f32 0.0, %v2913
        %v2915 = vpop.f32.mrb[0].mxu0
        %v2916 = vadd.f32 0.0, %v2915
        %v2917 = vpop.f32.mrb[0].mxu0
        %v2918 = vadd.f32 0.0, %v2917
        %v2919 = vpop.f32.mrb[0].mxu0
        %v2920 = vadd.f32 0.0, %v2919
        %2921 = vmatprep.mubr.bf16.mxu0 0
        %2922 = vmatmul.mubr.bf16.gmra.mrb[0].mxu0 %v2831
        %v2923 = vpop.f32.mrb[0].mxu0
        %v2924 = vadd.f32 0.0, %v2923
        %v2925 = vpop.f32.mrb[0].mxu0
        %v2926 = vadd.f32 0.0, %v2925
        %v2927 = vpop.f32.mrb[0].mxu0
        %v2928 = vadd.f32 0.0, %v2927
        %v2929 = vpop.f32.mrb[0].mxu0
        %v2930 = vadd.f32 0.0, %v2929
        %2931 = vmatprep.mubr.bf16.mxu0 0
        %2932 = vmatmul.mubr.bf16.gmra.mrb[0].mxu0 %v2834
        %v2933 = vpop.f32.mrb[0].mxu0
        %v2934 = vadd.f32 0.0, %v2933
        %v2935 = vpop.f32.mrb[0].mxu0
        %v2936 = vadd.f32 0.0, %v2935
        %v2937 = vpop.f32.mrb[0].mxu0
        %v2938 = vadd.f32 0.0, %v2937
        %v2939 = vpop.f32.mrb[0].mxu0
        %v2940 = vadd.f32 0.0, %v2939
        %2941 = vmatprep.mubr.bf16.mxu0 0
        %2942 = vmatmul.mubr.bf16.gmra.mrb[0].mxu0 %v2837
        %v2943 = vpop.f32.mrb[0].mxu0
        %v2944 = vadd.f32 0.0, %v2943
        %v2945 = vpop.f32.mrb[0].mxu0
        %v2946 = vadd.f32 0.0, %v2945
        %v2947 = vpop.f32.mrb[0].mxu0
        %v2948 = vadd.f32 0.0, %v2947
        %v2949 = vpop.f32.mrb[0].mxu0
        %v2950 = vadd.f32 0.0, %v2949
        %2951 = vdwg.mxu0
        %v2952 = vmul.f32 %v2874, %v2692
        %v2953 = vmul.f32 %v2876, %v2693
        %v2954 = vmul.f32 %v2878, %v2694
        %v2955 = vmul.f32 %v2880, %v2695
        %v2956 = vmul.f32 %v2884, %v2692
        %v2957 = vmul.f32 %v2886, %v2693
        %v2958 = vmul.f32 %v2888, %v2694
        %v2959 = vmul.f32 %v2890, %v2695
        %v2960 = vmul.f32 %v2894, %v2692
        %v2961 = vmul.f32 %v2896, %v2693
        %v2962 = vmul.f32 %v2898, %v2694
        %v2963 = vmul.f32 %v2900, %v2695
        %v2964 = vmul.f32 %v2904, %v2692
        %v2965 = vmul.f32 %v2906, %v2693
        %v2966 = vmul.f32 %v2908, %v2694
        %v2967 = vmul.f32 %v2910, %v2695
        %v2968 = vmul.f32 %v2914, %v2692
        %v2969 = vmul.f32 %v2916, %v2693
        %v2970 = vmul.f32 %v2918, %v2694
        %v2971 = vmul.f32 %v2920, %v2695
        %v2972 = vmul.f32 %v2924, %v2692
        %v2973 = vmul.f32 %v2926, %v2693
        %v2974 = vmul.f32 %v2928, %v2694
        %v2975 = vmul.f32 %v2930, %v2695
        %v2976 = vmul.f32 %v2934, %v2692
        %v2977 = vmul.f32 %v2936, %v2693
        %v2978 = vmul.f32 %v2938, %v2694
        %v2979 = vmul.f32 %v2940, %v2695
        %v2980 = vmul.f32 %v2944, %v2692
        %v2981 = vmul.f32 %v2946, %v2693
        %v2982 = vmul.f32 %v2948, %v2694
        %v2983 = vmul.f32 %v2950, %v2695
        %v2984 = vadd.f32 %v2952, %v2954
        %v2985 = vrot.slane %v2984, 4
        %v2986 = vadd.f32 %v2984, %v2985
        %v2987 = vrot.slane %v2986, 2
        %v2988 = vadd.f32 %v2986, %v2987
        %v2989 = vrot.slane %v2988, 1
        %v2990 = vadd.f32 %v2988, %v2989
        %v2991 = vadd.f32 %v2953, %v2955
        %v2992 = vrot.slane %v2991, 4
        %v2993 = vadd.f32 %v2991, %v2992
        %v2994 = vrot.slane %v2993, 2
        %v2995 = vadd.f32 %v2993, %v2994
        %v2996 = vrot.slane %v2995, 1
        %v2997 = vadd.f32 %v2995, %v2996
        %v2998 = vadd.f32 %v2956, %v2958
        %v2999 = vrot.slane %v2998, 4
        %v3000 = vadd.f32 %v2998, %v2999
        %v3001 = vrot.slane %v3000, 2
        %v3002 = vadd.f32 %v3000, %v3001
        %v3003 = vrot.slane %v3002, 1
        %v3004 = vadd.f32 %v3002, %v3003
        %v3005 = vadd.f32 %v2957, %v2959
        %v3006 = vrot.slane %v3005, 4
        %v3007 = vadd.f32 %v3005, %v3006
        %v3008 = vrot.slane %v3007, 2
        %v3009 = vadd.f32 %v3007, %v3008
        %v3010 = vrot.slane %v3009, 1
        %v3011 = vadd.f32 %v3009, %v3010
        %v3012 = vadd.f32 %v2960, %v2962
        %v3013 = vrot.slane %v3012, 4
        %v3014 = vadd.f32 %v3012, %v3013
        %v3015 = vrot.slane %v3014, 2
        %v3016 = vadd.f32 %v3014, %v3015
        %v3017 = vrot.slane %v3016, 1
        %v3018 = vadd.f32 %v3016, %v3017
        %v3019 = vadd.f32 %v2961, %v2963
        %v3020 = vrot.slane %v3019, 4
        %v3021 = vadd.f32 %v3019, %v3020
        %v3022 = vrot.slane %v3021, 2
        %v3023 = vadd.f32 %v3021, %v3022
        %v3024 = vrot.slane %v3023, 1
        %v3025 = vadd.f32 %v3023, %v3024
        %v3026 = vadd.f32 %v2964, %v2966
        %v3027 = vrot.slane %v3026, 4
        %v3028 = vadd.f32 %v3026, %v3027
        %v3029 = vrot.slane %v3028, 2
        %v3030 = vadd.f32 %v3028, %v3029
        %v3031 = vrot.slane %v3030, 1
        %v3032 = vadd.f32 %v3030, %v3031
        %v3033 = vadd.f32 %v2965, %v2967
        %v3034 = vrot.slane %v3033, 4
        %v3035 = vadd.f32 %v3033, %v3034
        %v3036 = vrot.slane %v3035, 2
        %v3037 = vadd.f32 %v3035, %v3036
        %v3038 = vrot.slane %v3037, 1
        %v3039 = vadd.f32 %v3037, %v3038
        %v3040 = vadd.f32 %v2968, %v2970
        %v3041 = vrot.slane %v3040, 4
        %v3042 = vadd.f32 %v3040, %v3041
        %v3043 = vrot.slane %v3042, 2
        %v3044 = vadd.f32 %v3042, %v3043
        %v3045 = vrot.slane %v3044, 1
        %v3046 = vadd.f32 %v3044, %v3045
        %v3047 = vadd.f32 %v2969, %v2971
        %v3048 = vrot.slane %v3047, 4
        %v3049 = vadd.f32 %v3047, %v3048
        %v3050 = vrot.slane %v3049, 2
        %v3051 = vadd.f32 %v3049, %v3050
        %v3052 = vrot.slane %v3051, 1
        %v3053 = vadd.f32 %v3051, %v3052
        %v3054 = vadd.f32 %v2972, %v2974
        %v3055 = vrot.slane %v3054, 4
        %v3056 = vadd.f32 %v3054, %v3055
        %v3057 = vrot.slane %v3056, 2
        %v3058 = vadd.f32 %v3056, %v3057
        %v3059 = vrot.slane %v3058, 1
        %v3060 = vadd.f32 %v3058, %v3059
        %v3061 = vadd.f32 %v2973, %v2975
        %v3062 = vrot.slane %v3061, 4
        %v3063 = vadd.f32 %v3061, %v3062
        %v3064 = vrot.slane %v3063, 2
        %v3065 = vadd.f32 %v3063, %v3064
        %v3066 = vrot.slane %v3065, 1
        %v3067 = vadd.f32 %v3065, %v3066
        %v3068 = vadd.f32 %v2976, %v2978
        %v3069 = vrot.slane %v3068, 4
        %v3070 = vadd.f32 %v3068, %v3069
        %v3071 = vrot.slane %v3070, 2
        %v3072 = vadd.f32 %v3070, %v3071
        %v3073 = vrot.slane %v3072, 1
        %v3074 = vadd.f32 %v3072, %v3073
        %v3075 = vadd.f32 %v2977, %v2979
        %v3076 = vrot.slane %v3075, 4
        %v3077 = vadd.f32 %v3075, %v3076
        %v3078 = vrot.slane %v3077, 2
        %v3079 = vadd.f32 %v3077, %v3078
        %v3080 = vrot.slane %v3079, 1
        %v3081 = vadd.f32 %v3079, %v3080
        %v3082 = vadd.f32 %v2980, %v2982
        %v3083 = vrot.slane %v3082, 4
        %v3084 = vadd.f32 %v3082, %v3083
        %v3085 = vrot.slane %v3084, 2
        %v3086 = vadd.f32 %v3084, %v3085
        %v3087 = vrot.slane %v3086, 1
        %v3088 = vadd.f32 %v3086, %v3087
        %v3089 = vadd.f32 %v2981, %v2983
        %v3090 = vrot.slane %v3089, 4
        %v3091 = vadd.f32 %v3089, %v3090
        %v3092 = vrot.slane %v3091, 2
        %v3093 = vadd.f32 %v3091, %v3092
        %v3094 = vrot.slane %v3093, 1
        %v3095 = vadd.f32 %v3093, %v3094
        %v3096 = vadd.f32 %v2610, %v2990
        %v3097 = vadd.f32 %v2611, %v2997
        %v3098 = vadd.f32 %v2612, %v3004
        %v3099 = vadd.f32 %v2613, %v3011
        %v3100 = vadd.f32 %v2614, %v3018
        %v3101 = vadd.f32 %v2615, %v3025
        %v3102 = vadd.f32 %v2616, %v3032
        %v3103 = vadd.f32 %v2617, %v3039
        %v3104 = vadd.f32 %v2618, %v3046
        %v3105 = vadd.f32 %v2619, %v3053
        %v3106 = vadd.f32 %v2620, %v3060
        %v3107 = vadd.f32 %v2621, %v3067
        %v3108 = vadd.f32 %v2622, %v3074
        %v3109 = vadd.f32 %v2623, %v3081
        %v3110 = vadd.f32 %v2624, %v3088
        %v3111 = vadd.f32 %v2625, %v3095
        %s3112 = scalar_lea.vmem %s190, 20
        %v3113 = vld [vmem:[%s3112] ss:$8 sm:$0x3]
        %s3114 = scalar_lea.vmem %s190, 21
        %v3115 = vld [vmem:[%s3114] ss:$8 sm:$0x3]
        %v3116 = vfloor.f32 %v3113
        %v3117 = vfloor.f32 %v3115
        %v3118 = vsub.f32 %v3113, %v3116
        %v3119 = vsub.f32 %v3115, %v3117
        %v3120 = vcvt.f32.s32.to.zero.pseudo %v3116
        %v3121 = vcvt.f32.s32.to.zero.pseudo %v3117
        %v3122 = vlaneseq
        %v3123 = vshrl.u32 %v3122, 7
        %v3124 = vsub.s32 0, %v3123
        %v3125 = vrot.slane %v3120, %v3124
        %v3126 = vlaneseq
        %v3127 = vshrl.u32 %v3126, 7
        %v3128 = vsub.s32 1, %v3127
        %v3129 = vrot.slane %v3120, %v3128
        %vm3130 = vcmp.eq.s32.totalorder %v195, %v3125
        %vm3131 = vcmp.eq.s32.totalorder %v195, %v3129
        %vm3132 = vcmp.eq.s32.totalorder %v196, %v3125
        %vm3133 = vcmp.eq.s32.totalorder %v196, %v3129
        %v3134 = vsub.f32 1.0, %v3118
        %v3136 = vlaneseq
        %v3137 = vshrl.u32 %v3136, 7
        %v3138 = vsub.s32 0, %v3137
        %v3139 = vrot.slane %v3134, %v3138
        %v3140 = vlaneseq
        %v3141 = vshrl.u32 %v3140, 7
        %v3142 = vsub.s32 1, %v3141
        %v3143 = vrot.slane %v3134, %v3142
        %v3146 = vsel %vm3130, %v3139, 0.0
        %v3147 = vsel %vm3131, %v3143, 0.0
        %v3148 = vsel %vm3132, %v3139, 0.0
        %v3149 = vsel %vm3133, %v3143, 0.0
        %v3150 = vadd.s32 %v3120, 1
        %v3151 = vlaneseq
        %v3152 = vshrl.u32 %v3151, 7
        %v3153 = vsub.s32 0, %v3152
        %v3154 = vrot.slane %v3150, %v3153
        %v3155 = vlaneseq
        %v3156 = vshrl.u32 %v3155, 7
        %v3157 = vsub.s32 1, %v3156
        %v3158 = vrot.slane %v3150, %v3157
        %vm3159 = vcmp.eq.s32.totalorder %v195, %v3154
        %vm3160 = vcmp.eq.s32.totalorder %v195, %v3158
        %vm3161 = vcmp.eq.s32.totalorder %v196, %v3154
        %vm3162 = vcmp.eq.s32.totalorder %v196, %v3158
        %v3164 = vlaneseq
        %v3165 = vshrl.u32 %v3164, 7
        %v3166 = vsub.s32 0, %v3165
        %v3167 = vrot.slane %v3118, %v3166
        %v3168 = vlaneseq
        %v3169 = vshrl.u32 %v3168, 7
        %v3170 = vsub.s32 1, %v3169
        %v3171 = vrot.slane %v3118, %v3170
        %v3174 = vsel %vm3159, %v3167, 0.0
        %v3175 = vsel %vm3160, %v3171, 0.0
        %v3176 = vsel %vm3161, %v3167, 0.0
        %v3177 = vsel %vm3162, %v3171, 0.0
        %v3178 = vadd.f32 %v3146, %v3174
        %v3179 = vadd.f32 %v3147, %v3175
        %v3180 = vadd.f32 %v3148, %v3176
        %v3181 = vadd.f32 %v3149, %v3177
        %v3182 = vlaneseq
        %v3183 = vshrl.u32 %v3182, 7
        %v3184 = vsub.s32 0, %v3183
        %v3185 = vrot.slane %v3121, %v3184
        %v3186 = vlaneseq
        %v3187 = vshrl.u32 %v3186, 7
        %v3188 = vsub.s32 1, %v3187
        %v3189 = vrot.slane %v3121, %v3188
        %vm3190 = vcmp.eq.s32.totalorder %v195, %v3185
        %vm3191 = vcmp.eq.s32.totalorder %v195, %v3189
        %vm3192 = vcmp.eq.s32.totalorder %v196, %v3185
        %vm3193 = vcmp.eq.s32.totalorder %v196, %v3189
        %v3194 = vsub.f32 1.0, %v3119
        %v3196 = vlaneseq
        %v3197 = vshrl.u32 %v3196, 7
        %v3198 = vsub.s32 0, %v3197
        %v3199 = vrot.slane %v3194, %v3198
        %v3200 = vlaneseq
        %v3201 = vshrl.u32 %v3200, 7
        %v3202 = vsub.s32 1, %v3201
        %v3203 = vrot.slane %v3194, %v3202
        %v3206 = vsel %vm3190, %v3199, 0.0
        %v3207 = vsel %vm3191, %v3203, 0.0
        %v3208 = vsel %vm3192, %v3199, 0.0
        %v3209 = vsel %vm3193, %v3203, 0.0
        %v3210 = vadd.s32 %v3121, 1
        %v3211 = vlaneseq
        %v3212 = vshrl.u32 %v3211, 7
        %v3213 = vsub.s32 0, %v3212
        %v3214 = vrot.slane %v3210, %v3213
        %v3215 = vlaneseq
        %v3216 = vshrl.u32 %v3215, 7
        %v3217 = vsub.s32 1, %v3216
        %v3218 = vrot.slane %v3210, %v3217
        %vm3219 = vcmp.eq.s32.totalorder %v195, %v3214
        %vm3220 = vcmp.eq.s32.totalorder %v195, %v3218
        %vm3221 = vcmp.eq.s32.totalorder %v196, %v3214
        %vm3222 = vcmp.eq.s32.totalorder %v196, %v3218
        %v3224 = vlaneseq
        %v3225 = vshrl.u32 %v3224, 7
        %v3226 = vsub.s32 0, %v3225
        %v3227 = vrot.slane %v3119, %v3226
        %v3228 = vlaneseq
        %v3229 = vshrl.u32 %v3228, 7
        %v3230 = vsub.s32 1, %v3229
        %v3231 = vrot.slane %v3119, %v3230
        %v3234 = vsel %vm3219, %v3227, 0.0
        %v3235 = vsel %vm3220, %v3231, 0.0
        %v3236 = vsel %vm3221, %v3227, 0.0
        %v3237 = vsel %vm3222, %v3231, 0.0
        %v3238 = vadd.f32 %v3206, %v3234
        %v3239 = vadd.f32 %v3207, %v3235
        %v3240 = vadd.f32 %v3208, %v3236
        %v3241 = vadd.f32 %v3209, %v3237
        %v3242 = vpack.c.bf16 %v3240, %v3238
        %v3243 = vpack.c.bf16 %v3241, %v3239
        %s3244 = scalar_lea.vmem %s181, 384
        %v3245 = vld [vmem:[%s3244] sm:$0xf]
        %v3246 = vld [vmem:[%s3244 + $0x4] sm:$0xf]
        %v3247 = vld [vmem:[%s3244 + $0x8] sm:$0xf]
        %v3248 = vld [vmem:[%s3244 + $0xc] sm:$0xf]
        %v3249 = vld [vmem:[%s3244 + $0x10] sm:$0xf]
        %v3250 = vld [vmem:[%s3244 + $0x14] sm:$0xf]
        %v3251 = vld [vmem:[%s3244 + $0x18] sm:$0xf]
        %v3252 = vld [vmem:[%s3244 + $0x1c] sm:$0xf]
        %v3253 = vld [vmem:[%s3244 + $0x20] sm:$0xf]
        %v3254 = vld [vmem:[%s3244 + $0x24] sm:$0xf]
        %v3255 = vld [vmem:[%s3244 + $0x28] sm:$0xf]
        %v3256 = vld [vmem:[%s3244 + $0x2c] sm:$0xf]
        %v3257 = vld [vmem:[%s3244 + $0x30] sm:$0xf]
        %v3258 = vld [vmem:[%s3244 + $0x34] sm:$0xf]
        %v3259 = vld [vmem:[%s3244 + $0x38] sm:$0xf]
        %v3260 = vld [vmem:[%s3244 + $0x3c] sm:$0xf]
        %v3277 = vunpack.c.l.b16 %v3245
        %v3278 = vunpack.c.l.b16 %v3246
        %v3279 = vunpack.c.l.b16 %v3247
        %v3280 = vunpack.c.l.b16 %v3248
        %v3281 = vunpack.c.l.b16 %v3249
        %v3282 = vunpack.c.l.b16 %v3250
        %v3283 = vunpack.c.l.b16 %v3251
        %v3284 = vunpack.c.l.b16 %v3252
        %v3285 = vunpack.c.l.b16 %v3253
        %v3286 = vunpack.c.l.b16 %v3254
        %v3287 = vunpack.c.l.b16 %v3255
        %v3288 = vunpack.c.l.b16 %v3256
        %v3289 = vunpack.c.l.b16 %v3257
        %v3290 = vunpack.c.l.b16 %v3258
        %v3291 = vunpack.c.l.b16 %v3259
        %v3292 = vunpack.c.l.b16 %v3260
        %v3293 = vpack.c.b16 %v3278, %v3277
        %v3294 = vpack.c.b16 %v3280, %v3279
        %v3295 = vpack.c.b16 %v3282, %v3281
        %v3296 = vpack.c.b16 %v3284, %v3283
        %v3297 = vpack.c.b16 %v3286, %v3285
        %v3298 = vpack.c.b16 %v3288, %v3287
        %v3299 = vpack.c.b16 %v3290, %v3289
        %v3300 = vpack.c.b16 %v3292, %v3291
        %v3302 = vsel %vm384, %v3293, 0
        %v3305 = vsel %vm384, %v3294, 0
        %v3308 = vsel %vm384, %v3295, 0
        %v3311 = vsel %vm384, %v3296, 0
        %v3314 = vsel %vm384, %v3297, 0
        %v3317 = vsel %vm384, %v3298, 0
        %v3320 = vsel %vm384, %v3299, 0
        %v3323 = vsel %vm384, %v3300, 0
        %3325 = vmatprep.subr.bf16.mxu0 %v3243
        %3326 = vmatpush1.bf16.msra.mxu0 %v3242
        %3327 = vmatprep.subr.bf16.mxu0 0
        %3328 = vmatpush1.bf16.msra.mxu0 0
        %3329 = vmatprep.subr.bf16.mxu0 0
        %3330 = vmatpush1.bf16.msra.mxu0 0
        %3331 = vmatprep.subr.bf16.mxu0 0
        %3332 = vmatpush1.bf16.msra.mxu0 0
        %3333 = vmatprep.subr.bf16.mxu0 0
        %3334 = vmatpush1.bf16.msra.mxu0 0
        %3335 = vmatprep.subr.bf16.mxu0 0
        %3336 = vmatpush1.bf16.msra.mxu0 0
        %3337 = vmatprep.subr.bf16.mxu0 0
        %3338 = vmatpush1.bf16.msra.mxu0 0
        %3339 = vmatprep.subr.bf16.mxu0 0
        %3340 = vmatpush1.bf16.msra.mxu0 0
        %3341 = vmatprep.subr.bf16.mxu0 0
        %3342 = vmatpush1.bf16.msra.mxu0 0
        %3343 = vmatprep.subr.bf16.mxu0 0
        %3344 = vmatpush1.bf16.msra.mxu0 0
        %3345 = vmatprep.subr.bf16.mxu0 0
        %3346 = vmatpush1.bf16.msra.mxu0 0
        %3347 = vmatprep.subr.bf16.mxu0 0
        %3348 = vmatpush1.bf16.msra.mxu0 0
        %3349 = vmatprep.subr.bf16.mxu0 0
        %3350 = vmatpush1.bf16.msra.mxu0 0
        %3351 = vmatprep.subr.bf16.mxu0 0
        %3352 = vmatpush1.bf16.msra.mxu0 0
        %3353 = vmatprep.subr.bf16.mxu0 0
        %3354 = vmatpush1.bf16.msra.mxu0 0
        %3355 = vmatprep.subr.bf16.mxu0 0
        %3356 = vmatpush1.bf16.msra.mxu0 0
        %3357 = vmatprep.mubr.bf16.mxu0 0
        %3358 = vmatmul.mubr.bf16.gmra.mrb[0].mxu0 %v3302
        %v3359 = vpop.f32.mrb[0].mxu0
        %v3360 = vadd.f32 0.0, %v3359
        %v3361 = vpop.f32.mrb[0].mxu0
        %v3362 = vadd.f32 0.0, %v3361
        %v3363 = vpop.f32.mrb[0].mxu0
        %v3364 = vadd.f32 0.0, %v3363
        %v3365 = vpop.f32.mrb[0].mxu0
        %v3366 = vadd.f32 0.0, %v3365
        %3367 = vmatprep.mubr.bf16.mxu0 0
        %3368 = vmatmul.mubr.bf16.gmra.mrb[0].mxu0 %v3305
        %v3369 = vpop.f32.mrb[0].mxu0
        %v3370 = vadd.f32 0.0, %v3369
        %v3371 = vpop.f32.mrb[0].mxu0
        %v3372 = vadd.f32 0.0, %v3371
        %v3373 = vpop.f32.mrb[0].mxu0
        %v3374 = vadd.f32 0.0, %v3373
        %v3375 = vpop.f32.mrb[0].mxu0
        %v3376 = vadd.f32 0.0, %v3375
        %3377 = vmatprep.mubr.bf16.mxu0 0
        %3378 = vmatmul.mubr.bf16.gmra.mrb[0].mxu0 %v3308
        %v3379 = vpop.f32.mrb[0].mxu0
        %v3380 = vadd.f32 0.0, %v3379
        %v3381 = vpop.f32.mrb[0].mxu0
        %v3382 = vadd.f32 0.0, %v3381
        %v3383 = vpop.f32.mrb[0].mxu0
        %v3384 = vadd.f32 0.0, %v3383
        %v3385 = vpop.f32.mrb[0].mxu0
        %v3386 = vadd.f32 0.0, %v3385
        %3387 = vmatprep.mubr.bf16.mxu0 0
        %3388 = vmatmul.mubr.bf16.gmra.mrb[0].mxu0 %v3311
        %v3389 = vpop.f32.mrb[0].mxu0
        %v3390 = vadd.f32 0.0, %v3389
        %v3391 = vpop.f32.mrb[0].mxu0
        %v3392 = vadd.f32 0.0, %v3391
        %v3393 = vpop.f32.mrb[0].mxu0
        %v3394 = vadd.f32 0.0, %v3393
        %v3395 = vpop.f32.mrb[0].mxu0
        %v3396 = vadd.f32 0.0, %v3395
        %3397 = vmatprep.mubr.bf16.mxu0 0
        %3398 = vmatmul.mubr.bf16.gmra.mrb[0].mxu0 %v3314
        %v3399 = vpop.f32.mrb[0].mxu0
        %v3400 = vadd.f32 0.0, %v3399
        %v3401 = vpop.f32.mrb[0].mxu0
        %v3402 = vadd.f32 0.0, %v3401
        %v3403 = vpop.f32.mrb[0].mxu0
        %v3404 = vadd.f32 0.0, %v3403
        %v3405 = vpop.f32.mrb[0].mxu0
        %v3406 = vadd.f32 0.0, %v3405
        %3407 = vmatprep.mubr.bf16.mxu0 0
        %3408 = vmatmul.mubr.bf16.gmra.mrb[0].mxu0 %v3317
        %v3409 = vpop.f32.mrb[0].mxu0
        %v3410 = vadd.f32 0.0, %v3409
        %v3411 = vpop.f32.mrb[0].mxu0
        %v3412 = vadd.f32 0.0, %v3411
        %v3413 = vpop.f32.mrb[0].mxu0
        %v3414 = vadd.f32 0.0, %v3413
        %v3415 = vpop.f32.mrb[0].mxu0
        %v3416 = vadd.f32 0.0, %v3415
        %3417 = vmatprep.mubr.bf16.mxu0 0
        %3418 = vmatmul.mubr.bf16.gmra.mrb[0].mxu0 %v3320
        %v3419 = vpop.f32.mrb[0].mxu0
        %v3420 = vadd.f32 0.0, %v3419
        %v3421 = vpop.f32.mrb[0].mxu0
        %v3422 = vadd.f32 0.0, %v3421
        %v3423 = vpop.f32.mrb[0].mxu0
        %v3424 = vadd.f32 0.0, %v3423
        %v3425 = vpop.f32.mrb[0].mxu0
        %v3426 = vadd.f32 0.0, %v3425
        %3427 = vmatprep.mubr.bf16.mxu0 0
        %3428 = vmatmul.mubr.bf16.gmra.mrb[0].mxu0 %v3323
        %v3429 = vpop.f32.mrb[0].mxu0
        %v3430 = vadd.f32 0.0, %v3429
        %v3431 = vpop.f32.mrb[0].mxu0
        %v3432 = vadd.f32 0.0, %v3431
        %v3433 = vpop.f32.mrb[0].mxu0
        %v3434 = vadd.f32 0.0, %v3433
        %v3435 = vpop.f32.mrb[0].mxu0
        %v3436 = vadd.f32 0.0, %v3435
        %3437 = vdwg.mxu0
        %v3438 = vmul.f32 %v3360, %v3178
        %v3439 = vmul.f32 %v3362, %v3179
        %v3440 = vmul.f32 %v3364, %v3180
        %v3441 = vmul.f32 %v3366, %v3181
        %v3442 = vmul.f32 %v3370, %v3178
        %v3443 = vmul.f32 %v3372, %v3179
        %v3444 = vmul.f32 %v3374, %v3180
        %v3445 = vmul.f32 %v3376, %v3181
        %v3446 = vmul.f32 %v3380, %v3178
        %v3447 = vmul.f32 %v3382, %v3179
        %v3448 = vmul.f32 %v3384, %v3180
        %v3449 = vmul.f32 %v3386, %v3181
        %v3450 = vmul.f32 %v3390, %v3178
        %v3451 = vmul.f32 %v3392, %v3179
        %v3452 = vmul.f32 %v3394, %v3180
        %v3453 = vmul.f32 %v3396, %v3181
        %v3454 = vmul.f32 %v3400, %v3178
        %v3455 = vmul.f32 %v3402, %v3179
        %v3456 = vmul.f32 %v3404, %v3180
        %v3457 = vmul.f32 %v3406, %v3181
        %v3458 = vmul.f32 %v3410, %v3178
        %v3459 = vmul.f32 %v3412, %v3179
        %v3460 = vmul.f32 %v3414, %v3180
        %v3461 = vmul.f32 %v3416, %v3181
        %v3462 = vmul.f32 %v3420, %v3178
        %v3463 = vmul.f32 %v3422, %v3179
        %v3464 = vmul.f32 %v3424, %v3180
        %v3465 = vmul.f32 %v3426, %v3181
        %v3466 = vmul.f32 %v3430, %v3178
        %v3467 = vmul.f32 %v3432, %v3179
        %v3468 = vmul.f32 %v3434, %v3180
        %v3469 = vmul.f32 %v3436, %v3181
        %v3470 = vadd.f32 %v3438, %v3440
        %v3471 = vrot.slane %v3470, 4
        %v3472 = vadd.f32 %v3470, %v3471
        %v3473 = vrot.slane %v3472, 2
        %v3474 = vadd.f32 %v3472, %v3473
        %v3475 = vrot.slane %v3474, 1
        %v3476 = vadd.f32 %v3474, %v3475
        %v3477 = vadd.f32 %v3439, %v3441
        %v3478 = vrot.slane %v3477, 4
        %v3479 = vadd.f32 %v3477, %v3478
        %v3480 = vrot.slane %v3479, 2
        %v3481 = vadd.f32 %v3479, %v3480
        %v3482 = vrot.slane %v3481, 1
        %v3483 = vadd.f32 %v3481, %v3482
        %v3484 = vadd.f32 %v3442, %v3444
        %v3485 = vrot.slane %v3484, 4
        %v3486 = vadd.f32 %v3484, %v3485
        %v3487 = vrot.slane %v3486, 2
        %v3488 = vadd.f32 %v3486, %v3487
        %v3489 = vrot.slane %v3488, 1
        %v3490 = vadd.f32 %v3488, %v3489
        %v3491 = vadd.f32 %v3443, %v3445
        %v3492 = vrot.slane %v3491, 4
        %v3493 = vadd.f32 %v3491, %v3492
        %v3494 = vrot.slane %v3493, 2
        %v3495 = vadd.f32 %v3493, %v3494
        %v3496 = vrot.slane %v3495, 1
        %v3497 = vadd.f32 %v3495, %v3496
        %v3498 = vadd.f32 %v3446, %v3448
        %v3499 = vrot.slane %v3498, 4
        %v3500 = vadd.f32 %v3498, %v3499
        %v3501 = vrot.slane %v3500, 2
        %v3502 = vadd.f32 %v3500, %v3501
        %v3503 = vrot.slane %v3502, 1
        %v3504 = vadd.f32 %v3502, %v3503
        %v3505 = vadd.f32 %v3447, %v3449
        %v3506 = vrot.slane %v3505, 4
        %v3507 = vadd.f32 %v3505, %v3506
        %v3508 = vrot.slane %v3507, 2
        %v3509 = vadd.f32 %v3507, %v3508
        %v3510 = vrot.slane %v3509, 1
        %v3511 = vadd.f32 %v3509, %v3510
        %v3512 = vadd.f32 %v3450, %v3452
        %v3513 = vrot.slane %v3512, 4
        %v3514 = vadd.f32 %v3512, %v3513
        %v3515 = vrot.slane %v3514, 2
        %v3516 = vadd.f32 %v3514, %v3515
        %v3517 = vrot.slane %v3516, 1
        %v3518 = vadd.f32 %v3516, %v3517
        %v3519 = vadd.f32 %v3451, %v3453
        %v3520 = vrot.slane %v3519, 4
        %v3521 = vadd.f32 %v3519, %v3520
        %v3522 = vrot.slane %v3521, 2
        %v3523 = vadd.f32 %v3521, %v3522
        %v3524 = vrot.slane %v3523, 1
        %v3525 = vadd.f32 %v3523, %v3524
        %v3526 = vadd.f32 %v3454, %v3456
        %v3527 = vrot.slane %v3526, 4
        %v3528 = vadd.f32 %v3526, %v3527
        %v3529 = vrot.slane %v3528, 2
        %v3530 = vadd.f32 %v3528, %v3529
        %v3531 = vrot.slane %v3530, 1
        %v3532 = vadd.f32 %v3530, %v3531
        %v3533 = vadd.f32 %v3455, %v3457
        %v3534 = vrot.slane %v3533, 4
        %v3535 = vadd.f32 %v3533, %v3534
        %v3536 = vrot.slane %v3535, 2
        %v3537 = vadd.f32 %v3535, %v3536
        %v3538 = vrot.slane %v3537, 1
        %v3539 = vadd.f32 %v3537, %v3538
        %v3540 = vadd.f32 %v3458, %v3460
        %v3541 = vrot.slane %v3540, 4
        %v3542 = vadd.f32 %v3540, %v3541
        %v3543 = vrot.slane %v3542, 2
        %v3544 = vadd.f32 %v3542, %v3543
        %v3545 = vrot.slane %v3544, 1
        %v3546 = vadd.f32 %v3544, %v3545
        %v3547 = vadd.f32 %v3459, %v3461
        %v3548 = vrot.slane %v3547, 4
        %v3549 = vadd.f32 %v3547, %v3548
        %v3550 = vrot.slane %v3549, 2
        %v3551 = vadd.f32 %v3549, %v3550
        %v3552 = vrot.slane %v3551, 1
        %v3553 = vadd.f32 %v3551, %v3552
        %v3554 = vadd.f32 %v3462, %v3464
        %v3555 = vrot.slane %v3554, 4
        %v3556 = vadd.f32 %v3554, %v3555
        %v3557 = vrot.slane %v3556, 2
        %v3558 = vadd.f32 %v3556, %v3557
        %v3559 = vrot.slane %v3558, 1
        %v3560 = vadd.f32 %v3558, %v3559
        %v3561 = vadd.f32 %v3463, %v3465
        %v3562 = vrot.slane %v3561, 4
        %v3563 = vadd.f32 %v3561, %v3562
        %v3564 = vrot.slane %v3563, 2
        %v3565 = vadd.f32 %v3563, %v3564
        %v3566 = vrot.slane %v3565, 1
        %v3567 = vadd.f32 %v3565, %v3566
        %v3568 = vadd.f32 %v3466, %v3468
        %v3569 = vrot.slane %v3568, 4
        %v3570 = vadd.f32 %v3568, %v3569
        %v3571 = vrot.slane %v3570, 2
        %v3572 = vadd.f32 %v3570, %v3571
        %v3573 = vrot.slane %v3572, 1
        %v3574 = vadd.f32 %v3572, %v3573
        %v3575 = vadd.f32 %v3467, %v3469
        %v3576 = vrot.slane %v3575, 4
        %v3577 = vadd.f32 %v3575, %v3576
        %v3578 = vrot.slane %v3577, 2
        %v3579 = vadd.f32 %v3577, %v3578
        %v3580 = vrot.slane %v3579, 1
        %v3581 = vadd.f32 %v3579, %v3580
        %v3582 = vadd.f32 %v3096, %v3476
        %v3583 = vadd.f32 %v3097, %v3483
        %v3584 = vadd.f32 %v3098, %v3490
        %v3585 = vadd.f32 %v3099, %v3497
        %v3586 = vadd.f32 %v3100, %v3504
        %v3587 = vadd.f32 %v3101, %v3511
        %v3588 = vadd.f32 %v3102, %v3518
        %v3589 = vadd.f32 %v3103, %v3525
        %v3590 = vadd.f32 %v3104, %v3532
        %v3591 = vadd.f32 %v3105, %v3539
        %v3592 = vadd.f32 %v3106, %v3546
        %v3593 = vadd.f32 %v3107, %v3553
        %v3594 = vadd.f32 %v3108, %v3560
        %v3595 = vadd.f32 %v3109, %v3567
        %v3596 = vadd.f32 %v3110, %v3574
        %v3597 = vadd.f32 %v3111, %v3581
        %s3598 = scalar_lea.vmem %s190, 22
        %v3599 = vld [vmem:[%s3598] ss:$8 sm:$0x3]
        %s3600 = scalar_lea.vmem %s190, 23
        %v3601 = vld [vmem:[%s3600] ss:$8 sm:$0x3]
        %v3602 = vfloor.f32 %v3599
        %v3603 = vfloor.f32 %v3601
        %v3604 = vsub.f32 %v3599, %v3602
        %v3605 = vsub.f32 %v3601, %v3603
        %v3606 = vcvt.f32.s32.to.zero.pseudo %v3602
        %v3607 = vcvt.f32.s32.to.zero.pseudo %v3603
        %v3608 = vlaneseq
        %v3609 = vshrl.u32 %v3608, 7
        %v3610 = vsub.s32 0, %v3609
        %v3611 = vrot.slane %v3606, %v3610
        %v3612 = vlaneseq
        %v3613 = vshrl.u32 %v3612, 7
        %v3614 = vsub.s32 1, %v3613
        %v3615 = vrot.slane %v3606, %v3614
        %vm3616 = vcmp.eq.s32.totalorder %v195, %v3611
        %vm3617 = vcmp.eq.s32.totalorder %v195, %v3615
        %vm3618 = vcmp.eq.s32.totalorder %v196, %v3611
        %vm3619 = vcmp.eq.s32.totalorder %v196, %v3615
        %v3620 = vsub.f32 1.0, %v3604
        %v3622 = vlaneseq
        %v3623 = vshrl.u32 %v3622, 7
        %v3624 = vsub.s32 0, %v3623
        %v3625 = vrot.slane %v3620, %v3624
        %v3626 = vlaneseq
        %v3627 = vshrl.u32 %v3626, 7
        %v3628 = vsub.s32 1, %v3627
        %v3629 = vrot.slane %v3620, %v3628
        %v3632 = vsel %vm3616, %v3625, 0.0
        %v3633 = vsel %vm3617, %v3629, 0.0
        %v3634 = vsel %vm3618, %v3625, 0.0
        %v3635 = vsel %vm3619, %v3629, 0.0
        %v3636 = vadd.s32 %v3606, 1
        %v3637 = vlaneseq
        %v3638 = vshrl.u32 %v3637, 7
        %v3639 = vsub.s32 0, %v3638
        %v3640 = vrot.slane %v3636, %v3639
        %v3641 = vlaneseq
        %v3642 = vshrl.u32 %v3641, 7
        %v3643 = vsub.s32 1, %v3642
        %v3644 = vrot.slane %v3636, %v3643
        %vm3645 = vcmp.eq.s32.totalorder %v195, %v3640
        %vm3646 = vcmp.eq.s32.totalorder %v195, %v3644
        %vm3647 = vcmp.eq.s32.totalorder %v196, %v3640
        %vm3648 = vcmp.eq.s32.totalorder %v196, %v3644
        %v3650 = vlaneseq
        %v3651 = vshrl.u32 %v3650, 7
        %v3652 = vsub.s32 0, %v3651
        %v3653 = vrot.slane %v3604, %v3652
        %v3654 = vlaneseq
        %v3655 = vshrl.u32 %v3654, 7
        %v3656 = vsub.s32 1, %v3655
        %v3657 = vrot.slane %v3604, %v3656
        %v3660 = vsel %vm3645, %v3653, 0.0
        %v3661 = vsel %vm3646, %v3657, 0.0
        %v3662 = vsel %vm3647, %v3653, 0.0
        %v3663 = vsel %vm3648, %v3657, 0.0
        %v3664 = vadd.f32 %v3632, %v3660
        %v3665 = vadd.f32 %v3633, %v3661
        %v3666 = vadd.f32 %v3634, %v3662
        %v3667 = vadd.f32 %v3635, %v3663
        %v3668 = vlaneseq
        %v3669 = vshrl.u32 %v3668, 7
        %v3670 = vsub.s32 0, %v3669
        %v3671 = vrot.slane %v3607, %v3670
        %v3672 = vlaneseq
        %v3673 = vshrl.u32 %v3672, 7
        %v3674 = vsub.s32 1, %v3673
        %v3675 = vrot.slane %v3607, %v3674
        %vm3676 = vcmp.eq.s32.totalorder %v195, %v3671
        %vm3677 = vcmp.eq.s32.totalorder %v195, %v3675
        %vm3678 = vcmp.eq.s32.totalorder %v196, %v3671
        %vm3679 = vcmp.eq.s32.totalorder %v196, %v3675
        %v3680 = vsub.f32 1.0, %v3605
        %v3682 = vlaneseq
        %v3683 = vshrl.u32 %v3682, 7
        %v3684 = vsub.s32 0, %v3683
        %v3685 = vrot.slane %v3680, %v3684
        %v3686 = vlaneseq
        %v3687 = vshrl.u32 %v3686, 7
        %v3688 = vsub.s32 1, %v3687
        %v3689 = vrot.slane %v3680, %v3688
        %v3692 = vsel %vm3676, %v3685, 0.0
        %v3693 = vsel %vm3677, %v3689, 0.0
        %v3694 = vsel %vm3678, %v3685, 0.0
        %v3695 = vsel %vm3679, %v3689, 0.0
        %v3696 = vadd.s32 %v3607, 1
        %v3697 = vlaneseq
        %v3698 = vshrl.u32 %v3697, 7
        %v3699 = vsub.s32 0, %v3698
        %v3700 = vrot.slane %v3696, %v3699
        %v3701 = vlaneseq
        %v3702 = vshrl.u32 %v3701, 7
        %v3703 = vsub.s32 1, %v3702
        %v3704 = vrot.slane %v3696, %v3703
        %vm3705 = vcmp.eq.s32.totalorder %v195, %v3700
        %vm3706 = vcmp.eq.s32.totalorder %v195, %v3704
        %vm3707 = vcmp.eq.s32.totalorder %v196, %v3700
        %vm3708 = vcmp.eq.s32.totalorder %v196, %v3704
        %v3710 = vlaneseq
        %v3711 = vshrl.u32 %v3710, 7
        %v3712 = vsub.s32 0, %v3711
        %v3713 = vrot.slane %v3605, %v3712
        %v3714 = vlaneseq
        %v3715 = vshrl.u32 %v3714, 7
        %v3716 = vsub.s32 1, %v3715
        %v3717 = vrot.slane %v3605, %v3716
        %v3720 = vsel %vm3705, %v3713, 0.0
        %v3721 = vsel %vm3706, %v3717, 0.0
        %v3722 = vsel %vm3707, %v3713, 0.0
        %v3723 = vsel %vm3708, %v3717, 0.0
        %v3724 = vadd.f32 %v3692, %v3720
        %v3725 = vadd.f32 %v3693, %v3721
        %v3726 = vadd.f32 %v3694, %v3722
        %v3727 = vadd.f32 %v3695, %v3723
        %v3728 = vpack.c.bf16 %v3726, %v3724
        %v3729 = vpack.c.bf16 %v3727, %v3725
        %s3730 = scalar_lea.vmem %s181, 448
        %v3731 = vld [vmem:[%s3730] sm:$0xf]
        %v3732 = vld [vmem:[%s3730 + $0x4] sm:$0xf]
        %v3733 = vld [vmem:[%s3730 + $0x8] sm:$0xf]
        %v3734 = vld [vmem:[%s3730 + $0xc] sm:$0xf]
        %v3735 = vld [vmem:[%s3730 + $0x10] sm:$0xf]
        %v3736 = vld [vmem:[%s3730 + $0x14] sm:$0xf]
        %v3737 = vld [vmem:[%s3730 + $0x18] sm:$0xf]
        %v3738 = vld [vmem:[%s3730 + $0x1c] sm:$0xf]
        %v3739 = vld [vmem:[%s3730 + $0x20] sm:$0xf]
        %v3740 = vld [vmem:[%s3730 + $0x24] sm:$0xf]
        %v3741 = vld [vmem:[%s3730 + $0x28] sm:$0xf]
        %v3742 = vld [vmem:[%s3730 + $0x2c] sm:$0xf]
        %v3743 = vld [vmem:[%s3730 + $0x30] sm:$0xf]
        %v3744 = vld [vmem:[%s3730 + $0x34] sm:$0xf]
        %v3745 = vld [vmem:[%s3730 + $0x38] sm:$0xf]
        %v3746 = vld [vmem:[%s3730 + $0x3c] sm:$0xf]
        %v3763 = vunpack.c.l.b16 %v3731
        %v3764 = vunpack.c.l.b16 %v3732
        %v3765 = vunpack.c.l.b16 %v3733
        %v3766 = vunpack.c.l.b16 %v3734
        %v3767 = vunpack.c.l.b16 %v3735
        %v3768 = vunpack.c.l.b16 %v3736
        %v3769 = vunpack.c.l.b16 %v3737
        %v3770 = vunpack.c.l.b16 %v3738
        %v3771 = vunpack.c.l.b16 %v3739
        %v3772 = vunpack.c.l.b16 %v3740
        %v3773 = vunpack.c.l.b16 %v3741
        %v3774 = vunpack.c.l.b16 %v3742
        %v3775 = vunpack.c.l.b16 %v3743
        %v3776 = vunpack.c.l.b16 %v3744
        %v3777 = vunpack.c.l.b16 %v3745
        %v3778 = vunpack.c.l.b16 %v3746
        %v3779 = vpack.c.b16 %v3764, %v3763
        %v3780 = vpack.c.b16 %v3766, %v3765
        %v3781 = vpack.c.b16 %v3768, %v3767
        %v3782 = vpack.c.b16 %v3770, %v3769
        %v3783 = vpack.c.b16 %v3772, %v3771
        %v3784 = vpack.c.b16 %v3774, %v3773
        %v3785 = vpack.c.b16 %v3776, %v3775
        %v3786 = vpack.c.b16 %v3778, %v3777
        %v3788 = vsel %vm384, %v3779, 0
        %v3791 = vsel %vm384, %v3780, 0
        %v3794 = vsel %vm384, %v3781, 0
        %v3797 = vsel %vm384, %v3782, 0
        %v3800 = vsel %vm384, %v3783, 0
        %v3803 = vsel %vm384, %v3784, 0
        %v3806 = vsel %vm384, %v3785, 0
        %v3809 = vsel %vm384, %v3786, 0
        %3811 = vmatprep.subr.bf16.mxu0 %v3729
        %3812 = vmatpush1.bf16.msra.mxu0 %v3728
        %3813 = vmatprep.subr.bf16.mxu0 0
        %3814 = vmatpush1.bf16.msra.mxu0 0
        %3815 = vmatprep.subr.bf16.mxu0 0
        %3816 = vmatpush1.bf16.msra.mxu0 0
        %3817 = vmatprep.subr.bf16.mxu0 0
        %3818 = vmatpush1.bf16.msra.mxu0 0
        %3819 = vmatprep.subr.bf16.mxu0 0
        %3820 = vmatpush1.bf16.msra.mxu0 0
        %3821 = vmatprep.subr.bf16.mxu0 0
        %3822 = vmatpush1.bf16.msra.mxu0 0
        %3823 = vmatprep.subr.bf16.mxu0 0
        %3824 = vmatpush1.bf16.msra.mxu0 0
        %3825 = vmatprep.subr.bf16.mxu0 0
        %3826 = vmatpush1.bf16.msra.mxu0 0
        %3827 = vmatprep.subr.bf16.mxu0 0
        %3828 = vmatpush1.bf16.msra.mxu0 0
        %3829 = vmatprep.subr.bf16.mxu0 0
        %3830 = vmatpush1.bf16.msra.mxu0 0
        %3831 = vmatprep.subr.bf16.mxu0 0
        %3832 = vmatpush1.bf16.msra.mxu0 0
        %3833 = vmatprep.subr.bf16.mxu0 0
        %3834 = vmatpush1.bf16.msra.mxu0 0
        %3835 = vmatprep.subr.bf16.mxu0 0
        %3836 = vmatpush1.bf16.msra.mxu0 0
        %3837 = vmatprep.subr.bf16.mxu0 0
        %3838 = vmatpush1.bf16.msra.mxu0 0
        %3839 = vmatprep.subr.bf16.mxu0 0
        %3840 = vmatpush1.bf16.msra.mxu0 0
        %3841 = vmatprep.subr.bf16.mxu0 0
        %3842 = vmatpush1.bf16.msra.mxu0 0
        %3843 = vmatprep.mubr.bf16.mxu0 0
        %3844 = vmatmul.mubr.bf16.gmra.mrb[0].mxu0 %v3788
        %v3845 = vpop.f32.mrb[0].mxu0
        %v3846 = vadd.f32 0.0, %v3845
        %v3847 = vpop.f32.mrb[0].mxu0
        %v3848 = vadd.f32 0.0, %v3847
        %v3849 = vpop.f32.mrb[0].mxu0
        %v3850 = vadd.f32 0.0, %v3849
        %v3851 = vpop.f32.mrb[0].mxu0
        %v3852 = vadd.f32 0.0, %v3851
        %3853 = vmatprep.mubr.bf16.mxu0 0
        %3854 = vmatmul.mubr.bf16.gmra.mrb[0].mxu0 %v3791
        %v3855 = vpop.f32.mrb[0].mxu0
        %v3856 = vadd.f32 0.0, %v3855
        %v3857 = vpop.f32.mrb[0].mxu0
        %v3858 = vadd.f32 0.0, %v3857
        %v3859 = vpop.f32.mrb[0].mxu0
        %v3860 = vadd.f32 0.0, %v3859
        %v3861 = vpop.f32.mrb[0].mxu0
        %v3862 = vadd.f32 0.0, %v3861
        %3863 = vmatprep.mubr.bf16.mxu0 0
        %3864 = vmatmul.mubr.bf16.gmra.mrb[0].mxu0 %v3794
        %v3865 = vpop.f32.mrb[0].mxu0
        %v3866 = vadd.f32 0.0, %v3865
        %v3867 = vpop.f32.mrb[0].mxu0
        %v3868 = vadd.f32 0.0, %v3867
        %v3869 = vpop.f32.mrb[0].mxu0
        %v3870 = vadd.f32 0.0, %v3869
        %v3871 = vpop.f32.mrb[0].mxu0
        %v3872 = vadd.f32 0.0, %v3871
        %3873 = vmatprep.mubr.bf16.mxu0 0
        %3874 = vmatmul.mubr.bf16.gmra.mrb[0].mxu0 %v3797
        %v3875 = vpop.f32.mrb[0].mxu0
        %v3876 = vadd.f32 0.0, %v3875
        %v3877 = vpop.f32.mrb[0].mxu0
        %v3878 = vadd.f32 0.0, %v3877
        %v3879 = vpop.f32.mrb[0].mxu0
        %v3880 = vadd.f32 0.0, %v3879
        %v3881 = vpop.f32.mrb[0].mxu0
        %v3882 = vadd.f32 0.0, %v3881
        %3883 = vmatprep.mubr.bf16.mxu0 0
        %3884 = vmatmul.mubr.bf16.gmra.mrb[0].mxu0 %v3800
        %v3885 = vpop.f32.mrb[0].mxu0
        %v3886 = vadd.f32 0.0, %v3885
        %v3887 = vpop.f32.mrb[0].mxu0
        %v3888 = vadd.f32 0.0, %v3887
        %v3889 = vpop.f32.mrb[0].mxu0
        %v3890 = vadd.f32 0.0, %v3889
        %v3891 = vpop.f32.mrb[0].mxu0
        %v3892 = vadd.f32 0.0, %v3891
        %3893 = vmatprep.mubr.bf16.mxu0 0
        %3894 = vmatmul.mubr.bf16.gmra.mrb[0].mxu0 %v3803
        %v3895 = vpop.f32.mrb[0].mxu0
        %v3896 = vadd.f32 0.0, %v3895
        %v3897 = vpop.f32.mrb[0].mxu0
        %v3898 = vadd.f32 0.0, %v3897
        %v3899 = vpop.f32.mrb[0].mxu0
        %v3900 = vadd.f32 0.0, %v3899
        %v3901 = vpop.f32.mrb[0].mxu0
        %v3902 = vadd.f32 0.0, %v3901
        %3903 = vmatprep.mubr.bf16.mxu0 0
        %3904 = vmatmul.mubr.bf16.gmra.mrb[0].mxu0 %v3806
        %v3905 = vpop.f32.mrb[0].mxu0
        %v3906 = vadd.f32 0.0, %v3905
        %v3907 = vpop.f32.mrb[0].mxu0
        %v3908 = vadd.f32 0.0, %v3907
        %v3909 = vpop.f32.mrb[0].mxu0
        %v3910 = vadd.f32 0.0, %v3909
        %v3911 = vpop.f32.mrb[0].mxu0
        %v3912 = vadd.f32 0.0, %v3911
        %3913 = vmatprep.mubr.bf16.mxu0 0
        %3914 = vmatmul.mubr.bf16.gmra.mrb[0].mxu0 %v3809
        %v3915 = vpop.f32.mrb[0].mxu0
        %v3916 = vadd.f32 0.0, %v3915
        %v3917 = vpop.f32.mrb[0].mxu0
        %v3918 = vadd.f32 0.0, %v3917
        %v3919 = vpop.f32.mrb[0].mxu0
        %v3920 = vadd.f32 0.0, %v3919
        %v3921 = vpop.f32.mrb[0].mxu0
        %v3922 = vadd.f32 0.0, %v3921
        %3923 = vdwg.mxu0
        %v3924 = vmul.f32 %v3846, %v3664
        %v3925 = vmul.f32 %v3848, %v3665
        %v3926 = vmul.f32 %v3850, %v3666
        %v3927 = vmul.f32 %v3852, %v3667
        %v3928 = vmul.f32 %v3856, %v3664
        %v3929 = vmul.f32 %v3858, %v3665
        %v3930 = vmul.f32 %v3860, %v3666
        %v3931 = vmul.f32 %v3862, %v3667
        %v3932 = vmul.f32 %v3866, %v3664
        %v3933 = vmul.f32 %v3868, %v3665
        %v3934 = vmul.f32 %v3870, %v3666
        %v3935 = vmul.f32 %v3872, %v3667
        %v3936 = vmul.f32 %v3876, %v3664
        %v3937 = vmul.f32 %v3878, %v3665
        %v3938 = vmul.f32 %v3880, %v3666
        %v3939 = vmul.f32 %v3882, %v3667
        %v3940 = vmul.f32 %v3886, %v3664
        %v3941 = vmul.f32 %v3888, %v3665
        %v3942 = vmul.f32 %v3890, %v3666
        %v3943 = vmul.f32 %v3892, %v3667
        %v3944 = vmul.f32 %v3896, %v3664
        %v3945 = vmul.f32 %v3898, %v3665
        %v3946 = vmul.f32 %v3900, %v3666
        %v3947 = vmul.f32 %v3902, %v3667
        %v3948 = vmul.f32 %v3906, %v3664
        %v3949 = vmul.f32 %v3908, %v3665
        %v3950 = vmul.f32 %v3910, %v3666
        %v3951 = vmul.f32 %v3912, %v3667
        %v3952 = vmul.f32 %v3916, %v3664
        %v3953 = vmul.f32 %v3918, %v3665
        %v3954 = vmul.f32 %v3920, %v3666
        %v3955 = vmul.f32 %v3922, %v3667
        %v3956 = vadd.f32 %v3924, %v3926
        %v3957 = vrot.slane %v3956, 4
        %v3958 = vadd.f32 %v3956, %v3957
        %v3959 = vrot.slane %v3958, 2
        %v3960 = vadd.f32 %v3958, %v3959
        %v3961 = vrot.slane %v3960, 1
        %v3962 = vadd.f32 %v3960, %v3961
        %v3963 = vadd.f32 %v3925, %v3927
        %v3964 = vrot.slane %v3963, 4
        %v3965 = vadd.f32 %v3963, %v3964
        %v3966 = vrot.slane %v3965, 2
        %v3967 = vadd.f32 %v3965, %v3966
        %v3968 = vrot.slane %v3967, 1
        %v3969 = vadd.f32 %v3967, %v3968
        %v3970 = vadd.f32 %v3928, %v3930
        %v3971 = vrot.slane %v3970, 4
        %v3972 = vadd.f32 %v3970, %v3971
        %v3973 = vrot.slane %v3972, 2
        %v3974 = vadd.f32 %v3972, %v3973
        %v3975 = vrot.slane %v3974, 1
        %v3976 = vadd.f32 %v3974, %v3975
        %v3977 = vadd.f32 %v3929, %v3931
        %v3978 = vrot.slane %v3977, 4
        %v3979 = vadd.f32 %v3977, %v3978
        %v3980 = vrot.slane %v3979, 2
        %v3981 = vadd.f32 %v3979, %v3980
        %v3982 = vrot.slane %v3981, 1
        %v3983 = vadd.f32 %v3981, %v3982
        %v3984 = vadd.f32 %v3932, %v3934
        %v3985 = vrot.slane %v3984, 4
        %v3986 = vadd.f32 %v3984, %v3985
        %v3987 = vrot.slane %v3986, 2
        %v3988 = vadd.f32 %v3986, %v3987
        %v3989 = vrot.slane %v3988, 1
        %v3990 = vadd.f32 %v3988, %v3989
        %v3991 = vadd.f32 %v3933, %v3935
        %v3992 = vrot.slane %v3991, 4
        %v3993 = vadd.f32 %v3991, %v3992
        %v3994 = vrot.slane %v3993, 2
        %v3995 = vadd.f32 %v3993, %v3994
        %v3996 = vrot.slane %v3995, 1
        %v3997 = vadd.f32 %v3995, %v3996
        %v3998 = vadd.f32 %v3936, %v3938
        %v3999 = vrot.slane %v3998, 4
        %v4000 = vadd.f32 %v3998, %v3999
        %v4001 = vrot.slane %v4000, 2
        %v4002 = vadd.f32 %v4000, %v4001
        %v4003 = vrot.slane %v4002, 1
        %v4004 = vadd.f32 %v4002, %v4003
        %v4005 = vadd.f32 %v3937, %v3939
        %v4006 = vrot.slane %v4005, 4
        %v4007 = vadd.f32 %v4005, %v4006
        %v4008 = vrot.slane %v4007, 2
        %v4009 = vadd.f32 %v4007, %v4008
        %v4010 = vrot.slane %v4009, 1
        %v4011 = vadd.f32 %v4009, %v4010
        %v4012 = vadd.f32 %v3940, %v3942
        %v4013 = vrot.slane %v4012, 4
        %v4014 = vadd.f32 %v4012, %v4013
        %v4015 = vrot.slane %v4014, 2
        %v4016 = vadd.f32 %v4014, %v4015
        %v4017 = vrot.slane %v4016, 1
        %v4018 = vadd.f32 %v4016, %v4017
        %v4019 = vadd.f32 %v3941, %v3943
        %v4020 = vrot.slane %v4019, 4
        %v4021 = vadd.f32 %v4019, %v4020
        %v4022 = vrot.slane %v4021, 2
        %v4023 = vadd.f32 %v4021, %v4022
        %v4024 = vrot.slane %v4023, 1
        %v4025 = vadd.f32 %v4023, %v4024
        %v4026 = vadd.f32 %v3944, %v3946
        %v4027 = vrot.slane %v4026, 4
        %v4028 = vadd.f32 %v4026, %v4027
        %v4029 = vrot.slane %v4028, 2
        %v4030 = vadd.f32 %v4028, %v4029
        %v4031 = vrot.slane %v4030, 1
        %v4032 = vadd.f32 %v4030, %v4031
        %v4033 = vadd.f32 %v3945, %v3947
        %v4034 = vrot.slane %v4033, 4
        %v4035 = vadd.f32 %v4033, %v4034
        %v4036 = vrot.slane %v4035, 2
        %v4037 = vadd.f32 %v4035, %v4036
        %v4038 = vrot.slane %v4037, 1
        %v4039 = vadd.f32 %v4037, %v4038
        %v4040 = vadd.f32 %v3948, %v3950
        %v4041 = vrot.slane %v4040, 4
        %v4042 = vadd.f32 %v4040, %v4041
        %v4043 = vrot.slane %v4042, 2
        %v4044 = vadd.f32 %v4042, %v4043
        %v4045 = vrot.slane %v4044, 1
        %v4046 = vadd.f32 %v4044, %v4045
        %v4047 = vadd.f32 %v3949, %v3951
        %v4048 = vrot.slane %v4047, 4
        %v4049 = vadd.f32 %v4047, %v4048
        %v4050 = vrot.slane %v4049, 2
        %v4051 = vadd.f32 %v4049, %v4050
        %v4052 = vrot.slane %v4051, 1
        %v4053 = vadd.f32 %v4051, %v4052
        %v4054 = vadd.f32 %v3952, %v3954
        %v4055 = vrot.slane %v4054, 4
        %v4056 = vadd.f32 %v4054, %v4055
        %v4057 = vrot.slane %v4056, 2
        %v4058 = vadd.f32 %v4056, %v4057
        %v4059 = vrot.slane %v4058, 1
        %v4060 = vadd.f32 %v4058, %v4059
        %v4061 = vadd.f32 %v3953, %v3955
        %v4062 = vrot.slane %v4061, 4
        %v4063 = vadd.f32 %v4061, %v4062
        %v4064 = vrot.slane %v4063, 2
        %v4065 = vadd.f32 %v4063, %v4064
        %v4066 = vrot.slane %v4065, 1
        %v4067 = vadd.f32 %v4065, %v4066
        %v4068 = vadd.f32 %v3582, %v3962
        %v4069 = vadd.f32 %v3583, %v3969
        %v4070 = vadd.f32 %v3584, %v3976
        %v4071 = vadd.f32 %v3585, %v3983
        %v4072 = vadd.f32 %v3586, %v3990
        %v4073 = vadd.f32 %v3587, %v3997
        %v4074 = vadd.f32 %v3588, %v4004
        %v4075 = vadd.f32 %v3589, %v4011
        %v4076 = vadd.f32 %v3590, %v4018
        %v4077 = vadd.f32 %v3591, %v4025
        %v4078 = vadd.f32 %v3592, %v4032
        %v4079 = vadd.f32 %v3593, %v4039
        %v4080 = vadd.f32 %v3594, %v4046
        %v4081 = vadd.f32 %v3595, %v4053
        %v4082 = vadd.f32 %v3596, %v4060
        %v4083 = vadd.f32 %v3597, %v4067
        %s4084 = scalar_lea.vmem %s190, 32
        %v4085 = vld [vmem:[%s4084] ss:$8 sm:$0x3]
        %s4086 = scalar_lea.vmem %s190, 33
        %v4087 = vld [vmem:[%s4086] ss:$8 sm:$0x3]
        %v4088 = vfloor.f32 %v4085
        %v4089 = vfloor.f32 %v4087
        %v4090 = vsub.f32 %v4085, %v4088
        %v4091 = vsub.f32 %v4087, %v4089
        %v4092 = vcvt.f32.s32.to.zero.pseudo %v4088
        %v4093 = vcvt.f32.s32.to.zero.pseudo %v4089
        %v4094 = vlaneseq
        %v4095 = vshrl.u32 %v4094, 7
        %v4096 = vsub.s32 0, %v4095
        %v4097 = vrot.slane %v4092, %v4096
        %v4098 = vlaneseq
        %v4099 = vshrl.u32 %v4098, 7
        %v4100 = vsub.s32 1, %v4099
        %v4101 = vrot.slane %v4092, %v4100
        %vm4102 = vcmp.eq.s32.totalorder %v195, %v4097
        %vm4103 = vcmp.eq.s32.totalorder %v195, %v4101
        %vm4104 = vcmp.eq.s32.totalorder %v196, %v4097
        %vm4105 = vcmp.eq.s32.totalorder %v196, %v4101
        %v4106 = vsub.f32 1.0, %v4090
        %v4108 = vlaneseq
        %v4109 = vshrl.u32 %v4108, 7
        %v4110 = vsub.s32 0, %v4109
        %v4111 = vrot.slane %v4106, %v4110
        %v4112 = vlaneseq
        %v4113 = vshrl.u32 %v4112, 7
        %v4114 = vsub.s32 1, %v4113
        %v4115 = vrot.slane %v4106, %v4114
        %v4118 = vsel %vm4102, %v4111, 0.0
        %v4119 = vsel %vm4103, %v4115, 0.0
        %v4120 = vsel %vm4104, %v4111, 0.0
        %v4121 = vsel %vm4105, %v4115, 0.0
        %v4122 = vadd.s32 %v4092, 1
        %v4123 = vlaneseq
        %v4124 = vshrl.u32 %v4123, 7
        %v4125 = vsub.s32 0, %v4124
        %v4126 = vrot.slane %v4122, %v4125
        %v4127 = vlaneseq
        %v4128 = vshrl.u32 %v4127, 7
        %v4129 = vsub.s32 1, %v4128
        %v4130 = vrot.slane %v4122, %v4129
        %vm4131 = vcmp.eq.s32.totalorder %v195, %v4126
        %vm4132 = vcmp.eq.s32.totalorder %v195, %v4130
        %vm4133 = vcmp.eq.s32.totalorder %v196, %v4126
        %vm4134 = vcmp.eq.s32.totalorder %v196, %v4130
        %v4136 = vlaneseq
        %v4137 = vshrl.u32 %v4136, 7
        %v4138 = vsub.s32 0, %v4137
        %v4139 = vrot.slane %v4090, %v4138
        %v4140 = vlaneseq
        %v4141 = vshrl.u32 %v4140, 7
        %v4142 = vsub.s32 1, %v4141
        %v4143 = vrot.slane %v4090, %v4142
        %v4146 = vsel %vm4131, %v4139, 0.0
        %v4147 = vsel %vm4132, %v4143, 0.0
        %v4148 = vsel %vm4133, %v4139, 0.0
        %v4149 = vsel %vm4134, %v4143, 0.0
        %v4150 = vadd.f32 %v4118, %v4146
        %v4151 = vadd.f32 %v4119, %v4147
        %v4152 = vadd.f32 %v4120, %v4148
        %v4153 = vadd.f32 %v4121, %v4149
        %v4154 = vlaneseq
        %v4155 = vshrl.u32 %v4154, 7
        %v4156 = vsub.s32 0, %v4155
        %v4157 = vrot.slane %v4093, %v4156
        %v4158 = vlaneseq
        %v4159 = vshrl.u32 %v4158, 7
        %v4160 = vsub.s32 1, %v4159
        %v4161 = vrot.slane %v4093, %v4160
        %vm4162 = vcmp.eq.s32.totalorder %v195, %v4157
        %vm4163 = vcmp.eq.s32.totalorder %v195, %v4161
        %vm4164 = vcmp.eq.s32.totalorder %v196, %v4157
        %vm4165 = vcmp.eq.s32.totalorder %v196, %v4161
        %v4166 = vsub.f32 1.0, %v4091
        %v4168 = vlaneseq
        %v4169 = vshrl.u32 %v4168, 7
        %v4170 = vsub.s32 0, %v4169
        %v4171 = vrot.slane %v4166, %v4170
        %v4172 = vlaneseq
        %v4173 = vshrl.u32 %v4172, 7
        %v4174 = vsub.s32 1, %v4173
        %v4175 = vrot.slane %v4166, %v4174
        %v4178 = vsel %vm4162, %v4171, 0.0
        %v4179 = vsel %vm4163, %v4175, 0.0
        %v4180 = vsel %vm4164, %v4171, 0.0
        %v4181 = vsel %vm4165, %v4175, 0.0
        %v4182 = vadd.s32 %v4093, 1
        %v4183 = vlaneseq
        %v4184 = vshrl.u32 %v4183, 7
        %v4185 = vsub.s32 0, %v4184
        %v4186 = vrot.slane %v4182, %v4185
        %v4187 = vlaneseq
        %v4188 = vshrl.u32 %v4187, 7
        %v4189 = vsub.s32 1, %v4188
        %v4190 = vrot.slane %v4182, %v4189
        %vm4191 = vcmp.eq.s32.totalorder %v195, %v4186
        %vm4192 = vcmp.eq.s32.totalorder %v195, %v4190
        %vm4193 = vcmp.eq.s32.totalorder %v196, %v4186
        %vm4194 = vcmp.eq.s32.totalorder %v196, %v4190
        %v4196 = vlaneseq
        %v4197 = vshrl.u32 %v4196, 7
        %v4198 = vsub.s32 0, %v4197
        %v4199 = vrot.slane %v4091, %v4198
        %v4200 = vlaneseq
        %v4201 = vshrl.u32 %v4200, 7
        %v4202 = vsub.s32 1, %v4201
        %v4203 = vrot.slane %v4091, %v4202
        %v4206 = vsel %vm4191, %v4199, 0.0
        %v4207 = vsel %vm4192, %v4203, 0.0
        %v4208 = vsel %vm4193, %v4199, 0.0
        %v4209 = vsel %vm4194, %v4203, 0.0
        %v4210 = vadd.f32 %v4178, %v4206
        %v4211 = vadd.f32 %v4179, %v4207
        %v4212 = vadd.f32 %v4180, %v4208
        %v4213 = vadd.f32 %v4181, %v4209
        %v4214 = vpack.c.bf16 %v4212, %v4210
        %v4215 = vpack.c.bf16 %v4213, %v4211
        %s4216 = scalar_lea.vmem %s181, 512
        %v4217 = vld [vmem:[%s4216] sm:$0xf]
        %v4218 = vld [vmem:[%s4216 + $0x4] sm:$0xf]
        %v4219 = vld [vmem:[%s4216 + $0x8] sm:$0xf]
        %v4220 = vld [vmem:[%s4216 + $0xc] sm:$0xf]
        %v4221 = vld [vmem:[%s4216 + $0x10] sm:$0xf]
        %v4222 = vld [vmem:[%s4216 + $0x14] sm:$0xf]
        %v4223 = vld [vmem:[%s4216 + $0x18] sm:$0xf]
        %v4224 = vld [vmem:[%s4216 + $0x1c] sm:$0xf]
        %v4225 = vld [vmem:[%s4216 + $0x20] sm:$0xf]
        %v4226 = vld [vmem:[%s4216 + $0x24] sm:$0xf]
        %v4227 = vld [vmem:[%s4216 + $0x28] sm:$0xf]
        %v4228 = vld [vmem:[%s4216 + $0x2c] sm:$0xf]
        %v4229 = vld [vmem:[%s4216 + $0x30] sm:$0xf]
        %v4230 = vld [vmem:[%s4216 + $0x34] sm:$0xf]
        %v4231 = vld [vmem:[%s4216 + $0x38] sm:$0xf]
        %v4232 = vld [vmem:[%s4216 + $0x3c] sm:$0xf]
        %v4249 = vunpack.c.l.b16 %v4217
        %v4250 = vunpack.c.l.b16 %v4218
        %v4251 = vunpack.c.l.b16 %v4219
        %v4252 = vunpack.c.l.b16 %v4220
        %v4253 = vunpack.c.l.b16 %v4221
        %v4254 = vunpack.c.l.b16 %v4222
        %v4255 = vunpack.c.l.b16 %v4223
        %v4256 = vunpack.c.l.b16 %v4224
        %v4257 = vunpack.c.l.b16 %v4225
        %v4258 = vunpack.c.l.b16 %v4226
        %v4259 = vunpack.c.l.b16 %v4227
        %v4260 = vunpack.c.l.b16 %v4228
        %v4261 = vunpack.c.l.b16 %v4229
        %v4262 = vunpack.c.l.b16 %v4230
        %v4263 = vunpack.c.l.b16 %v4231
        %v4264 = vunpack.c.l.b16 %v4232
        %v4265 = vpack.c.b16 %v4250, %v4249
        %v4266 = vpack.c.b16 %v4252, %v4251
        %v4267 = vpack.c.b16 %v4254, %v4253
        %v4268 = vpack.c.b16 %v4256, %v4255
        %v4269 = vpack.c.b16 %v4258, %v4257
        %v4270 = vpack.c.b16 %v4260, %v4259
        %v4271 = vpack.c.b16 %v4262, %v4261
        %v4272 = vpack.c.b16 %v4264, %v4263
        %v4274 = vsel %vm384, %v4265, 0
        %v4277 = vsel %vm384, %v4266, 0
        %v4280 = vsel %vm384, %v4267, 0
        %v4283 = vsel %vm384, %v4268, 0
        %v4286 = vsel %vm384, %v4269, 0
        %v4289 = vsel %vm384, %v4270, 0
        %v4292 = vsel %vm384, %v4271, 0
        %v4295 = vsel %vm384, %v4272, 0
        %4297 = vmatprep.subr.bf16.mxu0 %v4215
        %4298 = vmatpush1.bf16.msra.mxu0 %v4214
        %4299 = vmatprep.subr.bf16.mxu0 0
        %4300 = vmatpush1.bf16.msra.mxu0 0
        %4301 = vmatprep.subr.bf16.mxu0 0
        %4302 = vmatpush1.bf16.msra.mxu0 0
        %4303 = vmatprep.subr.bf16.mxu0 0
        %4304 = vmatpush1.bf16.msra.mxu0 0
        %4305 = vmatprep.subr.bf16.mxu0 0
        %4306 = vmatpush1.bf16.msra.mxu0 0
        %4307 = vmatprep.subr.bf16.mxu0 0
        %4308 = vmatpush1.bf16.msra.mxu0 0
        %4309 = vmatprep.subr.bf16.mxu0 0
        %4310 = vmatpush1.bf16.msra.mxu0 0
        %4311 = vmatprep.subr.bf16.mxu0 0
        %4312 = vmatpush1.bf16.msra.mxu0 0
        %4313 = vmatprep.subr.bf16.mxu0 0
        %4314 = vmatpush1.bf16.msra.mxu0 0
        %4315 = vmatprep.subr.bf16.mxu0 0
        %4316 = vmatpush1.bf16.msra.mxu0 0
        %4317 = vmatprep.subr.bf16.mxu0 0
        %4318 = vmatpush1.bf16.msra.mxu0 0
        %4319 = vmatprep.subr.bf16.mxu0 0
        %4320 = vmatpush1.bf16.msra.mxu0 0
        %4321 = vmatprep.subr.bf16.mxu0 0
        %4322 = vmatpush1.bf16.msra.mxu0 0
        %4323 = vmatprep.subr.bf16.mxu0 0
        %4324 = vmatpush1.bf16.msra.mxu0 0
        %4325 = vmatprep.subr.bf16.mxu0 0
        %4326 = vmatpush1.bf16.msra.mxu0 0
        %4327 = vmatprep.subr.bf16.mxu0 0
        %4328 = vmatpush1.bf16.msra.mxu0 0
        %4329 = vmatprep.mubr.bf16.mxu0 0
        %4330 = vmatmul.mubr.bf16.gmra.mrb[0].mxu0 %v4274
        %v4331 = vpop.f32.mrb[0].mxu0
        %v4332 = vadd.f32 0.0, %v4331
        %v4333 = vpop.f32.mrb[0].mxu0
        %v4334 = vadd.f32 0.0, %v4333
        %v4335 = vpop.f32.mrb[0].mxu0
        %v4336 = vadd.f32 0.0, %v4335
        %v4337 = vpop.f32.mrb[0].mxu0
        %v4338 = vadd.f32 0.0, %v4337
        %4339 = vmatprep.mubr.bf16.mxu0 0
        %4340 = vmatmul.mubr.bf16.gmra.mrb[0].mxu0 %v4277
        %v4341 = vpop.f32.mrb[0].mxu0
        %v4342 = vadd.f32 0.0, %v4341
        %v4343 = vpop.f32.mrb[0].mxu0
        %v4344 = vadd.f32 0.0, %v4343
        %v4345 = vpop.f32.mrb[0].mxu0
        %v4346 = vadd.f32 0.0, %v4345
        %v4347 = vpop.f32.mrb[0].mxu0
        %v4348 = vadd.f32 0.0, %v4347
        %4349 = vmatprep.mubr.bf16.mxu0 0
        %4350 = vmatmul.mubr.bf16.gmra.mrb[0].mxu0 %v4280
        %v4351 = vpop.f32.mrb[0].mxu0
        %v4352 = vadd.f32 0.0, %v4351
        %v4353 = vpop.f32.mrb[0].mxu0
        %v4354 = vadd.f32 0.0, %v4353
        %v4355 = vpop.f32.mrb[0].mxu0
        %v4356 = vadd.f32 0.0, %v4355
        %v4357 = vpop.f32.mrb[0].mxu0
        %v4358 = vadd.f32 0.0, %v4357
        %4359 = vmatprep.mubr.bf16.mxu0 0
        %4360 = vmatmul.mubr.bf16.gmra.mrb[0].mxu0 %v4283
        %v4361 = vpop.f32.mrb[0].mxu0
        %v4362 = vadd.f32 0.0, %v4361
        %v4363 = vpop.f32.mrb[0].mxu0
        %v4364 = vadd.f32 0.0, %v4363
        %v4365 = vpop.f32.mrb[0].mxu0
        %v4366 = vadd.f32 0.0, %v4365
        %v4367 = vpop.f32.mrb[0].mxu0
        %v4368 = vadd.f32 0.0, %v4367
        %4369 = vmatprep.mubr.bf16.mxu0 0
        %4370 = vmatmul.mubr.bf16.gmra.mrb[0].mxu0 %v4286
        %v4371 = vpop.f32.mrb[0].mxu0
        %v4372 = vadd.f32 0.0, %v4371
        %v4373 = vpop.f32.mrb[0].mxu0
        %v4374 = vadd.f32 0.0, %v4373
        %v4375 = vpop.f32.mrb[0].mxu0
        %v4376 = vadd.f32 0.0, %v4375
        %v4377 = vpop.f32.mrb[0].mxu0
        %v4378 = vadd.f32 0.0, %v4377
        %4379 = vmatprep.mubr.bf16.mxu0 0
        %4380 = vmatmul.mubr.bf16.gmra.mrb[0].mxu0 %v4289
        %v4381 = vpop.f32.mrb[0].mxu0
        %v4382 = vadd.f32 0.0, %v4381
        %v4383 = vpop.f32.mrb[0].mxu0
        %v4384 = vadd.f32 0.0, %v4383
        %v4385 = vpop.f32.mrb[0].mxu0
        %v4386 = vadd.f32 0.0, %v4385
        %v4387 = vpop.f32.mrb[0].mxu0
        %v4388 = vadd.f32 0.0, %v4387
        %4389 = vmatprep.mubr.bf16.mxu0 0
        %4390 = vmatmul.mubr.bf16.gmra.mrb[0].mxu0 %v4292
        %v4391 = vpop.f32.mrb[0].mxu0
        %v4392 = vadd.f32 0.0, %v4391
        %v4393 = vpop.f32.mrb[0].mxu0
        %v4394 = vadd.f32 0.0, %v4393
        %v4395 = vpop.f32.mrb[0].mxu0
        %v4396 = vadd.f32 0.0, %v4395
        %v4397 = vpop.f32.mrb[0].mxu0
        %v4398 = vadd.f32 0.0, %v4397
        %4399 = vmatprep.mubr.bf16.mxu0 0
        %4400 = vmatmul.mubr.bf16.gmra.mrb[0].mxu0 %v4295
        %v4401 = vpop.f32.mrb[0].mxu0
        %v4402 = vadd.f32 0.0, %v4401
        %v4403 = vpop.f32.mrb[0].mxu0
        %v4404 = vadd.f32 0.0, %v4403
        %v4405 = vpop.f32.mrb[0].mxu0
        %v4406 = vadd.f32 0.0, %v4405
        %v4407 = vpop.f32.mrb[0].mxu0
        %v4408 = vadd.f32 0.0, %v4407
        %4409 = vdwg.mxu0
        %v4410 = vmul.f32 %v4332, %v4150
        %v4411 = vmul.f32 %v4334, %v4151
        %v4412 = vmul.f32 %v4336, %v4152
        %v4413 = vmul.f32 %v4338, %v4153
        %v4414 = vmul.f32 %v4342, %v4150
        %v4415 = vmul.f32 %v4344, %v4151
        %v4416 = vmul.f32 %v4346, %v4152
        %v4417 = vmul.f32 %v4348, %v4153
        %v4418 = vmul.f32 %v4352, %v4150
        %v4419 = vmul.f32 %v4354, %v4151
        %v4420 = vmul.f32 %v4356, %v4152
        %v4421 = vmul.f32 %v4358, %v4153
        %v4422 = vmul.f32 %v4362, %v4150
        %v4423 = vmul.f32 %v4364, %v4151
        %v4424 = vmul.f32 %v4366, %v4152
        %v4425 = vmul.f32 %v4368, %v4153
        %v4426 = vmul.f32 %v4372, %v4150
        %v4427 = vmul.f32 %v4374, %v4151
        %v4428 = vmul.f32 %v4376, %v4152
        %v4429 = vmul.f32 %v4378, %v4153
        %v4430 = vmul.f32 %v4382, %v4150
        %v4431 = vmul.f32 %v4384, %v4151
        %v4432 = vmul.f32 %v4386, %v4152
        %v4433 = vmul.f32 %v4388, %v4153
        %v4434 = vmul.f32 %v4392, %v4150
        %v4435 = vmul.f32 %v4394, %v4151
        %v4436 = vmul.f32 %v4396, %v4152
        %v4437 = vmul.f32 %v4398, %v4153
        %v4438 = vmul.f32 %v4402, %v4150
        %v4439 = vmul.f32 %v4404, %v4151
        %v4440 = vmul.f32 %v4406, %v4152
        %v4441 = vmul.f32 %v4408, %v4153
        %v4442 = vadd.f32 %v4410, %v4412
        %v4443 = vrot.slane %v4442, 4
        %v4444 = vadd.f32 %v4442, %v4443
        %v4445 = vrot.slane %v4444, 2
        %v4446 = vadd.f32 %v4444, %v4445
        %v4447 = vrot.slane %v4446, 1
        %v4448 = vadd.f32 %v4446, %v4447
        %v4449 = vadd.f32 %v4411, %v4413
        %v4450 = vrot.slane %v4449, 4
        %v4451 = vadd.f32 %v4449, %v4450
        %v4452 = vrot.slane %v4451, 2
        %v4453 = vadd.f32 %v4451, %v4452
        %v4454 = vrot.slane %v4453, 1
        %v4455 = vadd.f32 %v4453, %v4454
        %v4456 = vadd.f32 %v4414, %v4416
        %v4457 = vrot.slane %v4456, 4
        %v4458 = vadd.f32 %v4456, %v4457
        %v4459 = vrot.slane %v4458, 2
        %v4460 = vadd.f32 %v4458, %v4459
        %v4461 = vrot.slane %v4460, 1
        %v4462 = vadd.f32 %v4460, %v4461
        %v4463 = vadd.f32 %v4415, %v4417
        %v4464 = vrot.slane %v4463, 4
        %v4465 = vadd.f32 %v4463, %v4464
        %v4466 = vrot.slane %v4465, 2
        %v4467 = vadd.f32 %v4465, %v4466
        %v4468 = vrot.slane %v4467, 1
        %v4469 = vadd.f32 %v4467, %v4468
        %v4470 = vadd.f32 %v4418, %v4420
        %v4471 = vrot.slane %v4470, 4
        %v4472 = vadd.f32 %v4470, %v4471
        %v4473 = vrot.slane %v4472, 2
        %v4474 = vadd.f32 %v4472, %v4473
        %v4475 = vrot.slane %v4474, 1
        %v4476 = vadd.f32 %v4474, %v4475
        %v4477 = vadd.f32 %v4419, %v4421
        %v4478 = vrot.slane %v4477, 4
        %v4479 = vadd.f32 %v4477, %v4478
        %v4480 = vrot.slane %v4479, 2
        %v4481 = vadd.f32 %v4479, %v4480
        %v4482 = vrot.slane %v4481, 1
        %v4483 = vadd.f32 %v4481, %v4482
        %v4484 = vadd.f32 %v4422, %v4424
        %v4485 = vrot.slane %v4484, 4
        %v4486 = vadd.f32 %v4484, %v4485
        %v4487 = vrot.slane %v4486, 2
        %v4488 = vadd.f32 %v4486, %v4487
        %v4489 = vrot.slane %v4488, 1
        %v4490 = vadd.f32 %v4488, %v4489
        %v4491 = vadd.f32 %v4423, %v4425
        %v4492 = vrot.slane %v4491, 4
        %v4493 = vadd.f32 %v4491, %v4492
        %v4494 = vrot.slane %v4493, 2
        %v4495 = vadd.f32 %v4493, %v4494
        %v4496 = vrot.slane %v4495, 1
        %v4497 = vadd.f32 %v4495, %v4496
        %v4498 = vadd.f32 %v4426, %v4428
        %v4499 = vrot.slane %v4498, 4
        %v4500 = vadd.f32 %v4498, %v4499
        %v4501 = vrot.slane %v4500, 2
        %v4502 = vadd.f32 %v4500, %v4501
        %v4503 = vrot.slane %v4502, 1
        %v4504 = vadd.f32 %v4502, %v4503
        %v4505 = vadd.f32 %v4427, %v4429
        %v4506 = vrot.slane %v4505, 4
        %v4507 = vadd.f32 %v4505, %v4506
        %v4508 = vrot.slane %v4507, 2
        %v4509 = vadd.f32 %v4507, %v4508
        %v4510 = vrot.slane %v4509, 1
        %v4511 = vadd.f32 %v4509, %v4510
        %v4512 = vadd.f32 %v4430, %v4432
        %v4513 = vrot.slane %v4512, 4
        %v4514 = vadd.f32 %v4512, %v4513
        %v4515 = vrot.slane %v4514, 2
        %v4516 = vadd.f32 %v4514, %v4515
        %v4517 = vrot.slane %v4516, 1
        %v4518 = vadd.f32 %v4516, %v4517
        %v4519 = vadd.f32 %v4431, %v4433
        %v4520 = vrot.slane %v4519, 4
        %v4521 = vadd.f32 %v4519, %v4520
        %v4522 = vrot.slane %v4521, 2
        %v4523 = vadd.f32 %v4521, %v4522
        %v4524 = vrot.slane %v4523, 1
        %v4525 = vadd.f32 %v4523, %v4524
        %v4526 = vadd.f32 %v4434, %v4436
        %v4527 = vrot.slane %v4526, 4
        %v4528 = vadd.f32 %v4526, %v4527
        %v4529 = vrot.slane %v4528, 2
        %v4530 = vadd.f32 %v4528, %v4529
        %v4531 = vrot.slane %v4530, 1
        %v4532 = vadd.f32 %v4530, %v4531
        %v4533 = vadd.f32 %v4435, %v4437
        %v4534 = vrot.slane %v4533, 4
        %v4535 = vadd.f32 %v4533, %v4534
        %v4536 = vrot.slane %v4535, 2
        %v4537 = vadd.f32 %v4535, %v4536
        %v4538 = vrot.slane %v4537, 1
        %v4539 = vadd.f32 %v4537, %v4538
        %v4540 = vadd.f32 %v4438, %v4440
        %v4541 = vrot.slane %v4540, 4
        %v4542 = vadd.f32 %v4540, %v4541
        %v4543 = vrot.slane %v4542, 2
        %v4544 = vadd.f32 %v4542, %v4543
        %v4545 = vrot.slane %v4544, 1
        %v4546 = vadd.f32 %v4544, %v4545
        %v4547 = vadd.f32 %v4439, %v4441
        %v4548 = vrot.slane %v4547, 4
        %v4549 = vadd.f32 %v4547, %v4548
        %v4550 = vrot.slane %v4549, 2
        %v4551 = vadd.f32 %v4549, %v4550
        %v4552 = vrot.slane %v4551, 1
        %v4553 = vadd.f32 %v4551, %v4552
        %v4554 = vadd.f32 %v4068, %v4448
        %v4555 = vadd.f32 %v4069, %v4455
        %v4556 = vadd.f32 %v4070, %v4462
        %v4557 = vadd.f32 %v4071, %v4469
        %v4558 = vadd.f32 %v4072, %v4476
        %v4559 = vadd.f32 %v4073, %v4483
        %v4560 = vadd.f32 %v4074, %v4490
        %v4561 = vadd.f32 %v4075, %v4497
        %v4562 = vadd.f32 %v4076, %v4504
        %v4563 = vadd.f32 %v4077, %v4511
        %v4564 = vadd.f32 %v4078, %v4518
        %v4565 = vadd.f32 %v4079, %v4525
        %v4566 = vadd.f32 %v4080, %v4532
        %v4567 = vadd.f32 %v4081, %v4539
        %v4568 = vadd.f32 %v4082, %v4546
        %v4569 = vadd.f32 %v4083, %v4553
        %vm4586 = vcmask 1041409
        %v4587 = vsel %vm4586, %v4556, %v4554
        %vm4588 = vcmask 1042434
        %v4589 = vsel %vm4588, %v4558, %v4587
        %vm4590 = vcmask 1043459
        %v4591 = vsel %vm4590, %v4560, %v4589
        %vm4592 = vcmask 1044484
        %v4593 = vsel %vm4592, %v4562, %v4591
        %vm4594 = vcmask 1045509
        %v4595 = vsel %vm4594, %v4564, %v4593
        %vm4596 = vcmask 1046534
        %v4597 = vsel %vm4596, %v4566, %v4595
        %vm4598 = vcmask 1047559
        %v4599 = vsel %vm4598, %v4568, %v4597
        %v4600 = vsel %vm4586, %v4557, %v4555
        %v4601 = vsel %vm4588, %v4559, %v4600
        %v4602 = vsel %vm4590, %v4561, %v4601
        %v4603 = vsel %vm4592, %v4563, %v4602
        %v4604 = vsel %vm4594, %v4565, %v4603
        %v4605 = vsel %vm4596, %v4567, %v4604
        %v4606 = vsel %vm4598, %v4569, %v4605
        %4609 = vst [vmem:[%s176] sm:$0xff] %v4599
        %4610 = vst [vmem:[%s176 + $0x8] sm:$0xff] %v4606
        %s4611 = sand.u32 %s92, 1
        %s4612 = scalar_lea.sflag [#allocation3], %s4611
        %s4613 = sand.u32 %s92, 1
        %s4614 = smul.addr %s4613, 16
        %s4615 = scalar_lea.vmem [#allocation2], %s4614
        // Predicated region
        $region29: #{tpu_custom_call.1} parent=27 // pred_check
          %p4616 = pneg %p102
        $region30: #{tpu_custom_call.1} parent=27 // pred_check_branch
          %4618 = sbr.rel (%p4616) target = $region32
        $region31: #{tpu_custom_call.1} parent=27 // pred_region
          %s4619 = smul.u32 2, %s21
          %s4621 = ssub.s32 256, 256
          %4622 = vsyncadd %s4612, %s4621
          %s4623 = smul.addr %s20, 2
          %s4624 = sadd.s32 %s4619, %s4623
          %s4625 = smul.addr %s4624, 128
          %s4626 = scalar_lea.hbm %s2, %s4625
          %s4628 = sshll.u32 %s4615, 4
          %s4629 = int_to_ptr.vmem [resolvable:$true] %s4628
          %4631 = dma.vmem_to_hbm [thread:$0]  %s4629, 256, %s4626, %s4612
        $region32: #{tpu_custom_call.1} parent=27 // pred_fallthru
          _
      $region28: #{tpu_custom_call.1} parent=5 // pred_fallthru
        _
      %p4632 = scmp.le.s32.totalorder 2, %s11
      // Predicated region
      $region33: #{tpu_custom_call.1} parent=5 // pred_check
        %p4633 = pneg %p4632
      $region34: #{tpu_custom_call.1} parent=5 // pred_check_branch
        %4635 = sbr.rel (%p4633) target = $region36
      $region35: #{tpu_custom_call.1} parent=5 // pred_region
        %s4636 = ssub.s32 %s11, 2
        // Predicated region
        $region37: #{tpu_custom_call.1} parent=35 // pred_check
          %p4637 = pneg %p108
        $region38: #{tpu_custom_call.1} parent=35 // pred_check_branch
          %4639 = sbr.rel (%p4637) target = $region40
        $region39: #{tpu_custom_call.1} parent=35 // pred_region
          %s4640 = sand.u32 %s93, 1
          %s4641 = scalar_lea.sflag [#allocation3], %s4640
          %s4642 = sand.u32 %s93, 1
          %s4643 = smul.addr %s4642, 16
          %s4644 = scalar_lea.vmem [#allocation2], %s4643
          %4645 = dma.done %s4641, 256
        $region40: #{tpu_custom_call.1} parent=35 // pred_fallthru
          _
      $region36: #{tpu_custom_call.1} parent=5 // pred_fallthru
        _
    $region6: #{tpu_custom_call.1} parent=1 // loop_footer
      %s15 = sadd.s32 1, %s11
    $region7: #{tpu_custom_call.1} parent=1 // loop_footer_branch
      %10 = sbr.rel target = $region3
    $region8: #{tpu_custom_call.1} parent=1 // loop_exit
      _
    %4646 = vsyncpa [#allocation3], 1
    %s4647 = scalar_lea.sflag [#allocation3], 1
    %4648 = vsyncpa %s4647, 1

</llo_original>
